<compile_context>
chip_gen: v7x
topology: tpu7x:2x2x1
jax: 0.10.0
libtpu: 0.0.40
codegen_flags: <defaults>
</compile_context>

<pallas_src>
import functools

import jax
import jax.numpy as jnp
from jax import lax
from jax.experimental import pallas as pl
from jax.experimental.pallas import tpu as pltpu

_EPS = 1e-7
_BIG = 1e30
_META_W = 16
# meta columns: 0 key_pos, 1 label, 2 vis, 3 num_targets, 4..7 GT box (cxcywh),
#               8 num_boxes (clamped), 9..15 padding
_C_KEYPOS, _C_LABEL, _C_VIS, _C_TLEN, _C_BOX, _C_NUMBOX = 0, 1, 2, 3, 4, 8
# packed output lanes
_SLOT_CE, _SLOT_CEB, _SLOT_ACC, _SLOT_CARD, _SLOT_BBOX, _SLOT_GIOU = range(6)
_NUM_SLOTS = 6


def _giou_cxcywh(pcx, pcy, pw, ph, tcx, tcy, tw, th, *, approx):
    """Generalized IoU between (cx,cy,w,h) boxes (broadcasting elementwise)."""
    px0, py0 = pcx - 0.5 * pw, pcy - 0.5 * ph
    px1, py1 = pcx + 0.5 * pw, pcy + 0.5 * ph
    tx0, ty0 = tcx - 0.5 * tw, tcy - 0.5 * th
    tx1, ty1 = tcx + 0.5 * tw, tcy + 0.5 * th
    area_p = (px1 - px0) * (py1 - py0)
    area_t = (tx1 - tx0) * (ty1 - ty0)
    ix0 = jnp.maximum(px0, tx0)
    iy0 = jnp.maximum(py0, ty0)
    ix1 = jnp.minimum(px1, tx1)
    iy1 = jnp.minimum(py1, ty1)
    inter = jnp.maximum(ix1 - ix0, 0.0) * jnp.maximum(iy1 - iy0, 0.0)
    union = area_p + area_t - inter
    ex0 = jnp.minimum(px0, tx0)
    ey0 = jnp.minimum(py0, ty0)
    ex1 = jnp.maximum(px1, tx1)
    ey1 = jnp.maximum(py1, ty1)
    area_c = (ex1 - ex0) * (ey1 - ey0)
    if approx:            # matcher cost path: EUP reciprocal is free and robust
        inv_u = pl.reciprocal(union + _EPS, approx=True)
        inv_c = pl.reciprocal(area_c + _EPS, approx=True)
    else:                 # loss path: exact division for closer reference parity
        inv_u = 1.0 / (union + _EPS)
        inv_c = 1.0 / (area_c + _EPS)
    iou = inter * inv_u
    return iou - (area_c - union) * inv_c


# ----------------------------------------------------------------------------
# Single fused kernel: all decoder levels, all losses, one (8,128) output tile
# ----------------------------------------------------------------------------
def _criterion_kernel(meta_ref, logits_ref, boxes_ref, logits_b_ref, out_ref,
                      *, nq, num_classes, eos_coef, out_rows):
    f32 = jnp.float32
    logits = logits_ref[...].astype(f32)          # [L, B, Q, K]   (Q = T*nq)
    boxes = boxes_ref[...].astype(f32)            # [L, B, Q, 4]
    lb = logits_b_ref[...].astype(f32)            # [L, B, 1, Kb]
    meta = meta_ref[...].astype(f32)              # [1, B, 1, MW]

    L, B, Q, K = logits.shape
    Kb = lb.shape[-1]

    def fld(c):                                    # (1,B,1,1) meta column
        return meta[..., c:c + 1]

    kp = fld(_C_KEYPOS).astype(jnp.int32)
    lab = fld(_C_LABEL).astype(jnp.int32)
    vis = fld(_C_VIS).astype(jnp.int32)
    tlen = fld(_C_TLEN)
    tcx, tcy, tw, th = (fld(_C_BOX + j) for j in range(4))
    nb = fld(_C_NUMBOX)                            # num_boxes (>=1), same every row

    qi = lax.broadcasted_iota(jnp.int32, (1, 1, Q, 1), 2)
    ki = lax.broadcasted_iota(jnp.int32, (1, 1, 1, K), 3)
    kbi = lax.broadcasted_iota(jnp.int32, (1, 1, 1, Kb), 3)

    def redq(x):                                   # [L,B,Q,1] -> [L,B,1,1]
        return jnp.sum(x, axis=2, keepdims=True)

    def redb(x):                                   # [N,B,1,1] -> [N,1,1,1]
        return jnp.sum(x, axis=1, keepdims=True)

    # ---- key-frame window mask (replaces the key-frame gather of the reference)
    kf_lo = kp * nq
    kf = (qi >= kf_lo) & (qi < kf_lo + nq)         # (1,B,Q,1)

    # ---- per-query log-softmax pieces
    m = jnp.max(logits, axis=-1, keepdims=True)
    lse = m + jnp.log(jnp.sum(jnp.exp(logits - m), axis=-1, keepdims=True))
    labmask = ki == lab                            # (1,B,1,K)
    logit_lab = jnp.sum(jnp.where(labmask, logits, 0.0), axis=-1, keepdims=True)
    logit_noobj = logits[..., K - 1:K]             # no-object class (= num_classes)

    # ---- in-kernel matcher: with exactly one GT tube per sample (JHMDB) the
    #      Hungarian assignment reduces to a per-sample cost argmin.
    # TODO(synk): general multi-GT Hungarian matching (scipy linear_sum_assignment)
    # has no Pallas equivalent; this reduction is only valid for 1 GT per sample.
    bcx, bcy, bw, bh = (boxes[..., j:j + 1] for j in range(4))
    cost_class = -jnp.exp(logit_lab - lse)
    cost_bbox = (jnp.abs(bcx - tcx) + jnp.abs(bcy - tcy) +
                 jnp.abs(bw - tw) + jnp.abs(bh - th))
    giou_q = _giou_cxcywh(bcx, bcy, bw, bh, tcx, tcy, tw, th, approx=True)
    cost = cost_class + 5.0 * cost_bbox - 2.0 * giou_q
    cost = jnp.where(kf, cost, _BIG)               # restrict to key-frame queries
    cmin = jnp.min(cost, axis=2, keepdims=True)
    sel = jnp.min(jnp.where(cost == cmin, qi, Q), axis=2, keepdims=True)
    match = qi == sel                              # [L,B,Q,1] matched-query one-hot

    # ---- weighted CE over the key-frame queries (F.cross_entropy w/ empty_weight)
    logit_t = jnp.where(match, logit_lab, logit_noobj)
    nll = lse - logit_t
    w_match = jnp.where(lab == num_classes, f32(eos_coef), f32(1.0))
    w = jnp.where(match, w_match, f32(eos_coef))
    w = jnp.where(kf, w, 0.0)
    loss_ce = redb(redq(w * nll)) / redb(redq(w))                  # [L,1,1,1]

    # ---- binary-visibility CE on pred_logits_b (mean over batch)
    mb = jnp.max(lb, axis=-1, keepdims=True)
    lse_b = mb + jnp.log(jnp.sum(jnp.exp(lb - mb), axis=-1, keepdims=True))
    logit_vis = jnp.sum(jnp.where(kbi == vis, lb, 0.0), axis=-1, keepdims=True)
    loss_ce_b = redb(lse_b - logit_vis) * (1.0 / B)                # [L,1,1,1]

    # ---- class_error (main level only; aux levels use log=False in the reference)
    lg0, ll0, oh0 = logits[0:1], logit_lab[0:1], match[0:1]
    beats = oh0 & ((lg0 > ll0) | ((lg0 == ll0) & (ki < lab)))      # first-max argmax
    wrong = jnp.max(jnp.max(beats.astype(f32), axis=-1, keepdims=True),
                    axis=2, keepdims=True)                         # [1,B,1,1]
    cls_err = redb(wrong) * (100.0 / B)                            # [1,1,1,1]
    cls_col = jnp.zeros((L, 1, 1, 1), f32) + cls_err               # [L,1,1,1]

    # ---- cardinality error over key-frame queries
    max_other = jnp.max(jnp.where(ki < K - 1, logits, -_BIG),
                        axis=-1, keepdims=True)
    is_obj = jnp.where(kf & (max_other >= logit_noobj), 1.0, 0.0)
    card = redq(is_obj)                                            # [L,B,1,1]
    card_err = redb(jnp.abs(card - tlen)) * (1.0 / B)              # [L,1,1,1]

    # ---- box losses (L1 + GIoU) on matched pairs
    mcx = redq(jnp.where(match, bcx, 0.0))
    mcy = redq(jnp.where(match, bcy, 0.0))
    mw_ = redq(jnp.where(match, bw, 0.0))
    mh_ = redq(jnp.where(match, bh, 0.0))
    l1 = (jnp.abs(mcx - tcx) + jnp.abs(mcy - tcy) +
          jnp.abs(mw_ - tw) + jnp.abs(mh_ - th))                   # [L,B,1,1]
    giou_m = _giou_cxcywh(mcx, mcy, mw_, mh_, tcx, tcy, tw, th, approx=False)
    loss_bbox = redb(l1 / nb)                                      # [L,1,1,1]
    loss_giou = redb((1.0 - giou_m) / nb)                          # [L,1,1,1]

    # ---- pack: ONE lane-dense (out_rows,128) tile; row = level, lane = slot
    cols = jnp.concatenate(
        [loss_ce, loss_ce_b, cls_col, card_err, loss_bbox, loss_giou],
        axis=3)                                                    # [L,1,1,6]
    vals = jnp.reshape(cols, (L, _NUM_SLOTS))                      # [L,6]
    if out_rows > L:
        vals = jnp.concatenate(
            [vals, jnp.zeros((out_rows - L, _NUM_SLOTS), f32)], axis=0)
    tile = jnp.concatenate(
        [vals, jnp.zeros((out_rows, 128 - _NUM_SLOTS), f32)], axis=1)
    out_ref[...] = tile


def _run_criterion(meta, logits_all, boxes_all, logits_b_all,
                   *, nq, num_classes, eos_coef):
    L, B, Q, K = logits_all.shape
    Kb = logits_b_all.shape[-1]
    out_rows = ((L + 7) // 8) * 8
    kernel = functools.partial(
        _criterion_kernel, nq=nq, num_classes=num_classes,
        eos_coef=eos_coef, out_rows=out_rows)
    return pl.pallas_call(
        kernel,
        out_shape=jax.ShapeDtypeStruct((out_rows, 128), jnp.float32),
        grid=(1,),
        in_specs=[
            pl.BlockSpec((1, B, 1, _META_W), lambda i: (0, 0, 0, 0)),
            pl.BlockSpec((L, B, Q, K), lambda i: (0, 0, 0, 0)),
            pl.BlockSpec((L, B, Q, 4), lambda i: (0, 0, 0, 0)),
            pl.BlockSpec((L, B, 1, Kb), lambda i: (0, 0, 0, 0)),
        ],
        out_specs=pl.BlockSpec((out_rows, 128), lambda i: (0, 0)),
        compiler_params=pltpu.CompilerParams(
            dimension_semantics=("arbitrary",)),
    )(meta, logits_all, boxes_all, logits_b_all)


# ----------------------------------------------------------------------------
# Wrapper (forward-pass semantics of SetCriterion for losses = labels/boxes/card)
# ----------------------------------------------------------------------------
class SetCriterionPallas:
    def __init__(self, num_classes, num_queries, eos_coef, losses):
        self.num_classes = num_classes
        self.num_queries = num_queries
        self.eos_coef = eos_coef
        self.losses = losses

    def __call__(self, outputs, targets):
        f32 = jnp.float32
        B = len(targets)

        # ---- batch the target dicts once into one tiny meta tile
        key_pos = jnp.stack(
            [jnp.reshape(t['key_pos'], ()) for t in targets]).astype(f32)
        labels = jnp.stack(
            [jnp.reshape(t['labels'], (-1,))[0] for t in targets]).astype(f32)
        vis = jnp.stack(
            [jnp.reshape(t['vis'], (-1,))[0] for t in targets]).astype(f32)
        tlen = jnp.array([t['labels'].shape[0] for t in targets], f32)
        tgt_boxes = jnp.stack([t['boxes'][0, 1:] for t in targets]).astype(f32)
        num_boxes = float(sum(int(t['labels'].shape[0]) for t in targets))
        nb_clamped = num_boxes if num_boxes > 0 else 1.0
        meta = jnp.concatenate(
            [key_pos[:, None], labels[:, None], vis[:, None], tlen[:, None],
             tgt_boxes, jnp.full((B, 1), nb_clamped, f32),
             jnp.zeros((B, _META_W - 9), f32)], axis=1)            # [B,16]
        meta = meta[None, :, None, :]                               # [1,B,1,16]

        # ---- stack decoder levels once: [L, ...]
        aux = outputs.get('aux_outputs', [])
        L = 1 + len(aux)
        logits_all = jnp.stack(
            [outputs['pred_logits']] + [a['pred_logits'] for a in aux], axis=0)
        boxes_all = jnp.stack(
            [outputs['pred_boxes']] + [a['pred_boxes'] for a in aux], axis=0)
        logits_b_all = jnp.stack(
            [outputs['pred_logits_b']] + [a['pred_logits_b'] for a in aux],
            axis=0)[:, :, None, :]                                  # [L,B,1,Kb]

        # ---- one fused kernel for all levels and all losses
        packed = _run_criterion(
            meta, logits_all, boxes_all, logits_b_all,
            nq=self.num_queries, num_classes=self.num_classes,
            eos_coef=self.eos_coef)                                 # [R,128]
        vals = packed[:L, :_NUM_SLOTS]                              # ONE slice

        losses = {}
        dummy = jnp.zeros((1,), f32)   # matches F.l1_loss(1,1, reduction='none')
        for lvl in range(L):
            sfx = '' if lvl == 0 else f'_{lvl - 1}'
            if 'labels' in self.losses:
                losses['loss_ce' + sfx] = vals[lvl, _SLOT_CE]
                losses['loss_ce_b' + sfx] = vals[lvl, _SLOT_CEB]
                if lvl == 0:                      # log=True only for main outputs
                    losses['class_error'] = vals[0, _SLOT_ACC]
            if 'cardinality' in self.losses:
                losses['cardinality_error' + sfx] = vals[lvl, _SLOT_CARD]
            if 'boxes' in self.losses:
                if num_boxes > 0:
                    losses['loss_bbox' + sfx] = vals[lvl, _SLOT_BBOX]
                    losses['loss_giou' + sfx] = vals[lvl, _SLOT_GIOU]
                else:
                    losses['loss_bbox' + sfx] = dummy
                    losses['loss_giou' + sfx] = dummy
            # TODO(synk): 'masks' loss (bilinear interpolate + sigmoid focal + dice)
            # is not in the active JHMDB loss list and is not implemented.
        return losses


# ----------------------------------------------------------------------------
# Example run
# ----------------------------------------------------------------------------
if __name__ == "__main__":
    key = jax.random.PRNGKey(0)
    B, T, nq, num_classes = 2, 4, 8, 21            # JHMDB: 21 action classes
    K = num_classes + 1
    ks = jax.random.split(key, 10)

    pred_logits = jax.random.normal(ks[0], (B, T * nq, K), jnp.float32)
    pred_boxes = jax.nn.sigmoid(jax.random.normal(ks[1], (B, T * nq, 4))).astype(jnp.float32)
    pred_logits_b = jax.random.normal(ks[2], (B, 2), jnp.float32)
    aux_logits = jax.random.normal(ks[3], (B, T * nq, K), jnp.float32)
    aux_boxes = jax.nn.sigmoid(jax.random.normal(ks[4], (B, T * nq, 4))).astype(jnp.float32)
    aux_logits_b = jax.random.normal(ks[5], (B, 2), jnp.float32)

    labels = jax.random.randint(ks[6], (B,), 0, num_classes)
    key_pos = jax.random.randint(ks[7], (B,), 0, T)
    gt_boxes = jax.nn.sigmoid(jax.random.normal(ks[8], (B, 4))).astype(jnp.float32)

    targets = []
    for i in range(B):
        boxes5 = jnp.concatenate(
            [key_pos[i].astype(jnp.float32)[None], gt_boxes[i]])[None, :]   # [1, 5]
        targets.append({
            'labels': labels[i:i + 1].astype(jnp.int32),
            'boxes': boxes5,
            'vis': jnp.array([1], jnp.int32),
            'key_pos': key_pos[i].astype(jnp.int32),
        })

    outputs = {
        'pred_logits': pred_logits,
        'pred_boxes': pred_boxes,
        'pred_logits_b': pred_logits_b,
        'aux_outputs': [{'pred_logits': aux_logits,
                         'pred_boxes': aux_boxes,
                         'pred_logits_b': aux_logits_b}],
    }

    criterion = SetCriterionPallas(num_classes=num_classes, num_queries=nq,
                                   eos_coef=0.1,
                                   losses=['labels', 'boxes', 'cardinality'])
    losses = criterion(outputs, targets)
    jax.block_until_ready(losses)
    print("KERNEL_OK")
</pallas_src>

<mosaic_0001>
module attributes {stable_mosaic.version = 11 : i64} {
  func.func @_criterion_kernel(%arg0: i32, %arg1: memref<1x2x1x16xf32, #tpu.memory_space<vmem>>, %arg2: memref<2x2x32x22xf32, #tpu.memory_space<vmem>>, %arg3: memref<2x2x32x4xf32, #tpu.memory_space<vmem>>, %arg4: memref<2x2x1x2xf32, #tpu.memory_space<vmem>>, %arg5: memref<8x128xf32, #tpu.memory_space<vmem>>) attributes {dimension_semantics = [#tpu.dimension_semantics<arbitrary>], iteration_bounds = array<i64: 1>, scalar_prefetch = 0 : i64, scratch_operands = 0 : i64, tpu.core_type = #tpu.core_type<tc>, window_params = [{pipeline_mode = #tpu.pipeline_mode<synchronous>, transform_indices = @transform_0, window_bounds = array<i64: 1, 2, 1, 16>}, {pipeline_mode = #tpu.pipeline_mode<synchronous>, transform_indices = @transform_1, window_bounds = array<i64: 2, 2, 32, 22>}, {pipeline_mode = #tpu.pipeline_mode<synchronous>, transform_indices = @transform_2, window_bounds = array<i64: 2, 2, 32, 4>}, {pipeline_mode = #tpu.pipeline_mode<synchronous>, transform_indices = @transform_3, window_bounds = array<i64: 2, 2, 1, 2>}, {pipeline_mode = #tpu.pipeline_mode<synchronous>, transform_indices = @transform_4, window_bounds = array<i64: 8, 128>}]} {
    %c0 = arith.constant 0 : index
    %c0_0 = arith.constant 0 : index
    %c0_1 = arith.constant 0 : index
    %c0_2 = arith.constant 0 : index
    %0 = vector.load %arg2[%c0, %c0_0, %c0_1, %c0_2] : memref<2x2x32x22xf32, #tpu.memory_space<vmem>>, vector<2x2x32x22xf32>
    %c0_3 = arith.constant 0 : index
    %c0_4 = arith.constant 0 : index
    %c0_5 = arith.constant 0 : index
    %c0_6 = arith.constant 0 : index
    %1 = vector.load %arg3[%c0_3, %c0_4, %c0_5, %c0_6] : memref<2x2x32x4xf32, #tpu.memory_space<vmem>>, vector<2x2x32x4xf32>
    %c0_7 = arith.constant 0 : index
    %c0_8 = arith.constant 0 : index
    %c0_9 = arith.constant 0 : index
    %c0_10 = arith.constant 0 : index
    %2 = vector.load %arg4[%c0_7, %c0_8, %c0_9, %c0_10] : memref<2x2x1x2xf32, #tpu.memory_space<vmem>>, vector<2x2x1x2xf32>
    %c0_11 = arith.constant 0 : index
    %c0_12 = arith.constant 0 : index
    %c0_13 = arith.constant 0 : index
    %c0_14 = arith.constant 0 : index
    %3 = vector.load %arg1[%c0_11, %c0_12, %c0_13, %c0_14] : memref<1x2x1x16xf32, #tpu.memory_space<vmem>>, vector<1x2x1x16xf32>
    %4 = vector.extract_strided_slice %3 {offsets = [0, 0, 0, 0], sizes = [1, 2, 1, 1], strides = [1, 1, 1, 1]} : vector<1x2x1x16xf32> to vector<1x2x1x1xf32>
    %5 = arith.fptosi %4 : vector<1x2x1x1xf32> to vector<1x2x1x1xi32>
    %6 = vector.extract_strided_slice %3 {offsets = [0, 0, 0, 1], sizes = [1, 2, 1, 1], strides = [1, 1, 1, 1]} : vector<1x2x1x16xf32> to vector<1x2x1x1xf32>
    %7 = arith.fptosi %6 : vector<1x2x1x1xf32> to vector<1x2x1x1xi32>
    %8 = vector.extract_strided_slice %3 {offsets = [0, 0, 0, 2], sizes = [1, 2, 1, 1], strides = [1, 1, 1, 1]} : vector<1x2x1x16xf32> to vector<1x2x1x1xf32>
    %9 = arith.fptosi %8 : vector<1x2x1x1xf32> to vector<1x2x1x1xi32>
    %10 = vector.extract_strided_slice %3 {offsets = [0, 0, 0, 3], sizes = [1, 2, 1, 1], strides = [1, 1, 1, 1]} : vector<1x2x1x16xf32> to vector<1x2x1x1xf32>
    %11 = vector.extract_strided_slice %3 {offsets = [0, 0, 0, 4], sizes = [1, 2, 1, 1], strides = [1, 1, 1, 1]} : vector<1x2x1x16xf32> to vector<1x2x1x1xf32>
    %12 = vector.extract_strided_slice %3 {offsets = [0, 0, 0, 5], sizes = [1, 2, 1, 1], strides = [1, 1, 1, 1]} : vector<1x2x1x16xf32> to vector<1x2x1x1xf32>
    %13 = vector.extract_strided_slice %3 {offsets = [0, 0, 0, 6], sizes = [1, 2, 1, 1], strides = [1, 1, 1, 1]} : vector<1x2x1x16xf32> to vector<1x2x1x1xf32>
    %14 = vector.extract_strided_slice %3 {offsets = [0, 0, 0, 7], sizes = [1, 2, 1, 1], strides = [1, 1, 1, 1]} : vector<1x2x1x16xf32> to vector<1x2x1x1xf32>
    %15 = vector.extract_strided_slice %3 {offsets = [0, 0, 0, 8], sizes = [1, 2, 1, 1], strides = [1, 1, 1, 1]} : vector<1x2x1x16xf32> to vector<1x2x1x1xf32>
    %16 = tpu.iota {dimensions = array<i32: 2>} : vector<1x1x32x1xi32>
    %17 = tpu.iota {dimensions = array<i32: 3>} : vector<1x1x1x22xi32>
    %18 = tpu.iota {dimensions = array<i32: 3>} : vector<1x1x1x2xi32>
    %c8_i32 = arith.constant 8 : i32
    %19 = vector.broadcast %c8_i32 : i32 to vector<1x2x1x1xi32>
    %20 = arith.muli %5, %19 : vector<1x2x1x1xi32>
    %21 = vector.broadcast %16 : vector<1x1x32x1xi32> to vector<1x2x32x1xi32>
    %22 = vector.broadcast %20 : vector<1x2x1x1xi32> to vector<1x2x32x1xi32>
    %23 = arith.cmpi sge, %21, %22 : vector<1x2x32x1xi32>
    %c8_i32_15 = arith.constant 8 : i32
    %24 = vector.broadcast %c8_i32_15 : i32 to vector<1x2x1x1xi32>
    %25 = arith.addi %20, %24 : vector<1x2x1x1xi32>
    %26 = vector.broadcast %16 : vector<1x1x32x1xi32> to vector<1x2x32x1xi32>
    %27 = vector.broadcast %25 : vector<1x2x1x1xi32> to vector<1x2x32x1xi32>
    %28 = arith.cmpi slt, %26, %27 : vector<1x2x32x1xi32>
    %29 = arith.andi %23, %28 : vector<1x2x32x1xi1>
    %cst = arith.constant dense<0xFF800000> : vector<2x2x32xf32>
    %30 = vector.multi_reduction <maximumf>, %0, %cst [3] : vector<2x2x32x22xf32> to vector<2x2x32xf32>
    %31 = vector.shape_cast %30 : vector<2x2x32xf32> to vector<2x2x32x1xf32>
    %32 = vector.broadcast %31 : vector<2x2x32x1xf32> to vector<2x2x32x22xf32>
    %33 = arith.subf %0, %32 : vector<2x2x32x22xf32>
    %34 = math.exp %33 : vector<2x2x32x22xf32>
    %cst_16 = arith.constant dense<0.000000e+00> : vector<2x2x32xf32>
    %35 = vector.multi_reduction <add>, %34, %cst_16 [3] : vector<2x2x32x22xf32> to vector<2x2x32xf32>
    %36 = vector.shape_cast %35 : vector<2x2x32xf32> to vector<2x2x32x1xf32>
    %37 = math.log %36 : vector<2x2x32x1xf32>
    %38 = arith.addf %31, %37 : vector<2x2x32x1xf32>
    %39 = vector.broadcast %17 : vector<1x1x1x22xi32> to vector<1x2x1x22xi32>
    %40 = vector.broadcast %7 : vector<1x2x1x1xi32> to vector<1x2x1x22xi32>
    %41 = arith.cmpi eq, %39, %40 : vector<1x2x1x22xi32>
    %cst_17 = arith.constant 0.000000e+00 : f32
    %42 = vector.shape_cast %41 : vector<1x2x1x22xi1> to vector<1x2x1x22xi1>
    %43 = vector.broadcast %42 : vector<1x2x1x22xi1> to vector<2x2x32x22xi1>
    %44 = vector.broadcast %cst_17 : f32 to vector<2x2x32x22xf32>
    %45 = arith.select %43, %0, %44 : vector<2x2x32x22xi1>, vector<2x2x32x22xf32>
    %cst_18 = arith.constant dense<0.000000e+00> : vector<2x2x32xf32>
    %46 = vector.multi_reduction <add>, %45, %cst_18 [3] : vector<2x2x32x22xf32> to vector<2x2x32xf32>
    %47 = vector.shape_cast %46 : vector<2x2x32xf32> to vector<2x2x32x1xf32>
    %48 = vector.extract_strided_slice %0 {offsets = [0, 0, 0, 21], sizes = [2, 2, 32, 1], strides = [1, 1, 1, 1]} : vector<2x2x32x22xf32> to vector<2x2x32x1xf32>
    %49 = vector.extract_strided_slice %1 {offsets = [0, 0, 0, 0], sizes = [2, 2, 32, 1], strides = [1, 1, 1, 1]} : vector<2x2x32x4xf32> to vector<2x2x32x1xf32>
    %50 = vector.extract_strided_slice %1 {offsets = [0, 0, 0, 1], sizes = [2, 2, 32, 1], strides = [1, 1, 1, 1]} : vector<2x2x32x4xf32> to vector<2x2x32x1xf32>
    %51 = vector.extract_strided_slice %1 {offsets = [0, 0, 0, 2], sizes = [2, 2, 32, 1], strides = [1, 1, 1, 1]} : vector<2x2x32x4xf32> to vector<2x2x32x1xf32>
    %52 = vector.extract_strided_slice %1 {offsets = [0, 0, 0, 3], sizes = [2, 2, 32, 1], strides = [1, 1, 1, 1]} : vector<2x2x32x4xf32> to vector<2x2x32x1xf32>
    %53 = arith.subf %47, %38 : vector<2x2x32x1xf32>
    %54 = math.exp %53 : vector<2x2x32x1xf32>
    %cst_19 = arith.constant 0.000000e+00 : f32
    %55 = vector.broadcast %cst_19 : f32 to vector<2x2x32x1xf32>
    %56 = arith.subf %55, %54 : vector<2x2x32x1xf32>
    %57 = vector.broadcast %11 : vector<1x2x1x1xf32> to vector<2x2x32x1xf32>
    %58 = arith.subf %49, %57 : vector<2x2x32x1xf32>
    %59 = math.absf %58 : vector<2x2x32x1xf32>
    %60 = vector.broadcast %12 : vector<1x2x1x1xf32> to vector<2x2x32x1xf32>
    %61 = arith.subf %50, %60 : vector<2x2x32x1xf32>
    %62 = math.absf %61 : vector<2x2x32x1xf32>
    %63 = arith.addf %59, %62 : vector<2x2x32x1xf32>
    %64 = vector.broadcast %13 : vector<1x2x1x1xf32> to vector<2x2x32x1xf32>
    %65 = arith.subf %51, %64 : vector<2x2x32x1xf32>
    %66 = math.absf %65 : vector<2x2x32x1xf32>
    %67 = arith.addf %63, %66 : vector<2x2x32x1xf32>
    %68 = vector.broadcast %14 : vector<1x2x1x1xf32> to vector<2x2x32x1xf32>
    %69 = arith.subf %52, %68 : vector<2x2x32x1xf32>
    %70 = math.absf %69 : vector<2x2x32x1xf32>
    %71 = arith.addf %67, %70 : vector<2x2x32x1xf32>
    %cst_20 = arith.constant 5.000000e-01 : f32
    %72 = vector.broadcast %cst_20 : f32 to vector<2x2x32x1xf32>
    %73 = arith.mulf %72, %51 : vector<2x2x32x1xf32>
    %74 = arith.subf %49, %73 : vector<2x2x32x1xf32>
    %cst_21 = arith.constant 5.000000e-01 : f32
    %75 = vector.broadcast %cst_21 : f32 to vector<2x2x32x1xf32>
    %76 = arith.mulf %75, %52 : vector<2x2x32x1xf32>
    %77 = arith.subf %50, %76 : vector<2x2x32x1xf32>
    %cst_22 = arith.constant 5.000000e-01 : f32
    %78 = vector.broadcast %cst_22 : f32 to vector<2x2x32x1xf32>
    %79 = arith.mulf %78, %51 : vector<2x2x32x1xf32>
    %80 = arith.addf %49, %79 : vector<2x2x32x1xf32>
    %cst_23 = arith.constant 5.000000e-01 : f32
    %81 = vector.broadcast %cst_23 : f32 to vector<2x2x32x1xf32>
    %82 = arith.mulf %81, %52 : vector<2x2x32x1xf32>
    %83 = arith.addf %50, %82 : vector<2x2x32x1xf32>
    %cst_24 = arith.constant 5.000000e-01 : f32
    %84 = vector.broadcast %cst_24 : f32 to vector<1x2x1x1xf32>
    %85 = arith.mulf %84, %13 : vector<1x2x1x1xf32>
    %86 = arith.subf %11, %85 : vector<1x2x1x1xf32>
    %cst_25 = arith.constant 5.000000e-01 : f32
    %87 = vector.broadcast %cst_25 : f32 to vector<1x2x1x1xf32>
    %88 = arith.mulf %87, %14 : vector<1x2x1x1xf32>
    %89 = arith.subf %12, %88 : vector<1x2x1x1xf32>
    %cst_26 = arith.constant 5.000000e-01 : f32
    %90 = vector.broadcast %cst_26 : f32 to vector<1x2x1x1xf32>
    %91 = arith.mulf %90, %13 : vector<1x2x1x1xf32>
    %92 = arith.addf %11, %91 : vector<1x2x1x1xf32>
    %cst_27 = arith.constant 5.000000e-01 : f32
    %93 = vector.broadcast %cst_27 : f32 to vector<1x2x1x1xf32>
    %94 = arith.mulf %93, %14 : vector<1x2x1x1xf32>
    %95 = arith.addf %12, %94 : vector<1x2x1x1xf32>
    %96 = arith.subf %80, %74 : vector<2x2x32x1xf32>
    %97 = arith.subf %83, %77 : vector<2x2x32x1xf32>
    %98 = arith.mulf %96, %97 : vector<2x2x32x1xf32>
    %99 = arith.subf %92, %86 : vector<1x2x1x1xf32>
    %100 = arith.subf %95, %89 : vector<1x2x1x1xf32>
    %101 = arith.mulf %99, %100 : vector<1x2x1x1xf32>
    %102 = vector.broadcast %86 : vector<1x2x1x1xf32> to vector<2x2x32x1xf32>
    %103 = arith.maximumf %74, %102 : vector<2x2x32x1xf32>
    %104 = vector.broadcast %89 : vector<1x2x1x1xf32> to vector<2x2x32x1xf32>
    %105 = arith.maximumf %77, %104 : vector<2x2x32x1xf32>
    %106 = vector.broadcast %92 : vector<1x2x1x1xf32> to vector<2x2x32x1xf32>
    %107 = arith.minimumf %80, %106 : vector<2x2x32x1xf32>
    %108 = vector.broadcast %95 : vector<1x2x1x1xf32> to vector<2x2x32x1xf32>
    %109 = arith.minimumf %83, %108 : vector<2x2x32x1xf32>
    %110 = arith.subf %107, %103 : vector<2x2x32x1xf32>
    %cst_28 = arith.constant 0.000000e+00 : f32
    %111 = vector.broadcast %cst_28 : f32 to vector<2x2x32x1xf32>
    %112 = arith.maximumf %110, %111 : vector<2x2x32x1xf32>
    %113 = arith.subf %109, %105 : vector<2x2x32x1xf32>
    %cst_29 = arith.constant 0.000000e+00 : f32
    %114 = vector.broadcast %cst_29 : f32 to vector<2x2x32x1xf32>
    %115 = arith.maximumf %113, %114 : vector<2x2x32x1xf32>
    %116 = arith.mulf %112, %115 : vector<2x2x32x1xf32>
    %117 = vector.broadcast %101 : vector<1x2x1x1xf32> to vector<2x2x32x1xf32>
    %118 = arith.addf %98, %117 : vector<2x2x32x1xf32>
    %119 = arith.subf %118, %116 : vector<2x2x32x1xf32>
    %120 = vector.broadcast %86 : vector<1x2x1x1xf32> to vector<2x2x32x1xf32>
    %121 = arith.minimumf %74, %120 : vector<2x2x32x1xf32>
    %122 = vector.broadcast %89 : vector<1x2x1x1xf32> to vector<2x2x32x1xf32>
    %123 = arith.minimumf %77, %122 : vector<2x2x32x1xf32>
    %124 = vector.broadcast %92 : vector<1x2x1x1xf32> to vector<2x2x32x1xf32>
    %125 = arith.maximumf %80, %124 : vector<2x2x32x1xf32>
    %126 = vector.broadcast %95 : vector<1x2x1x1xf32> to vector<2x2x32x1xf32>
    %127 = arith.maximumf %83, %126 : vector<2x2x32x1xf32>
    %128 = arith.subf %125, %121 : vector<2x2x32x1xf32>
    %129 = arith.subf %127, %123 : vector<2x2x32x1xf32>
    %130 = arith.mulf %128, %129 : vector<2x2x32x1xf32>
    %cst_30 = arith.constant 1.000000e-07 : f32
    %131 = vector.broadcast %cst_30 : f32 to vector<2x2x32x1xf32>
    %132 = arith.addf %119, %131 : vector<2x2x32x1xf32>
    %133 = tpu.reciprocal %132 {approx = true} : vector<2x2x32x1xf32> -> vector<2x2x32x1xf32>
    %cst_31 = arith.constant 1.000000e-07 : f32
    %134 = vector.broadcast %cst_31 : f32 to vector<2x2x32x1xf32>
    %135 = arith.addf %130, %134 : vector<2x2x32x1xf32>
    %136 = tpu.reciprocal %135 {approx = true} : vector<2x2x32x1xf32> -> vector<2x2x32x1xf32>
    %137 = arith.mulf %116, %133 : vector<2x2x32x1xf32>
    %138 = arith.subf %130, %119 : vector<2x2x32x1xf32>
    %139 = arith.mulf %138, %136 : vector<2x2x32x1xf32>
    %140 = arith.subf %137, %139 : vector<2x2x32x1xf32>
    %cst_32 = arith.constant 5.000000e+00 : f32
    %141 = vector.broadcast %cst_32 : f32 to vector<2x2x32x1xf32>
    %142 = arith.mulf %141, %71 : vector<2x2x32x1xf32>
    %143 = arith.addf %56, %142 : vector<2x2x32x1xf32>
    %cst_33 = arith.constant 2.000000e+00 : f32
    %144 = vector.broadcast %cst_33 : f32 to vector<2x2x32x1xf32>
    %145 = arith.mulf %144, %140 : vector<2x2x32x1xf32>
    %146 = arith.subf %143, %145 : vector<2x2x32x1xf32>
    %cst_34 = arith.constant 1.000000e+30 : f32
    %147 = vector.shape_cast %29 : vector<1x2x32x1xi1> to vector<1x2x32x1xi1>
    %148 = vector.broadcast %147 : vector<1x2x32x1xi1> to vector<2x2x32x1xi1>
    %149 = vector.broadcast %cst_34 : f32 to vector<2x2x32x1xf32>
    %150 = arith.select %148, %146, %149 : vector<2x2x32x1xi1>, vector<2x2x32x1xf32>
    %cst_35 = arith.constant dense<0x7F800000> : vector<2x2x1xf32>
    %151 = vector.multi_reduction <minimumf>, %150, %cst_35 [2] : vector<2x2x32x1xf32> to vector<2x2x1xf32>
    %152 = vector.shape_cast %151 : vector<2x2x1xf32> to vector<2x2x1x1xf32>
    %153 = vector.broadcast %152 : vector<2x2x1x1xf32> to vector<2x2x32x1xf32>
    %154 = arith.cmpf oeq, %150, %153 : vector<2x2x32x1xf32>
    %c32_i32 = arith.constant 32 : i32
    %155 = vector.shape_cast %16 : vector<1x1x32x1xi32> to vector<1x1x32x1xi32>
    %156 = vector.broadcast %155 : vector<1x1x32x1xi32> to vector<2x2x32x1xi32>
    %157 = vector.broadcast %c32_i32 : i32 to vector<2x2x32x1xi32>
    %158 = arith.select %154, %156, %157 : vector<2x2x32x1xi1>, vector<2x2x32x1xi32>
    %cst_36 = arith.constant dense<2147483647> : vector<2x2x1xi32>
    %159 = vector.multi_reduction <minsi>, %158, %cst_36 [2] : vector<2x2x32x1xi32> to vector<2x2x1xi32>
    %160 = vector.shape_cast %159 : vector<2x2x1xi32> to vector<2x2x1x1xi32>
    %161 = vector.broadcast %16 : vector<1x1x32x1xi32> to vector<2x2x32x1xi32>
    %162 = vector.broadcast %160 : vector<2x2x1x1xi32> to vector<2x2x32x1xi32>
    %163 = arith.cmpi eq, %161, %162 : vector<2x2x32x1xi32>
    %164 = arith.select %163, %47, %48 : vector<2x2x32x1xi1>, vector<2x2x32x1xf32>
    %165 = arith.subf %38, %164 : vector<2x2x32x1xf32>
    %c21_i32 = arith.constant 21 : i32
    %166 = vector.broadcast %c21_i32 : i32 to vector<1x2x1x1xi32>
    %167 = arith.cmpi eq, %7, %166 : vector<1x2x1x1xi32>
    %cst_37 = arith.constant 1.000000e-01 : f32
    %cst_38 = arith.constant 1.000000e+00 : f32
    %168 = vector.broadcast %cst_37 : f32 to vector<1x2x1x1xf32>
    %169 = vector.broadcast %cst_38 : f32 to vector<1x2x1x1xf32>
    %170 = arith.select %167, %168, %169 : vector<1x2x1x1xi1>, vector<1x2x1x1xf32>
    %cst_39 = arith.constant 1.000000e-01 : f32
    %171 = vector.shape_cast %170 : vector<1x2x1x1xf32> to vector<1x2x1x1xf32>
    %172 = vector.broadcast %171 : vector<1x2x1x1xf32> to vector<2x2x32x1xf32>
    %173 = vector.broadcast %cst_39 : f32 to vector<2x2x32x1xf32>
    %174 = arith.select %163, %172, %173 : vector<2x2x32x1xi1>, vector<2x2x32x1xf32>
    %cst_40 = arith.constant 0.000000e+00 : f32
    %175 = vector.shape_cast %29 : vector<1x2x32x1xi1> to vector<1x2x32x1xi1>
    %176 = vector.broadcast %175 : vector<1x2x32x1xi1> to vector<2x2x32x1xi1>
    %177 = vector.broadcast %cst_40 : f32 to vector<2x2x32x1xf32>
    %178 = arith.select %176, %174, %177 : vector<2x2x32x1xi1>, vector<2x2x32x1xf32>
    %179 = arith.mulf %178, %165 : vector<2x2x32x1xf32>
    %cst_41 = arith.constant dense<0.000000e+00> : vector<2x2x1xf32>
    %180 = vector.multi_reduction <add>, %179, %cst_41 [2] : vector<2x2x32x1xf32> to vector<2x2x1xf32>
    %181 = vector.shape_cast %180 : vector<2x2x1xf32> to vector<2x2x1x1xf32>
    %cst_42 = arith.constant dense<0.000000e+00> : vector<2x1x1xf32>
    %182 = vector.multi_reduction <add>, %181, %cst_42 [1] : vector<2x2x1x1xf32> to vector<2x1x1xf32>
    %183 = vector.shape_cast %182 : vector<2x1x1xf32> to vector<2x1x1x1xf32>
    %cst_43 = arith.constant dense<0.000000e+00> : vector<2x2x1xf32>
    %184 = vector.multi_reduction <add>, %178, %cst_43 [2] : vector<2x2x32x1xf32> to vector<2x2x1xf32>
    %185 = vector.shape_cast %184 : vector<2x2x1xf32> to vector<2x2x1x1xf32>
    %cst_44 = arith.constant dense<0.000000e+00> : vector<2x1x1xf32>
    %186 = vector.multi_reduction <add>, %185, %cst_44 [1] : vector<2x2x1x1xf32> to vector<2x1x1xf32>
    %187 = vector.shape_cast %186 : vector<2x1x1xf32> to vector<2x1x1x1xf32>
    %188 = arith.divf %183, %187 : vector<2x1x1x1xf32>
    %cst_45 = arith.constant dense<0xFF800000> : vector<2x2x1xf32>
    %189 = vector.multi_reduction <maximumf>, %2, %cst_45 [3] : vector<2x2x1x2xf32> to vector<2x2x1xf32>
    %190 = vector.shape_cast %189 : vector<2x2x1xf32> to vector<2x2x1x1xf32>
    %191 = vector.broadcast %190 : vector<2x2x1x1xf32> to vector<2x2x1x2xf32>
    %192 = arith.subf %2, %191 : vector<2x2x1x2xf32>
    %193 = math.exp %192 : vector<2x2x1x2xf32>
    %cst_46 = arith.constant dense<0.000000e+00> : vector<2x2x1xf32>
    %194 = vector.multi_reduction <add>, %193, %cst_46 [3] : vector<2x2x1x2xf32> to vector<2x2x1xf32>
    %195 = vector.shape_cast %194 : vector<2x2x1xf32> to vector<2x2x1x1xf32>
    %196 = math.log %195 : vector<2x2x1x1xf32>
    %197 = arith.addf %190, %196 : vector<2x2x1x1xf32>
    %198 = vector.broadcast %18 : vector<1x1x1x2xi32> to vector<1x2x1x2xi32>
    %199 = vector.broadcast %9 : vector<1x2x1x1xi32> to vector<1x2x1x2xi32>
    %200 = arith.cmpi eq, %198, %199 : vector<1x2x1x2xi32>
    %cst_47 = arith.constant 0.000000e+00 : f32
    %201 = vector.shape_cast %200 : vector<1x2x1x2xi1> to vector<1x2x1x2xi1>
    %202 = vector.broadcast %201 : vector<1x2x1x2xi1> to vector<2x2x1x2xi1>
    %203 = vector.broadcast %cst_47 : f32 to vector<2x2x1x2xf32>
    %204 = arith.select %202, %2, %203 : vector<2x2x1x2xi1>, vector<2x2x1x2xf32>
    %cst_48 = arith.constant dense<0.000000e+00> : vector<2x2x1xf32>
    %205 = vector.multi_reduction <add>, %204, %cst_48 [3] : vector<2x2x1x2xf32> to vector<2x2x1xf32>
    %206 = vector.shape_cast %205 : vector<2x2x1xf32> to vector<2x2x1x1xf32>
    %207 = arith.subf %197, %206 : vector<2x2x1x1xf32>
    %cst_49 = arith.constant dense<0.000000e+00> : vector<2x1x1xf32>
    %208 = vector.multi_reduction <add>, %207, %cst_49 [1] : vector<2x2x1x1xf32> to vector<2x1x1xf32>
    %209 = vector.shape_cast %208 : vector<2x1x1xf32> to vector<2x1x1x1xf32>
    %cst_50 = arith.constant 5.000000e-01 : f32
    %210 = vector.broadcast %cst_50 : f32 to vector<2x1x1x1xf32>
    %211 = arith.mulf %209, %210 : vector<2x1x1x1xf32>
    %212 = vector.extract_strided_slice %0 {offsets = [0, 0, 0, 0], sizes = [1, 2, 32, 22], strides = [1, 1, 1, 1]} : vector<2x2x32x22xf32> to vector<1x2x32x22xf32>
    %213 = vector.extract_strided_slice %47 {offsets = [0, 0, 0, 0], sizes = [1, 2, 32, 1], strides = [1, 1, 1, 1]} : vector<2x2x32x1xf32> to vector<1x2x32x1xf32>
    %214 = vector.extract_strided_slice %163 {offsets = [0, 0, 0, 0], sizes = [1, 2, 32, 1], strides = [1, 1, 1, 1]} : vector<2x2x32x1xi1> to vector<1x2x32x1xi1>
    %215 = vector.broadcast %213 : vector<1x2x32x1xf32> to vector<1x2x32x22xf32>
    %216 = arith.cmpf ogt, %212, %215 : vector<1x2x32x22xf32>
    %217 = vector.broadcast %213 : vector<1x2x32x1xf32> to vector<1x2x32x22xf32>
    %218 = arith.cmpf oeq, %212, %217 : vector<1x2x32x22xf32>
    %219 = vector.broadcast %17 : vector<1x1x1x22xi32> to vector<1x2x1x22xi32>
    %220 = vector.broadcast %7 : vector<1x2x1x1xi32> to vector<1x2x1x22xi32>
    %221 = arith.cmpi slt, %219, %220 : vector<1x2x1x22xi32>
    %222 = vector.broadcast %221 : vector<1x2x1x22xi1> to vector<1x2x32x22xi1>
    %223 = arith.andi %218, %222 : vector<1x2x32x22xi1>
    %224 = arith.ori %216, %223 : vector<1x2x32x22xi1>
    %225 = vector.broadcast %214 : vector<1x2x32x1xi1> to vector<1x2x32x22xi1>
    %226 = arith.andi %225, %224 : vector<1x2x32x22xi1>
    %227 = arith.extui %226 : vector<1x2x32x22xi1> to vector<1x2x32x22xi32>
    %228 = arith.sitofp %227 : vector<1x2x32x22xi32> to vector<1x2x32x22xf32>
    %cst_51 = arith.constant dense<0xFF800000> : vector<1x2x32xf32>
    %229 = vector.multi_reduction <maximumf>, %228, %cst_51 [3] : vector<1x2x32x22xf32> to vector<1x2x32xf32>
    %230 = vector.shape_cast %229 : vector<1x2x32xf32> to vector<1x2x32x1xf32>
    %cst_52 = arith.constant dense<0xFF800000> : vector<1x2x1xf32>
    %231 = vector.multi_reduction <maximumf>, %230, %cst_52 [2] : vector<1x2x32x1xf32> to vector<1x2x1xf32>
    %232 = vector.shape_cast %231 : vector<1x2x1xf32> to vector<1x2x1x1xf32>
    %cst_53 = arith.constant dense<0.000000e+00> : vector<1x1x1xf32>
    %233 = vector.multi_reduction <add>, %232, %cst_53 [1] : vector<1x2x1x1xf32> to vector<1x1x1xf32>
    %234 = vector.shape_cast %233 : vector<1x1x1xf32> to vector<1x1x1x1xf32>
    %cst_54 = arith.constant 5.000000e+01 : f32
    %235 = vector.broadcast %cst_54 : f32 to vector<1x1x1x1xf32>
    %236 = arith.mulf %234, %235 : vector<1x1x1x1xf32>
    %cst_55 = arith.constant 0.000000e+00 : f32
    %237 = vector.broadcast %cst_55 : f32 to vector<2x1x1x1xf32>
    %238 = vector.broadcast %236 : vector<1x1x1x1xf32> to vector<2x1x1x1xf32>
    %239 = arith.addf %237, %238 : vector<2x1x1x1xf32>
    %c21_i32_56 = arith.constant 21 : i32
    %240 = vector.broadcast %c21_i32_56 : i32 to vector<1x1x1x22xi32>
    %241 = arith.cmpi slt, %17, %240 : vector<1x1x1x22xi32>
    %cst_57 = arith.constant -1.000000e+30 : f32
    %242 = vector.shape_cast %241 : vector<1x1x1x22xi1> to vector<1x1x1x22xi1>
    %243 = vector.broadcast %242 : vector<1x1x1x22xi1> to vector<2x2x32x22xi1>
    %244 = vector.broadcast %cst_57 : f32 to vector<2x2x32x22xf32>
    %245 = arith.select %243, %0, %244 : vector<2x2x32x22xi1>, vector<2x2x32x22xf32>
    %cst_58 = arith.constant dense<0xFF800000> : vector<2x2x32xf32>
    %246 = vector.multi_reduction <maximumf>, %245, %cst_58 [3] : vector<2x2x32x22xf32> to vector<2x2x32xf32>
    %247 = vector.shape_cast %246 : vector<2x2x32xf32> to vector<2x2x32x1xf32>
    %248 = arith.cmpf oge, %247, %48 : vector<2x2x32x1xf32>
    %249 = vector.broadcast %29 : vector<1x2x32x1xi1> to vector<2x2x32x1xi1>
    %250 = arith.andi %249, %248 : vector<2x2x32x1xi1>
    %cst_59 = arith.constant 1.000000e+00 : f32
    %cst_60 = arith.constant 0.000000e+00 : f32
    %251 = vector.broadcast %cst_59 : f32 to vector<2x2x32x1xf32>
    %252 = vector.broadcast %cst_60 : f32 to vector<2x2x32x1xf32>
    %253 = arith.select %250, %251, %252 : vector<2x2x32x1xi1>, vector<2x2x32x1xf32>
    %cst_61 = arith.constant dense<0.000000e+00> : vector<2x2x1xf32>
    %254 = vector.multi_reduction <add>, %253, %cst_61 [2] : vector<2x2x32x1xf32> to vector<2x2x1xf32>
    %255 = vector.shape_cast %254 : vector<2x2x1xf32> to vector<2x2x1x1xf32>
    %256 = vector.broadcast %10 : vector<1x2x1x1xf32> to vector<2x2x1x1xf32>
    %257 = arith.subf %255, %256 : vector<2x2x1x1xf32>
    %258 = math.absf %257 : vector<2x2x1x1xf32>
    %cst_62 = arith.constant dense<0.000000e+00> : vector<2x1x1xf32>
    %259 = vector.multi_reduction <add>, %258, %cst_62 [1] : vector<2x2x1x1xf32> to vector<2x1x1xf32>
    %260 = vector.shape_cast %259 : vector<2x1x1xf32> to vector<2x1x1x1xf32>
    %cst_63 = arith.constant 5.000000e-01 : f32
    %261 = vector.broadcast %cst_63 : f32 to vector<2x1x1x1xf32>
    %262 = arith.mulf %260, %261 : vector<2x1x1x1xf32>
    %cst_64 = arith.constant 0.000000e+00 : f32
    %263 = vector.broadcast %cst_64 : f32 to vector<2x2x32x1xf32>
    %264 = arith.select %163, %49, %263 : vector<2x2x32x1xi1>, vector<2x2x32x1xf32>
    %cst_65 = arith.constant dense<0.000000e+00> : vector<2x2x1xf32>
    %265 = vector.multi_reduction <add>, %264, %cst_65 [2] : vector<2x2x32x1xf32> to vector<2x2x1xf32>
    %266 = vector.shape_cast %265 : vector<2x2x1xf32> to vector<2x2x1x1xf32>
    %cst_66 = arith.constant 0.000000e+00 : f32
    %267 = vector.broadcast %cst_66 : f32 to vector<2x2x32x1xf32>
    %268 = arith.select %163, %50, %267 : vector<2x2x32x1xi1>, vector<2x2x32x1xf32>
    %cst_67 = arith.constant dense<0.000000e+00> : vector<2x2x1xf32>
    %269 = vector.multi_reduction <add>, %268, %cst_67 [2] : vector<2x2x32x1xf32> to vector<2x2x1xf32>
    %270 = vector.shape_cast %269 : vector<2x2x1xf32> to vector<2x2x1x1xf32>
    %cst_68 = arith.constant 0.000000e+00 : f32
    %271 = vector.broadcast %cst_68 : f32 to vector<2x2x32x1xf32>
    %272 = arith.select %163, %51, %271 : vector<2x2x32x1xi1>, vector<2x2x32x1xf32>
    %cst_69 = arith.constant dense<0.000000e+00> : vector<2x2x1xf32>
    %273 = vector.multi_reduction <add>, %272, %cst_69 [2] : vector<2x2x32x1xf32> to vector<2x2x1xf32>
    %274 = vector.shape_cast %273 : vector<2x2x1xf32> to vector<2x2x1x1xf32>
    %cst_70 = arith.constant 0.000000e+00 : f32
    %275 = vector.broadcast %cst_70 : f32 to vector<2x2x32x1xf32>
    %276 = arith.select %163, %52, %275 : vector<2x2x32x1xi1>, vector<2x2x32x1xf32>
    %cst_71 = arith.constant dense<0.000000e+00> : vector<2x2x1xf32>
    %277 = vector.multi_reduction <add>, %276, %cst_71 [2] : vector<2x2x32x1xf32> to vector<2x2x1xf32>
    %278 = vector.shape_cast %277 : vector<2x2x1xf32> to vector<2x2x1x1xf32>
    %279 = vector.broadcast %11 : vector<1x2x1x1xf32> to vector<2x2x1x1xf32>
    %280 = arith.subf %266, %279 : vector<2x2x1x1xf32>
    %281 = math.absf %280 : vector<2x2x1x1xf32>
    %282 = vector.broadcast %12 : vector<1x2x1x1xf32> to vector<2x2x1x1xf32>
    %283 = arith.subf %270, %282 : vector<2x2x1x1xf32>
    %284 = math.absf %283 : vector<2x2x1x1xf32>
    %285 = arith.addf %281, %284 : vector<2x2x1x1xf32>
    %286 = vector.broadcast %13 : vector<1x2x1x1xf32> to vector<2x2x1x1xf32>
    %287 = arith.subf %274, %286 : vector<2x2x1x1xf32>
    %288 = math.absf %287 : vector<2x2x1x1xf32>
    %289 = arith.addf %285, %288 : vector<2x2x1x1xf32>
    %290 = vector.broadcast %14 : vector<1x2x1x1xf32> to vector<2x2x1x1xf32>
    %291 = arith.subf %278, %290 : vector<2x2x1x1xf32>
    %292 = math.absf %291 : vector<2x2x1x1xf32>
    %293 = arith.addf %289, %292 : vector<2x2x1x1xf32>
    %cst_72 = arith.constant 5.000000e-01 : f32
    %294 = vector.broadcast %cst_72 : f32 to vector<2x2x1x1xf32>
    %295 = arith.mulf %294, %274 : vector<2x2x1x1xf32>
    %296 = arith.subf %266, %295 : vector<2x2x1x1xf32>
    %cst_73 = arith.constant 5.000000e-01 : f32
    %297 = vector.broadcast %cst_73 : f32 to vector<2x2x1x1xf32>
    %298 = arith.mulf %297, %278 : vector<2x2x1x1xf32>
    %299 = arith.subf %270, %298 : vector<2x2x1x1xf32>
    %cst_74 = arith.constant 5.000000e-01 : f32
    %300 = vector.broadcast %cst_74 : f32 to vector<2x2x1x1xf32>
    %301 = arith.mulf %300, %274 : vector<2x2x1x1xf32>
    %302 = arith.addf %266, %301 : vector<2x2x1x1xf32>
    %cst_75 = arith.constant 5.000000e-01 : f32
    %303 = vector.broadcast %cst_75 : f32 to vector<2x2x1x1xf32>
    %304 = arith.mulf %303, %278 : vector<2x2x1x1xf32>
    %305 = arith.addf %270, %304 : vector<2x2x1x1xf32>
    %cst_76 = arith.constant 5.000000e-01 : f32
    %306 = vector.broadcast %cst_76 : f32 to vector<1x2x1x1xf32>
    %307 = arith.mulf %306, %13 : vector<1x2x1x1xf32>
    %308 = arith.subf %11, %307 : vector<1x2x1x1xf32>
    %cst_77 = arith.constant 5.000000e-01 : f32
    %309 = vector.broadcast %cst_77 : f32 to vector<1x2x1x1xf32>
    %310 = arith.mulf %309, %14 : vector<1x2x1x1xf32>
    %311 = arith.subf %12, %310 : vector<1x2x1x1xf32>
    %cst_78 = arith.constant 5.000000e-01 : f32
    %312 = vector.broadcast %cst_78 : f32 to vector<1x2x1x1xf32>
    %313 = arith.mulf %312, %13 : vector<1x2x1x1xf32>
    %314 = arith.addf %11, %313 : vector<1x2x1x1xf32>
    %cst_79 = arith.constant 5.000000e-01 : f32
    %315 = vector.broadcast %cst_79 : f32 to vector<1x2x1x1xf32>
    %316 = arith.mulf %315, %14 : vector<1x2x1x1xf32>
    %317 = arith.addf %12, %316 : vector<1x2x1x1xf32>
    %318 = arith.subf %302, %296 : vector<2x2x1x1xf32>
    %319 = arith.subf %305, %299 : vector<2x2x1x1xf32>
    %320 = arith.mulf %318, %319 : vector<2x2x1x1xf32>
    %321 = arith.subf %314, %308 : vector<1x2x1x1xf32>
    %322 = arith.subf %317, %311 : vector<1x2x1x1xf32>
    %323 = arith.mulf %321, %322 : vector<1x2x1x1xf32>
    %324 = vector.broadcast %308 : vector<1x2x1x1xf32> to vector<2x2x1x1xf32>
    %325 = arith.maximumf %296, %324 : vector<2x2x1x1xf32>
    %326 = vector.broadcast %311 : vector<1x2x1x1xf32> to vector<2x2x1x1xf32>
    %327 = arith.maximumf %299, %326 : vector<2x2x1x1xf32>
    %328 = vector.broadcast %314 : vector<1x2x1x1xf32> to vector<2x2x1x1xf32>
    %329 = arith.minimumf %302, %328 : vector<2x2x1x1xf32>
    %330 = vector.broadcast %317 : vector<1x2x1x1xf32> to vector<2x2x1x1xf32>
    %331 = arith.minimumf %305, %330 : vector<2x2x1x1xf32>
    %332 = arith.subf %329, %325 : vector<2x2x1x1xf32>
    %cst_80 = arith.constant 0.000000e+00 : f32
    %333 = vector.broadcast %cst_80 : f32 to vector<2x2x1x1xf32>
    %334 = arith.maximumf %332, %333 : vector<2x2x1x1xf32>
    %335 = arith.subf %331, %327 : vector<2x2x1x1xf32>
    %cst_81 = arith.constant 0.000000e+00 : f32
    %336 = vector.broadcast %cst_81 : f32 to vector<2x2x1x1xf32>
    %337 = arith.maximumf %335, %336 : vector<2x2x1x1xf32>
    %338 = arith.mulf %334, %337 : vector<2x2x1x1xf32>
    %339 = vector.broadcast %323 : vector<1x2x1x1xf32> to vector<2x2x1x1xf32>
    %340 = arith.addf %320, %339 : vector<2x2x1x1xf32>
    %341 = arith.subf %340, %338 : vector<2x2x1x1xf32>
    %342 = vector.broadcast %308 : vector<1x2x1x1xf32> to vector<2x2x1x1xf32>
    %343 = arith.minimumf %296, %342 : vector<2x2x1x1xf32>
    %344 = vector.broadcast %311 : vector<1x2x1x1xf32> to vector<2x2x1x1xf32>
    %345 = arith.minimumf %299, %344 : vector<2x2x1x1xf32>
    %346 = vector.broadcast %314 : vector<1x2x1x1xf32> to vector<2x2x1x1xf32>
    %347 = arith.maximumf %302, %346 : vector<2x2x1x1xf32>
    %348 = vector.broadcast %317 : vector<1x2x1x1xf32> to vector<2x2x1x1xf32>
    %349 = arith.maximumf %305, %348 : vector<2x2x1x1xf32>
    %350 = arith.subf %347, %343 : vector<2x2x1x1xf32>
    %351 = arith.subf %349, %345 : vector<2x2x1x1xf32>
    %352 = arith.mulf %350, %351 : vector<2x2x1x1xf32>
    %cst_82 = arith.constant 1.000000e-07 : f32
    %353 = vector.broadcast %cst_82 : f32 to vector<2x2x1x1xf32>
    %354 = arith.addf %341, %353 : vector<2x2x1x1xf32>
    %cst_83 = arith.constant 1.000000e+00 : f32
    %355 = vector.broadcast %cst_83 : f32 to vector<2x2x1x1xf32>
    %356 = arith.divf %355, %354 : vector<2x2x1x1xf32>
    %cst_84 = arith.constant 1.000000e-07 : f32
    %357 = vector.broadcast %cst_84 : f32 to vector<2x2x1x1xf32>
    %358 = arith.addf %352, %357 : vector<2x2x1x1xf32>
    %cst_85 = arith.constant 1.000000e+00 : f32
    %359 = vector.broadcast %cst_85 : f32 to vector<2x2x1x1xf32>
    %360 = arith.divf %359, %358 : vector<2x2x1x1xf32>
    %361 = arith.mulf %338, %356 : vector<2x2x1x1xf32>
    %362 = arith.subf %352, %341 : vector<2x2x1x1xf32>
    %363 = arith.mulf %362, %360 : vector<2x2x1x1xf32>
    %364 = arith.subf %361, %363 : vector<2x2x1x1xf32>
    %365 = vector.broadcast %15 : vector<1x2x1x1xf32> to vector<2x2x1x1xf32>
    %366 = arith.divf %293, %365 : vector<2x2x1x1xf32>
    %cst_86 = arith.constant dense<0.000000e+00> : vector<2x1x1xf32>
    %367 = vector.multi_reduction <add>, %366, %cst_86 [1] : vector<2x2x1x1xf32> to vector<2x1x1xf32>
    %368 = vector.shape_cast %367 : vector<2x1x1xf32> to vector<2x1x1x1xf32>
    %cst_87 = arith.constant 1.000000e+00 : f32
    %369 = vector.broadcast %cst_87 : f32 to vector<2x2x1x1xf32>
    %370 = arith.subf %369, %364 : vector<2x2x1x1xf32>
    %371 = vector.broadcast %15 : vector<1x2x1x1xf32> to vector<2x2x1x1xf32>
    %372 = arith.divf %370, %371 : vector<2x2x1x1xf32>
    %cst_88 = arith.constant dense<0.000000e+00> : vector<2x1x1xf32>
    %373 = vector.multi_reduction <add>, %372, %cst_88 [1] : vector<2x2x1x1xf32> to vector<2x1x1xf32>
    %374 = vector.shape_cast %373 : vector<2x1x1xf32> to vector<2x1x1x1xf32>
    %375 = tpu.concatenate %188, %211, %239, %262, %368, %374 in 3 : vector<2x1x1x1xf32>, vector<2x1x1x1xf32>, vector<2x1x1x1xf32>, vector<2x1x1x1xf32>, vector<2x1x1x1xf32>, vector<2x1x1x1xf32> -> vector<2x1x1x6xf32>
    %376 = vector.shape_cast %375 : vector<2x1x1x6xf32> to vector<2x6xf32>
    %cst_89 = arith.constant 0.000000e+00 : f32
    %377 = vector.broadcast %cst_89 : f32 to vector<6x6xf32>
    %378 = tpu.concatenate %376, %377 in 0 : vector<2x6xf32>, vector<6x6xf32> -> vector<8x6xf32>
    %cst_90 = arith.constant 0.000000e+00 : f32
    %379 = vector.broadcast %cst_90 : f32 to vector<8x122xf32>
    %380 = tpu.concatenate %378, %379 in 1 : vector<8x6xf32>, vector<8x122xf32> -> vector<8x128xf32>
    %c0_91 = arith.constant 0 : index
    %c0_92 = arith.constant 0 : index
    %381 = vector.load %arg5[%c0_91, %c0_92] : memref<8x128xf32, #tpu.memory_space<vmem>>, vector<8x128xf32>
    tpu.vector_store %arg5[%c0_91, %c0_92], %380 {strides = array<i32>} : memref<8x128xf32, #tpu.memory_space<vmem>>, vector<8x128xf32>,
    return
  }
  func.func @transform_0(%arg0: i32) -> (i32, i32, i32, i32) {
    %c0_i32 = arith.constant 0 : i32
    %c0_i32_0 = arith.constant 0 : i32
    %c0_i32_1 = arith.constant 0 : i32
    %c0_i32_2 = arith.constant 0 : i32
    %c0_i32_3 = arith.constant 0 : i32
    return %c0_i32, %c0_i32_0, %c0_i32_1, %c0_i32_2 : i32, i32, i32, i32
  }
  func.func @transform_1(%arg0: i32) -> (i32, i32, i32, i32) {
    %c0_i32 = arith.constant 0 : i32
    %c0_i32_0 = arith.constant 0 : i32
    %c0_i32_1 = arith.constant 0 : i32
    %c0_i32_2 = arith.constant 0 : i32
    %c0_i32_3 = arith.constant 0 : i32
    return %c0_i32, %c0_i32_0, %c0_i32_1, %c0_i32_2 : i32, i32, i32, i32
  }
  func.func @transform_2(%arg0: i32) -> (i32, i32, i32, i32) {
    %c0_i32 = arith.constant 0 : i32
    %c0_i32_0 = arith.constant 0 : i32
    %c0_i32_1 = arith.constant 0 : i32
    %c0_i32_2 = arith.constant 0 : i32
    %c0_i32_3 = arith.constant 0 : i32
    return %c0_i32, %c0_i32_0, %c0_i32_1, %c0_i32_2 : i32, i32, i32, i32
  }
  func.func @transform_3(%arg0: i32) -> (i32, i32, i32, i32) {
    %c0_i32 = arith.constant 0 : i32
    %c0_i32_0 = arith.constant 0 : i32
    %c0_i32_1 = arith.constant 0 : i32
    %c0_i32_2 = arith.constant 0 : i32
    %c0_i32_3 = arith.constant 0 : i32
    return %c0_i32, %c0_i32_0, %c0_i32_1, %c0_i32_2 : i32, i32, i32, i32
  }
  func.func @transform_4(%arg0: i32) -> (i32, i32) {
    %c0_i32 = arith.constant 0 : i32
    %c0_i32_0 = arith.constant 0 : i32
    %c0_i32_1 = arith.constant 0 : i32
    return %c0_i32, %c0_i32_0 : i32, i32
  }
}

</mosaic_0001>

<llo_original>
// kernel: tpu_custom_call.1
$region0: #{tpu_custom_call.1}
  #allocation0 [shape = 'u32[]', space=smem, size = 0x4, offset = 0x4, fixed_abs, tag = 'smem constant byte address 0x4 - core index']
  #allocation1 [shape = 'u32[144,128]{1,0:T(1,128)}', space=vmem, size = 0x12000, scoped, tag = 'internal scratch']
  %s0 = inlined_call_operand.vmem [shape: f32[1,2,1,16], index: 0, kind: input, shape index: {}]
  %s1 = inlined_call_operand.vmem [shape: f32[2,2,32,22], index: 1, kind: input, shape index: {}]
  %s2 = inlined_call_operand.vmem [shape: f32[2,2,32,4], index: 2, kind: input, shape index: {}]
  %s3 = inlined_call_operand.vmem [shape: f32[2,2,1,2], index: 3, kind: input, shape index: {}]
  %s4 = inlined_call_operand.hbm [shape: f32[8,128], index: 4, kind: output, shape index: {}]
  %s5 = sld [smem:[#allocation0]]
  $region26: #{tpu_custom_call.1} parent=0
    _
  %s7 = ssub.s32 1, %s5
  %s8 = scalar_select 0, %s7, %s5
  $region1: #{tpu_custom_call.1} parent=0
    #allocation2 [shape = 'u8[4096]{0}', space=vmem, size = 0x1000, scoped, tag = 'output window, operand 0, single buffered']
    #allocation3 [shape = 's32[1]{0}', space=sflag, size = 0x4, scoped, tag = 'scoped memory for tpu_custom_call.1']
    %9 = vsyncpa [#allocation3], 0
    // Predicated region
    $region2: #{tpu_custom_call.1} parent=1 // pred_check
      _
    $region3: #{tpu_custom_call.1} parent=1 // pred_check_branch
      %11 = sbr.rel (0) target = $region5
    $region4: #{tpu_custom_call.1} parent=1 // pred_region
      _
    $region5: #{tpu_custom_call.1} parent=1 // pred_fallthru
      _
    // Predicated region
    $region6: #{tpu_custom_call.1} parent=1 // pred_check
      _
    $region7: #{tpu_custom_call.1} parent=1 // pred_check_branch
      %13 = sbr.rel (0) target = $region9
    $region8: #{tpu_custom_call.1} parent=1 // pred_region
      _
    $region9: #{tpu_custom_call.1} parent=1 // pred_fallthru
      _
    // Predicated region
    $region10: #{tpu_custom_call.1} parent=1 // pred_check
      _
    $region11: #{tpu_custom_call.1} parent=1 // pred_check_branch
      %15 = sbr.rel (0) target = $region13
    $region12: #{tpu_custom_call.1} parent=1 // pred_region
      _
    $region13: #{tpu_custom_call.1} parent=1 // pred_fallthru
      _
    // Predicated region
    $region14: #{tpu_custom_call.1} parent=1 // pred_check
      _
    $region15: #{tpu_custom_call.1} parent=1 // pred_check_branch
      %17 = sbr.rel (0) target = $region17
    $region16: #{tpu_custom_call.1} parent=1 // pred_region
      _
    $region17: #{tpu_custom_call.1} parent=1 // pred_fallthru
      _
    %v18 = vld [vmem:[%s1] sm:$0xff]
    %v19 = vld [vmem:[%s1 + $0x8] sm:$0xff]
    %v20 = vld [vmem:[%s1 + $0x10] sm:$0xff]
    %v21 = vld [vmem:[%s1 + $0x18] sm:$0xff]
    %v22 = vld [vmem:[%s1 + $0x20] sm:$0xff]
    %v23 = vld [vmem:[%s1 + $0x28] sm:$0xff]
    %v24 = vld [vmem:[%s1 + $0x30] sm:$0xff]
    %v25 = vld [vmem:[%s1 + $0x38] sm:$0xff]
    %v26 = vld [vmem:[%s1 + $0x40] sm:$0xff]
    %v27 = vld [vmem:[%s1 + $0x48] sm:$0xff]
    %v28 = vld [vmem:[%s1 + $0x50] sm:$0xff]
    %v29 = vld [vmem:[%s1 + $0x58] sm:$0xff]
    %v30 = vld [vmem:[%s1 + $0x60] sm:$0xff]
    %v31 = vld [vmem:[%s1 + $0x68] sm:$0xff]
    %v32 = vld [vmem:[%s1 + $0x70] sm:$0xff]
    %v33 = vld [vmem:[%s1 + $0x78] sm:$0xff]
    %v34 = vld [vmem:[%s2] sm:$0xff]
    %v35 = vld [vmem:[%s2 + $0x8] sm:$0xff]
    %v36 = vld [vmem:[%s2 + $0x10] sm:$0xff]
    %v37 = vld [vmem:[%s2 + $0x18] sm:$0xff]
    %v38 = vld [vmem:[%s2 + $0x20] sm:$0xff]
    %v39 = vld [vmem:[%s2 + $0x28] sm:$0xff]
    %v40 = vld [vmem:[%s2 + $0x30] sm:$0xff]
    %v41 = vld [vmem:[%s2 + $0x38] sm:$0xff]
    %v42 = vld [vmem:[%s2 + $0x40] sm:$0xff]
    %v43 = vld [vmem:[%s2 + $0x48] sm:$0xff]
    %v44 = vld [vmem:[%s2 + $0x50] sm:$0xff]
    %v45 = vld [vmem:[%s2 + $0x58] sm:$0xff]
    %v46 = vld [vmem:[%s2 + $0x60] sm:$0xff]
    %v47 = vld [vmem:[%s2 + $0x68] sm:$0xff]
    %v48 = vld [vmem:[%s2 + $0x70] sm:$0xff]
    %v49 = vld [vmem:[%s2 + $0x78] sm:$0xff]
    %v50 = vld [vmem:[%s3] sm:$0x1]
    %v51 = vld [vmem:[%s3 + $0x1] sm:$0x1]
    %v52 = vld [vmem:[%s3 + $0x2] sm:$0x1]
    %v53 = vld [vmem:[%s3 + $0x3] sm:$0x1]
    %v54 = vld [vmem:[%s0] sm:$0x1]
    %v55 = vld [vmem:[%s0 + $0x1] sm:$0x1]
    %v56 = vcvt.f32.s32.to.zero.pseudo %v54
    %v57 = vcvt.f32.s32.to.zero.pseudo %v55
    %v58 = vlaneseq
    %v59 = vshrl.u32 %v58, 7
    %v60 = vadd.s32 %v59, 8
    %v61 = vadd.s32 %v59, 16
    %v62 = vadd.s32 %v59, 24
    %v63 = vlaneseq
    %v64 = vand.u32 %v63, 127
    %v65 = vmul.u32 %v56, 8
    %v66 = vmul.u32 %v57, 8
    %v67 = vlaneseq
    %v68 = vshrl.u32 %v67, 7
    %v69 = vsub.s32 0, %v68
    %v70 = vrot.slane %v65, %v69
    %v71 = vlaneseq
    %v72 = vshrl.u32 %v71, 7
    %v73 = vsub.s32 0, %v72
    %v74 = vrot.slane %v66, %v73
    %vm75 = vcmp.ge.s32.totalorder %v59, %v70
    %vm76 = vcmp.ge.s32.totalorder %v60, %v70
    %vm77 = vcmp.ge.s32.totalorder %v61, %v70
    %vm78 = vcmp.ge.s32.totalorder %v62, %v70
    %vm79 = vcmp.ge.s32.totalorder %v59, %v74
    %vm80 = vcmp.ge.s32.totalorder %v60, %v74
    %vm81 = vcmp.ge.s32.totalorder %v61, %v74
    %vm82 = vcmp.ge.s32.totalorder %v62, %v74
    %v83 = vadd.s32 %v65, 8
    %v84 = vadd.s32 %v66, 8
    %v85 = vlaneseq
    %v86 = vshrl.u32 %v85, 7
    %v87 = vsub.s32 0, %v86
    %v88 = vrot.slane %v83, %v87
    %v89 = vlaneseq
    %v90 = vshrl.u32 %v89, 7
    %v91 = vsub.s32 0, %v90
    %v92 = vrot.slane %v84, %v91
    %vm93 = vcmp.lt.s32.totalorder %v59, %v88
    %vm94 = vcmp.lt.s32.totalorder %v60, %v88
    %vm95 = vcmp.lt.s32.totalorder %v61, %v88
    %vm96 = vcmp.lt.s32.totalorder %v62, %v88
    %vm97 = vcmp.lt.s32.totalorder %v59, %v92
    %vm98 = vcmp.lt.s32.totalorder %v60, %v92
    %vm99 = vcmp.lt.s32.totalorder %v61, %v92
    %vm100 = vcmp.lt.s32.totalorder %v62, %v92
    %vm101 = vmand %vm75, %vm93
    %vm102 = vmand %vm76, %vm94
    %vm103 = vmand %vm77, %vm95
    %vm104 = vmand %vm78, %vm96
    %vm105 = vmand %vm79, %vm97
    %vm106 = vmand %vm80, %vm98
    %vm107 = vmand %vm81, %vm99
    %vm108 = vmand %vm82, %vm100
    %vm109 = vcmask 179200
    %v110 = vsel %vm109, %v18, -inf
    %111 = vmax.xlane.f32.xlu0 %v110
    %v112 = vpop.xlane.xlu0 %111
    %v113 = vsel %vm109, %v19, -inf
    %114 = vmax.xlane.f32.xlu0 %v113
    %v115 = vpop.xlane.xlu0 %114
    %v116 = vsel %vm109, %v20, -inf
    %117 = vmax.xlane.f32.xlu0 %v116
    %v118 = vpop.xlane.xlu0 %117
    %v119 = vsel %vm109, %v21, -inf
    %120 = vmax.xlane.f32.xlu0 %v119
    %v121 = vpop.xlane.xlu0 %120
    %v122 = vsel %vm109, %v22, -inf
    %123 = vmax.xlane.f32.xlu0 %v122
    %v124 = vpop.xlane.xlu0 %123
    %v125 = vsel %vm109, %v23, -inf
    %126 = vmax.xlane.f32.xlu0 %v125
    %v127 = vpop.xlane.xlu0 %126
    %v128 = vsel %vm109, %v24, -inf
    %129 = vmax.xlane.f32.xlu0 %v128
    %v130 = vpop.xlane.xlu0 %129
    %v131 = vsel %vm109, %v25, -inf
    %132 = vmax.xlane.f32.xlu0 %v131
    %v133 = vpop.xlane.xlu0 %132
    %v134 = vsel %vm109, %v26, -inf
    %135 = vmax.xlane.f32.xlu0 %v134
    %v136 = vpop.xlane.xlu0 %135
    %v137 = vsel %vm109, %v27, -inf
    %138 = vmax.xlane.f32.xlu0 %v137
    %v139 = vpop.xlane.xlu0 %138
    %v140 = vsel %vm109, %v28, -inf
    %141 = vmax.xlane.f32.xlu0 %v140
    %v142 = vpop.xlane.xlu0 %141
    %v143 = vsel %vm109, %v29, -inf
    %144 = vmax.xlane.f32.xlu0 %v143
    %v145 = vpop.xlane.xlu0 %144
    %v146 = vsel %vm109, %v30, -inf
    %147 = vmax.xlane.f32.xlu0 %v146
    %v148 = vpop.xlane.xlu0 %147
    %v149 = vsel %vm109, %v31, -inf
    %150 = vmax.xlane.f32.xlu0 %v149
    %v151 = vpop.xlane.xlu0 %150
    %v152 = vsel %vm109, %v32, -inf
    %153 = vmax.xlane.f32.xlu0 %v152
    %v154 = vpop.xlane.xlu0 %153
    %v155 = vsel %vm109, %v33, -inf
    %156 = vmax.xlane.f32.xlu0 %v155
    %v157 = vpop.xlane.xlu0 %156
    %v158 = vsub.f32 %v18, %v112
    %v159 = vsub.f32 %v19, %v115
    %v160 = vsub.f32 %v20, %v118
    %v161 = vsub.f32 %v21, %v121
    %v162 = vsub.f32 %v22, %v124
    %v163 = vsub.f32 %v23, %v127
    %v164 = vsub.f32 %v24, %v130
    %v165 = vsub.f32 %v25, %v133
    %v166 = vsub.f32 %v26, %v136
    %v167 = vsub.f32 %v27, %v139
    %v168 = vsub.f32 %v28, %v142
    %v169 = vsub.f32 %v29, %v145
    %v170 = vsub.f32 %v30, %v148
    %v171 = vsub.f32 %v31, %v151
    %v172 = vsub.f32 %v32, %v154
    %v173 = vsub.f32 %v33, %v157
    %v174 = vmul.f32 %v158, 1.442695
    %v175 = vpow.pop %v174
    %v176 = vmul.f32 %v159, 1.442695
    %v177 = vpow.pop %v176
    %v178 = vmul.f32 %v160, 1.442695
    %v179 = vpow.pop %v178
    %v180 = vmul.f32 %v161, 1.442695
    %v181 = vpow.pop %v180
    %v182 = vmul.f32 %v162, 1.442695
    %v183 = vpow.pop %v182
    %v184 = vmul.f32 %v163, 1.442695
    %v185 = vpow.pop %v184
    %v186 = vmul.f32 %v164, 1.442695
    %v187 = vpow.pop %v186
    %v188 = vmul.f32 %v165, 1.442695
    %v189 = vpow.pop %v188
    %v190 = vmul.f32 %v166, 1.442695
    %v191 = vpow.pop %v190
    %v192 = vmul.f32 %v167, 1.442695
    %v193 = vpow.pop %v192
    %v194 = vmul.f32 %v168, 1.442695
    %v195 = vpow.pop %v194
    %v196 = vmul.f32 %v169, 1.442695
    %v197 = vpow.pop %v196
    %v198 = vmul.f32 %v170, 1.442695
    %v199 = vpow.pop %v198
    %v200 = vmul.f32 %v171, 1.442695
    %v201 = vpow.pop %v200
    %v202 = vmul.f32 %v172, 1.442695
    %v203 = vpow.pop %v202
    %v204 = vmul.f32 %v173, 1.442695
    %v205 = vpow.pop %v204
    %v206 = vsel %vm109, %v175, 0.0
    %207 = vadd.xlane.f32.xlu0 %v206
    %v208 = vpop.xlane.xlu0 %207
    %v209 = vsel %vm109, %v177, 0.0
    %210 = vadd.xlane.f32.xlu0 %v209
    %v211 = vpop.xlane.xlu0 %210
    %v212 = vsel %vm109, %v179, 0.0
    %213 = vadd.xlane.f32.xlu0 %v212
    %v214 = vpop.xlane.xlu0 %213
    %v215 = vsel %vm109, %v181, 0.0
    %216 = vadd.xlane.f32.xlu0 %v215
    %v217 = vpop.xlane.xlu0 %216
    %v218 = vsel %vm109, %v183, 0.0
    %219 = vadd.xlane.f32.xlu0 %v218
    %v220 = vpop.xlane.xlu0 %219
    %v221 = vsel %vm109, %v185, 0.0
    %222 = vadd.xlane.f32.xlu0 %v221
    %v223 = vpop.xlane.xlu0 %222
    %v224 = vsel %vm109, %v187, 0.0
    %225 = vadd.xlane.f32.xlu0 %v224
    %v226 = vpop.xlane.xlu0 %225
    %v227 = vsel %vm109, %v189, 0.0
    %228 = vadd.xlane.f32.xlu0 %v227
    %v229 = vpop.xlane.xlu0 %228
    %v230 = vsel %vm109, %v191, 0.0
    %231 = vadd.xlane.f32.xlu0 %v230
    %v232 = vpop.xlane.xlu0 %231
    %v233 = vsel %vm109, %v193, 0.0
    %234 = vadd.xlane.f32.xlu0 %v233
    %v235 = vpop.xlane.xlu0 %234
    %v236 = vsel %vm109, %v195, 0.0
    %237 = vadd.xlane.f32.xlu0 %v236
    %v238 = vpop.xlane.xlu0 %237
    %v239 = vsel %vm109, %v197, 0.0
    %240 = vadd.xlane.f32.xlu0 %v239
    %v241 = vpop.xlane.xlu0 %240
    %v242 = vsel %vm109, %v199, 0.0
    %243 = vadd.xlane.f32.xlu0 %v242
    %v244 = vpop.xlane.xlu0 %243
    %v245 = vsel %vm109, %v201, 0.0
    %246 = vadd.xlane.f32.xlu0 %v245
    %v247 = vpop.xlane.xlu0 %246
    %v248 = vsel %vm109, %v203, 0.0
    %249 = vadd.xlane.f32.xlu0 %v248
    %v250 = vpop.xlane.xlu0 %249
    %v251 = vsel %vm109, %v205, 0.0
    %252 = vadd.xlane.f32.xlu0 %v251
    %v253 = vpop.xlane.xlu0 %252
    %v254 = vlog2.pop %v208
    %v255 = vmul.f32 %v254, 0.6931472
    %v256 = vlog2.pop %v211
    %v257 = vmul.f32 %v256, 0.6931472
    %v258 = vlog2.pop %v214
    %v259 = vmul.f32 %v258, 0.6931472
    %v260 = vlog2.pop %v217
    %v261 = vmul.f32 %v260, 0.6931472
    %v262 = vlog2.pop %v220
    %v263 = vmul.f32 %v262, 0.6931472
    %v264 = vlog2.pop %v223
    %v265 = vmul.f32 %v264, 0.6931472
    %v266 = vlog2.pop %v226
    %v267 = vmul.f32 %v266, 0.6931472
    %v268 = vlog2.pop %v229
    %v269 = vmul.f32 %v268, 0.6931472
    %v270 = vlog2.pop %v232
    %v271 = vmul.f32 %v270, 0.6931472
    %v272 = vlog2.pop %v235
    %v273 = vmul.f32 %v272, 0.6931472
    %v274 = vlog2.pop %v238
    %v275 = vmul.f32 %v274, 0.6931472
    %v276 = vlog2.pop %v241
    %v277 = vmul.f32 %v276, 0.6931472
    %v278 = vlog2.pop %v244
    %v279 = vmul.f32 %v278, 0.6931472
    %v280 = vlog2.pop %v247
    %v281 = vmul.f32 %v280, 0.6931472
    %v282 = vlog2.pop %v250
    %v283 = vmul.f32 %v282, 0.6931472
    %v284 = vlog2.pop %v253
    %v285 = vmul.f32 %v284, 0.6931472
    %v286 = vadd.f32 %v112, %v255
    %v287 = vadd.f32 %v115, %v257
    %v288 = vadd.f32 %v118, %v259
    %v289 = vadd.f32 %v121, %v261
    %v290 = vadd.f32 %v124, %v263
    %v291 = vadd.f32 %v127, %v265
    %v292 = vadd.f32 %v130, %v267
    %v293 = vadd.f32 %v133, %v269
    %v294 = vadd.f32 %v136, %v271
    %v295 = vadd.f32 %v139, %v273
    %v296 = vadd.f32 %v142, %v275
    %v297 = vadd.f32 %v145, %v277
    %v298 = vadd.f32 %v148, %v279
    %v299 = vadd.f32 %v151, %v281
    %v300 = vadd.f32 %v154, %v283
    %v301 = vadd.f32 %v157, %v285
    %302 = vset.pattern.permute.xlu0 1
    %303 = vperm.xlu0 %302, %v56
    %v304 = vpop.permute.xlu0 %303
    %v305 = vlaneseq
    %v306 = vshrl.u32 %v305, 7
    %v307 = vsub.s32 0, %v306
    %v308 = vrot.slane %v304, %v307
    %309 = vset.pattern.permute.xlu0 1
    %310 = vperm.xlu0 %309, %v57
    %v311 = vpop.permute.xlu0 %310
    %v312 = vlaneseq
    %v313 = vshrl.u32 %v312, 7
    %v314 = vsub.s32 0, %v313
    %v315 = vrot.slane %v311, %v314
    %vm316 = vcmp.eq.s32.totalorder %v64, %v308
    %vm317 = vcmp.eq.s32.totalorder %v64, %v315
    %v318 = vsel %vm316, 1, 0
    %v319 = vsel %vm317, 1, 0
    %vm320 = vcmp.eq.s32.totalorder %v318, 1
    %vm321 = vcmp.eq.s32.totalorder %v319, 1
    %v322 = vsel %vm320, %v18, 0.0
    %v323 = vsel %vm320, %v19, 0.0
    %v324 = vsel %vm320, %v20, 0.0
    %v325 = vsel %vm320, %v21, 0.0
    %v326 = vsel %vm321, %v22, 0.0
    %v327 = vsel %vm321, %v23, 0.0
    %v328 = vsel %vm321, %v24, 0.0
    %v329 = vsel %vm321, %v25, 0.0
    %v330 = vsel %vm320, %v26, 0.0
    %v331 = vsel %vm320, %v27, 0.0
    %v332 = vsel %vm320, %v28, 0.0
    %v333 = vsel %vm320, %v29, 0.0
    %v334 = vsel %vm321, %v30, 0.0
    %v335 = vsel %vm321, %v31, 0.0
    %v336 = vsel %vm321, %v32, 0.0
    %v337 = vsel %vm321, %v33, 0.0
    %v338 = vsel %vm109, %v322, 0.0
    %339 = vadd.xlane.f32.xlu0 %v338
    %v340 = vpop.xlane.xlu0 %339
    %v341 = vsel %vm109, %v323, 0.0
    %342 = vadd.xlane.f32.xlu0 %v341
    %v343 = vpop.xlane.xlu0 %342
    %v344 = vsel %vm109, %v324, 0.0
    %345 = vadd.xlane.f32.xlu0 %v344
    %v346 = vpop.xlane.xlu0 %345
    %v347 = vsel %vm109, %v325, 0.0
    %348 = vadd.xlane.f32.xlu0 %v347
    %v349 = vpop.xlane.xlu0 %348
    %v350 = vsel %vm109, %v326, 0.0
    %351 = vadd.xlane.f32.xlu0 %v350
    %v352 = vpop.xlane.xlu0 %351
    %v353 = vsel %vm109, %v327, 0.0
    %354 = vadd.xlane.f32.xlu0 %v353
    %v355 = vpop.xlane.xlu0 %354
    %v356 = vsel %vm109, %v328, 0.0
    %357 = vadd.xlane.f32.xlu0 %v356
    %v358 = vpop.xlane.xlu0 %357
    %v359 = vsel %vm109, %v329, 0.0
    %360 = vadd.xlane.f32.xlu0 %v359
    %v361 = vpop.xlane.xlu0 %360
    %v362 = vsel %vm109, %v330, 0.0
    %363 = vadd.xlane.f32.xlu0 %v362
    %v364 = vpop.xlane.xlu0 %363
    %v365 = vsel %vm109, %v331, 0.0
    %366 = vadd.xlane.f32.xlu0 %v365
    %v367 = vpop.xlane.xlu0 %366
    %v368 = vsel %vm109, %v332, 0.0
    %369 = vadd.xlane.f32.xlu0 %v368
    %v370 = vpop.xlane.xlu0 %369
    %v371 = vsel %vm109, %v333, 0.0
    %372 = vadd.xlane.f32.xlu0 %v371
    %v373 = vpop.xlane.xlu0 %372
    %v374 = vsel %vm109, %v334, 0.0
    %375 = vadd.xlane.f32.xlu0 %v374
    %v376 = vpop.xlane.xlu0 %375
    %v377 = vsel %vm109, %v335, 0.0
    %378 = vadd.xlane.f32.xlu0 %v377
    %v379 = vpop.xlane.xlu0 %378
    %v380 = vsel %vm109, %v336, 0.0
    %381 = vadd.xlane.f32.xlu0 %v380
    %v382 = vpop.xlane.xlu0 %381
    %v383 = vsel %vm109, %v337, 0.0
    %384 = vadd.xlane.f32.xlu0 %v383
    %v385 = vpop.xlane.xlu0 %384
    %v386 = vsub.f32 %v340, %v286
    %v387 = vsub.f32 %v343, %v287
    %v388 = vsub.f32 %v346, %v288
    %v389 = vsub.f32 %v349, %v289
    %v390 = vsub.f32 %v352, %v290
    %v391 = vsub.f32 %v355, %v291
    %v392 = vsub.f32 %v358, %v292
    %v393 = vsub.f32 %v361, %v293
    %v394 = vsub.f32 %v364, %v294
    %v395 = vsub.f32 %v367, %v295
    %v396 = vsub.f32 %v370, %v296
    %v397 = vsub.f32 %v373, %v297
    %v398 = vsub.f32 %v376, %v298
    %v399 = vsub.f32 %v379, %v299
    %v400 = vsub.f32 %v382, %v300
    %v401 = vsub.f32 %v385, %v301
    %v402 = vmul.f32 %v386, 1.442695
    %v403 = vpow.pop %v402
    %v404 = vmul.f32 %v387, 1.442695
    %v405 = vpow.pop %v404
    %v406 = vmul.f32 %v388, 1.442695
    %v407 = vpow.pop %v406
    %v408 = vmul.f32 %v389, 1.442695
    %v409 = vpow.pop %v408
    %v410 = vmul.f32 %v390, 1.442695
    %v411 = vpow.pop %v410
    %v412 = vmul.f32 %v391, 1.442695
    %v413 = vpow.pop %v412
    %v414 = vmul.f32 %v392, 1.442695
    %v415 = vpow.pop %v414
    %v416 = vmul.f32 %v393, 1.442695
    %v417 = vpow.pop %v416
    %v418 = vmul.f32 %v394, 1.442695
    %v419 = vpow.pop %v418
    %v420 = vmul.f32 %v395, 1.442695
    %v421 = vpow.pop %v420
    %v422 = vmul.f32 %v396, 1.442695
    %v423 = vpow.pop %v422
    %v424 = vmul.f32 %v397, 1.442695
    %v425 = vpow.pop %v424
    %v426 = vmul.f32 %v398, 1.442695
    %v427 = vpow.pop %v426
    %v428 = vmul.f32 %v399, 1.442695
    %v429 = vpow.pop %v428
    %v430 = vmul.f32 %v400, 1.442695
    %v431 = vpow.pop %v430
    %v432 = vmul.f32 %v401, 1.442695
    %v433 = vpow.pop %v432
    %v434 = vsub.f32 0.0, %v403
    %v435 = vsub.f32 0.0, %v405
    %v436 = vsub.f32 0.0, %v407
    %v437 = vsub.f32 0.0, %v409
    %v438 = vsub.f32 0.0, %v411
    %v439 = vsub.f32 0.0, %v413
    %v440 = vsub.f32 0.0, %v415
    %v441 = vsub.f32 0.0, %v417
    %v442 = vsub.f32 0.0, %v419
    %v443 = vsub.f32 0.0, %v421
    %v444 = vsub.f32 0.0, %v423
    %v445 = vsub.f32 0.0, %v425
    %v446 = vsub.f32 0.0, %v427
    %v447 = vsub.f32 0.0, %v429
    %v448 = vsub.f32 0.0, %v431
    %v449 = vsub.f32 0.0, %v433
    %v452 = vlaneseq
    %v453 = vshrl.u32 %v452, 7
    %v454 = vsub.s32 0, %v453
    %v455 = vrot.slane %v54, %v454
    %v456 = vlaneseq
    %v457 = vshrl.u32 %v456, 7
    %v458 = vsub.s32 0, %v457
    %v459 = vrot.slane %v55, %v458
    %460 = vrot.lane.b32.xlu0 %v455, 124
    %v461 = vpop.permute.xlu0 %460
    %462 = vrot.lane.b32.xlu0 %v459, 124
    %v463 = vpop.permute.xlu0 %462
    %v466 = vsub.f32 %v34, %v461
    %v467 = vsub.f32 %v35, %v461
    %v468 = vsub.f32 %v36, %v461
    %v469 = vsub.f32 %v37, %v461
    %v470 = vsub.f32 %v38, %v463
    %v471 = vsub.f32 %v39, %v463
    %v472 = vsub.f32 %v40, %v463
    %v473 = vsub.f32 %v41, %v463
    %v474 = vsub.f32 %v42, %v461
    %v475 = vsub.f32 %v43, %v461
    %v476 = vsub.f32 %v44, %v461
    %v477 = vsub.f32 %v45, %v461
    %v478 = vsub.f32 %v46, %v463
    %v479 = vsub.f32 %v47, %v463
    %v480 = vsub.f32 %v48, %v463
    %v481 = vsub.f32 %v49, %v463
    %v482 = vand.u32 2147483647, %v466
    %v483 = vand.u32 2147483647, %v467
    %v484 = vand.u32 2147483647, %v468
    %v485 = vand.u32 2147483647, %v469
    %v486 = vand.u32 2147483647, %v470
    %v487 = vand.u32 2147483647, %v471
    %v488 = vand.u32 2147483647, %v472
    %v489 = vand.u32 2147483647, %v473
    %v490 = vand.u32 2147483647, %v474
    %v491 = vand.u32 2147483647, %v475
    %v492 = vand.u32 2147483647, %v476
    %v493 = vand.u32 2147483647, %v477
    %v494 = vand.u32 2147483647, %v478
    %v495 = vand.u32 2147483647, %v479
    %v496 = vand.u32 2147483647, %v480
    %v497 = vand.u32 2147483647, %v481
    %514 = vrot.lane.b32.xlu0 %v482, 127
    %v515 = vpop.permute.xlu0 %514
    %516 = vrot.lane.b32.xlu0 %v483, 127
    %v517 = vpop.permute.xlu0 %516
    %518 = vrot.lane.b32.xlu0 %v484, 127
    %v519 = vpop.permute.xlu0 %518
    %520 = vrot.lane.b32.xlu0 %v485, 127
    %v521 = vpop.permute.xlu0 %520
    %522 = vrot.lane.b32.xlu0 %v486, 127
    %v523 = vpop.permute.xlu0 %522
    %524 = vrot.lane.b32.xlu0 %v487, 127
    %v525 = vpop.permute.xlu0 %524
    %526 = vrot.lane.b32.xlu0 %v488, 127
    %v527 = vpop.permute.xlu0 %526
    %528 = vrot.lane.b32.xlu0 %v489, 127
    %v529 = vpop.permute.xlu0 %528
    %530 = vrot.lane.b32.xlu0 %v490, 127
    %v531 = vpop.permute.xlu0 %530
    %532 = vrot.lane.b32.xlu0 %v491, 127
    %v533 = vpop.permute.xlu0 %532
    %534 = vrot.lane.b32.xlu0 %v492, 127
    %v535 = vpop.permute.xlu0 %534
    %536 = vrot.lane.b32.xlu0 %v493, 127
    %v537 = vpop.permute.xlu0 %536
    %538 = vrot.lane.b32.xlu0 %v494, 127
    %v539 = vpop.permute.xlu0 %538
    %540 = vrot.lane.b32.xlu0 %v495, 127
    %v541 = vpop.permute.xlu0 %540
    %542 = vrot.lane.b32.xlu0 %v496, 127
    %v543 = vpop.permute.xlu0 %542
    %544 = vrot.lane.b32.xlu0 %v497, 127
    %v545 = vpop.permute.xlu0 %544
    %v562 = vadd.f32 %v482, %v515
    %v563 = vadd.f32 %v483, %v517
    %v564 = vadd.f32 %v484, %v519
    %v565 = vadd.f32 %v485, %v521
    %v566 = vadd.f32 %v486, %v523
    %v567 = vadd.f32 %v487, %v525
    %v568 = vadd.f32 %v488, %v527
    %v569 = vadd.f32 %v489, %v529
    %v570 = vadd.f32 %v490, %v531
    %v571 = vadd.f32 %v491, %v533
    %v572 = vadd.f32 %v492, %v535
    %v573 = vadd.f32 %v493, %v537
    %v574 = vadd.f32 %v494, %v539
    %v575 = vadd.f32 %v495, %v541
    %v576 = vadd.f32 %v496, %v543
    %v577 = vadd.f32 %v497, %v545
    %578 = vrot.lane.b32.xlu0 %v482, 126
    %v579 = vpop.permute.xlu0 %578
    %580 = vrot.lane.b32.xlu0 %v483, 126
    %v581 = vpop.permute.xlu0 %580
    %582 = vrot.lane.b32.xlu0 %v484, 126
    %v583 = vpop.permute.xlu0 %582
    %584 = vrot.lane.b32.xlu0 %v485, 126
    %v585 = vpop.permute.xlu0 %584
    %586 = vrot.lane.b32.xlu0 %v486, 126
    %v587 = vpop.permute.xlu0 %586
    %588 = vrot.lane.b32.xlu0 %v487, 126
    %v589 = vpop.permute.xlu0 %588
    %590 = vrot.lane.b32.xlu0 %v488, 126
    %v591 = vpop.permute.xlu0 %590
    %592 = vrot.lane.b32.xlu0 %v489, 126
    %v593 = vpop.permute.xlu0 %592
    %594 = vrot.lane.b32.xlu0 %v490, 126
    %v595 = vpop.permute.xlu0 %594
    %596 = vrot.lane.b32.xlu0 %v491, 126
    %v597 = vpop.permute.xlu0 %596
    %598 = vrot.lane.b32.xlu0 %v492, 126
    %v599 = vpop.permute.xlu0 %598
    %600 = vrot.lane.b32.xlu0 %v493, 126
    %v601 = vpop.permute.xlu0 %600
    %602 = vrot.lane.b32.xlu0 %v494, 126
    %v603 = vpop.permute.xlu0 %602
    %604 = vrot.lane.b32.xlu0 %v495, 126
    %v605 = vpop.permute.xlu0 %604
    %606 = vrot.lane.b32.xlu0 %v496, 126
    %v607 = vpop.permute.xlu0 %606
    %608 = vrot.lane.b32.xlu0 %v497, 126
    %v609 = vpop.permute.xlu0 %608
    %v626 = vadd.f32 %v562, %v579
    %v627 = vadd.f32 %v563, %v581
    %v628 = vadd.f32 %v564, %v583
    %v629 = vadd.f32 %v565, %v585
    %v630 = vadd.f32 %v566, %v587
    %v631 = vadd.f32 %v567, %v589
    %v632 = vadd.f32 %v568, %v591
    %v633 = vadd.f32 %v569, %v593
    %v634 = vadd.f32 %v570, %v595
    %v635 = vadd.f32 %v571, %v597
    %v636 = vadd.f32 %v572, %v599
    %v637 = vadd.f32 %v573, %v601
    %v638 = vadd.f32 %v574, %v603
    %v639 = vadd.f32 %v575, %v605
    %v640 = vadd.f32 %v576, %v607
    %v641 = vadd.f32 %v577, %v609
    %642 = vrot.lane.b32.xlu0 %v482, 125
    %v643 = vpop.permute.xlu0 %642
    %644 = vrot.lane.b32.xlu0 %v483, 125
    %v645 = vpop.permute.xlu0 %644
    %646 = vrot.lane.b32.xlu0 %v484, 125
    %v647 = vpop.permute.xlu0 %646
    %648 = vrot.lane.b32.xlu0 %v485, 125
    %v649 = vpop.permute.xlu0 %648
    %650 = vrot.lane.b32.xlu0 %v486, 125
    %v651 = vpop.permute.xlu0 %650
    %652 = vrot.lane.b32.xlu0 %v487, 125
    %v653 = vpop.permute.xlu0 %652
    %654 = vrot.lane.b32.xlu0 %v488, 125
    %v655 = vpop.permute.xlu0 %654
    %656 = vrot.lane.b32.xlu0 %v489, 125
    %v657 = vpop.permute.xlu0 %656
    %658 = vrot.lane.b32.xlu0 %v490, 125
    %v659 = vpop.permute.xlu0 %658
    %660 = vrot.lane.b32.xlu0 %v491, 125
    %v661 = vpop.permute.xlu0 %660
    %662 = vrot.lane.b32.xlu0 %v492, 125
    %v663 = vpop.permute.xlu0 %662
    %664 = vrot.lane.b32.xlu0 %v493, 125
    %v665 = vpop.permute.xlu0 %664
    %666 = vrot.lane.b32.xlu0 %v494, 125
    %v667 = vpop.permute.xlu0 %666
    %668 = vrot.lane.b32.xlu0 %v495, 125
    %v669 = vpop.permute.xlu0 %668
    %670 = vrot.lane.b32.xlu0 %v496, 125
    %v671 = vpop.permute.xlu0 %670
    %672 = vrot.lane.b32.xlu0 %v497, 125
    %v673 = vpop.permute.xlu0 %672
    %v690 = vadd.f32 %v626, %v643
    %v691 = vadd.f32 %v627, %v645
    %v692 = vadd.f32 %v628, %v647
    %v693 = vadd.f32 %v629, %v649
    %v694 = vadd.f32 %v630, %v651
    %v695 = vadd.f32 %v631, %v653
    %v696 = vadd.f32 %v632, %v655
    %v697 = vadd.f32 %v633, %v657
    %v698 = vadd.f32 %v634, %v659
    %v699 = vadd.f32 %v635, %v661
    %v700 = vadd.f32 %v636, %v663
    %v701 = vadd.f32 %v637, %v665
    %v702 = vadd.f32 %v638, %v667
    %v703 = vadd.f32 %v639, %v669
    %v704 = vadd.f32 %v640, %v671
    %v705 = vadd.f32 %v641, %v673
    %v706 = vmul.f32 %v34, 0.5
    %v707 = vmul.f32 %v35, 0.5
    %v708 = vmul.f32 %v36, 0.5
    %v709 = vmul.f32 %v37, 0.5
    %v710 = vmul.f32 %v38, 0.5
    %v711 = vmul.f32 %v39, 0.5
    %v712 = vmul.f32 %v40, 0.5
    %v713 = vmul.f32 %v41, 0.5
    %v714 = vmul.f32 %v42, 0.5
    %v715 = vmul.f32 %v43, 0.5
    %v716 = vmul.f32 %v44, 0.5
    %v717 = vmul.f32 %v45, 0.5
    %v718 = vmul.f32 %v46, 0.5
    %v719 = vmul.f32 %v47, 0.5
    %v720 = vmul.f32 %v48, 0.5
    %v721 = vmul.f32 %v49, 0.5
    %738 = vrot.lane.b32.xlu0 %v706, 126
    %v739 = vpop.permute.xlu0 %738
    %740 = vrot.lane.b32.xlu0 %v707, 126
    %v741 = vpop.permute.xlu0 %740
    %742 = vrot.lane.b32.xlu0 %v708, 126
    %v743 = vpop.permute.xlu0 %742
    %744 = vrot.lane.b32.xlu0 %v709, 126
    %v745 = vpop.permute.xlu0 %744
    %746 = vrot.lane.b32.xlu0 %v710, 126
    %v747 = vpop.permute.xlu0 %746
    %748 = vrot.lane.b32.xlu0 %v711, 126
    %v749 = vpop.permute.xlu0 %748
    %750 = vrot.lane.b32.xlu0 %v712, 126
    %v751 = vpop.permute.xlu0 %750
    %752 = vrot.lane.b32.xlu0 %v713, 126
    %v753 = vpop.permute.xlu0 %752
    %754 = vrot.lane.b32.xlu0 %v714, 126
    %v755 = vpop.permute.xlu0 %754
    %756 = vrot.lane.b32.xlu0 %v715, 126
    %v757 = vpop.permute.xlu0 %756
    %758 = vrot.lane.b32.xlu0 %v716, 126
    %v759 = vpop.permute.xlu0 %758
    %760 = vrot.lane.b32.xlu0 %v717, 126
    %v761 = vpop.permute.xlu0 %760
    %762 = vrot.lane.b32.xlu0 %v718, 126
    %v763 = vpop.permute.xlu0 %762
    %764 = vrot.lane.b32.xlu0 %v719, 126
    %v765 = vpop.permute.xlu0 %764
    %766 = vrot.lane.b32.xlu0 %v720, 126
    %v767 = vpop.permute.xlu0 %766
    %768 = vrot.lane.b32.xlu0 %v721, 126
    %v769 = vpop.permute.xlu0 %768
    %v786 = vsub.f32 %v34, %v739
    %v787 = vsub.f32 %v35, %v741
    %v788 = vsub.f32 %v36, %v743
    %v789 = vsub.f32 %v37, %v745
    %v790 = vsub.f32 %v38, %v747
    %v791 = vsub.f32 %v39, %v749
    %v792 = vsub.f32 %v40, %v751
    %v793 = vsub.f32 %v41, %v753
    %v794 = vsub.f32 %v42, %v755
    %v795 = vsub.f32 %v43, %v757
    %v796 = vsub.f32 %v44, %v759
    %v797 = vsub.f32 %v45, %v761
    %v798 = vsub.f32 %v46, %v763
    %v799 = vsub.f32 %v47, %v765
    %v800 = vsub.f32 %v48, %v767
    %v801 = vsub.f32 %v49, %v769
    %v802 = vadd.f32 %v34, %v739
    %v803 = vadd.f32 %v35, %v741
    %v804 = vadd.f32 %v36, %v743
    %v805 = vadd.f32 %v37, %v745
    %v806 = vadd.f32 %v38, %v747
    %v807 = vadd.f32 %v39, %v749
    %v808 = vadd.f32 %v40, %v751
    %v809 = vadd.f32 %v41, %v753
    %v810 = vadd.f32 %v42, %v755
    %v811 = vadd.f32 %v43, %v757
    %v812 = vadd.f32 %v44, %v759
    %v813 = vadd.f32 %v45, %v761
    %v814 = vadd.f32 %v46, %v763
    %v815 = vadd.f32 %v47, %v765
    %v816 = vadd.f32 %v48, %v767
    %v817 = vadd.f32 %v49, %v769
    %v818 = vmul.f32 %v54, 0.5
    %v819 = vmul.f32 %v55, 0.5
    %822 = vrot.lane.b32.xlu0 %v818, 126
    %v823 = vpop.permute.xlu0 %822
    %824 = vrot.lane.b32.xlu0 %v819, 126
    %v825 = vpop.permute.xlu0 %824
    %v828 = vsub.f32 %v54, %v823
    %v829 = vsub.f32 %v55, %v825
    %v830 = vadd.f32 %v54, %v823
    %v831 = vadd.f32 %v55, %v825
    %v832 = vsub.f32 %v802, %v786
    %v833 = vsub.f32 %v803, %v787
    %v834 = vsub.f32 %v804, %v788
    %v835 = vsub.f32 %v805, %v789
    %v836 = vsub.f32 %v806, %v790
    %v837 = vsub.f32 %v807, %v791
    %v838 = vsub.f32 %v808, %v792
    %v839 = vsub.f32 %v809, %v793
    %v840 = vsub.f32 %v810, %v794
    %v841 = vsub.f32 %v811, %v795
    %v842 = vsub.f32 %v812, %v796
    %v843 = vsub.f32 %v813, %v797
    %v844 = vsub.f32 %v814, %v798
    %v845 = vsub.f32 %v815, %v799
    %v846 = vsub.f32 %v816, %v800
    %v847 = vsub.f32 %v817, %v801
    %864 = vrot.lane.b32.xlu0 %v832, 127
    %v865 = vpop.permute.xlu0 %864
    %866 = vrot.lane.b32.xlu0 %v833, 127
    %v867 = vpop.permute.xlu0 %866
    %868 = vrot.lane.b32.xlu0 %v834, 127
    %v869 = vpop.permute.xlu0 %868
    %870 = vrot.lane.b32.xlu0 %v835, 127
    %v871 = vpop.permute.xlu0 %870
    %872 = vrot.lane.b32.xlu0 %v836, 127
    %v873 = vpop.permute.xlu0 %872
    %874 = vrot.lane.b32.xlu0 %v837, 127
    %v875 = vpop.permute.xlu0 %874
    %876 = vrot.lane.b32.xlu0 %v838, 127
    %v877 = vpop.permute.xlu0 %876
    %878 = vrot.lane.b32.xlu0 %v839, 127
    %v879 = vpop.permute.xlu0 %878
    %880 = vrot.lane.b32.xlu0 %v840, 127
    %v881 = vpop.permute.xlu0 %880
    %882 = vrot.lane.b32.xlu0 %v841, 127
    %v883 = vpop.permute.xlu0 %882
    %884 = vrot.lane.b32.xlu0 %v842, 127
    %v885 = vpop.permute.xlu0 %884
    %886 = vrot.lane.b32.xlu0 %v843, 127
    %v887 = vpop.permute.xlu0 %886
    %888 = vrot.lane.b32.xlu0 %v844, 127
    %v889 = vpop.permute.xlu0 %888
    %890 = vrot.lane.b32.xlu0 %v845, 127
    %v891 = vpop.permute.xlu0 %890
    %892 = vrot.lane.b32.xlu0 %v846, 127
    %v893 = vpop.permute.xlu0 %892
    %894 = vrot.lane.b32.xlu0 %v847, 127
    %v895 = vpop.permute.xlu0 %894
    %v912 = vmul.f32 %v832, %v865
    %v913 = vmul.f32 %v833, %v867
    %v914 = vmul.f32 %v834, %v869
    %v915 = vmul.f32 %v835, %v871
    %v916 = vmul.f32 %v836, %v873
    %v917 = vmul.f32 %v837, %v875
    %v918 = vmul.f32 %v838, %v877
    %v919 = vmul.f32 %v839, %v879
    %v920 = vmul.f32 %v840, %v881
    %v921 = vmul.f32 %v841, %v883
    %v922 = vmul.f32 %v842, %v885
    %v923 = vmul.f32 %v843, %v887
    %v924 = vmul.f32 %v844, %v889
    %v925 = vmul.f32 %v845, %v891
    %v926 = vmul.f32 %v846, %v893
    %v927 = vmul.f32 %v847, %v895
    %v928 = vsub.f32 %v830, %v828
    %v929 = vsub.f32 %v831, %v829
    %932 = vrot.lane.b32.xlu0 %v928, 127
    %v933 = vpop.permute.xlu0 %932
    %934 = vrot.lane.b32.xlu0 %v929, 127
    %v935 = vpop.permute.xlu0 %934
    %v938 = vmul.f32 %v928, %v933
    %v939 = vmul.f32 %v929, %v935
    %v942 = vlaneseq
    %v943 = vshrl.u32 %v942, 7
    %v944 = vsub.s32 0, %v943
    %v945 = vrot.slane %v828, %v944
    %v946 = vlaneseq
    %v947 = vshrl.u32 %v946, 7
    %v948 = vsub.s32 0, %v947
    %v949 = vrot.slane %v829, %v948
    %950 = vrot.lane.b32.xlu0 %v945, 124
    %v951 = vpop.permute.xlu0 %950
    %952 = vrot.lane.b32.xlu0 %v949, 124
    %v953 = vpop.permute.xlu0 %952
    %v956 = vmax.f32 %v786, %v951
    %v957 = vmax.f32 %v787, %v951
    %v958 = vmax.f32 %v788, %v951
    %v959 = vmax.f32 %v789, %v951
    %v960 = vmax.f32 %v790, %v953
    %v961 = vmax.f32 %v791, %v953
    %v962 = vmax.f32 %v792, %v953
    %v963 = vmax.f32 %v793, %v953
    %v964 = vmax.f32 %v794, %v951
    %v965 = vmax.f32 %v795, %v951
    %v966 = vmax.f32 %v796, %v951
    %v967 = vmax.f32 %v797, %v951
    %v968 = vmax.f32 %v798, %v953
    %v969 = vmax.f32 %v799, %v953
    %v970 = vmax.f32 %v800, %v953
    %v971 = vmax.f32 %v801, %v953
    %v974 = vlaneseq
    %v975 = vshrl.u32 %v974, 7
    %v976 = vsub.s32 0, %v975
    %v977 = vrot.slane %v830, %v976
    %v978 = vlaneseq
    %v979 = vshrl.u32 %v978, 7
    %v980 = vsub.s32 0, %v979
    %v981 = vrot.slane %v831, %v980
    %982 = vrot.lane.b32.xlu0 %v977, 124
    %v983 = vpop.permute.xlu0 %982
    %984 = vrot.lane.b32.xlu0 %v981, 124
    %v985 = vpop.permute.xlu0 %984
    %v988 = vmin.f32 %v802, %v983
    %v989 = vmin.f32 %v803, %v983
    %v990 = vmin.f32 %v804, %v983
    %v991 = vmin.f32 %v805, %v983
    %v992 = vmin.f32 %v806, %v985
    %v993 = vmin.f32 %v807, %v985
    %v994 = vmin.f32 %v808, %v985
    %v995 = vmin.f32 %v809, %v985
    %v996 = vmin.f32 %v810, %v983
    %v997 = vmin.f32 %v811, %v983
    %v998 = vmin.f32 %v812, %v983
    %v999 = vmin.f32 %v813, %v983
    %v1000 = vmin.f32 %v814, %v985
    %v1001 = vmin.f32 %v815, %v985
    %v1002 = vmin.f32 %v816, %v985
    %v1003 = vmin.f32 %v817, %v985
    %v1004 = vsub.f32 %v988, %v956
    %v1005 = vsub.f32 %v989, %v957
    %v1006 = vsub.f32 %v990, %v958
    %v1007 = vsub.f32 %v991, %v959
    %v1008 = vsub.f32 %v992, %v960
    %v1009 = vsub.f32 %v993, %v961
    %v1010 = vsub.f32 %v994, %v962
    %v1011 = vsub.f32 %v995, %v963
    %v1012 = vsub.f32 %v996, %v964
    %v1013 = vsub.f32 %v997, %v965
    %v1014 = vsub.f32 %v998, %v966
    %v1015 = vsub.f32 %v999, %v967
    %v1016 = vsub.f32 %v1000, %v968
    %v1017 = vsub.f32 %v1001, %v969
    %v1018 = vsub.f32 %v1002, %v970
    %v1019 = vsub.f32 %v1003, %v971
    %v1020 = vmax.f32 %v1004, 0.0
    %v1021 = vmax.f32 %v1005, 0.0
    %v1022 = vmax.f32 %v1006, 0.0
    %v1023 = vmax.f32 %v1007, 0.0
    %v1024 = vmax.f32 %v1008, 0.0
    %v1025 = vmax.f32 %v1009, 0.0
    %v1026 = vmax.f32 %v1010, 0.0
    %v1027 = vmax.f32 %v1011, 0.0
    %v1028 = vmax.f32 %v1012, 0.0
    %v1029 = vmax.f32 %v1013, 0.0
    %v1030 = vmax.f32 %v1014, 0.0
    %v1031 = vmax.f32 %v1015, 0.0
    %v1032 = vmax.f32 %v1016, 0.0
    %v1033 = vmax.f32 %v1017, 0.0
    %v1034 = vmax.f32 %v1018, 0.0
    %v1035 = vmax.f32 %v1019, 0.0
    %1052 = vrot.lane.b32.xlu0 %v1020, 127
    %v1053 = vpop.permute.xlu0 %1052
    %1054 = vrot.lane.b32.xlu0 %v1021, 127
    %v1055 = vpop.permute.xlu0 %1054
    %1056 = vrot.lane.b32.xlu0 %v1022, 127
    %v1057 = vpop.permute.xlu0 %1056
    %1058 = vrot.lane.b32.xlu0 %v1023, 127
    %v1059 = vpop.permute.xlu0 %1058
    %1060 = vrot.lane.b32.xlu0 %v1024, 127
    %v1061 = vpop.permute.xlu0 %1060
    %1062 = vrot.lane.b32.xlu0 %v1025, 127
    %v1063 = vpop.permute.xlu0 %1062
    %1064 = vrot.lane.b32.xlu0 %v1026, 127
    %v1065 = vpop.permute.xlu0 %1064
    %1066 = vrot.lane.b32.xlu0 %v1027, 127
    %v1067 = vpop.permute.xlu0 %1066
    %1068 = vrot.lane.b32.xlu0 %v1028, 127
    %v1069 = vpop.permute.xlu0 %1068
    %1070 = vrot.lane.b32.xlu0 %v1029, 127
    %v1071 = vpop.permute.xlu0 %1070
    %1072 = vrot.lane.b32.xlu0 %v1030, 127
    %v1073 = vpop.permute.xlu0 %1072
    %1074 = vrot.lane.b32.xlu0 %v1031, 127
    %v1075 = vpop.permute.xlu0 %1074
    %1076 = vrot.lane.b32.xlu0 %v1032, 127
    %v1077 = vpop.permute.xlu0 %1076
    %1078 = vrot.lane.b32.xlu0 %v1033, 127
    %v1079 = vpop.permute.xlu0 %1078
    %1080 = vrot.lane.b32.xlu0 %v1034, 127
    %v1081 = vpop.permute.xlu0 %1080
    %1082 = vrot.lane.b32.xlu0 %v1035, 127
    %v1083 = vpop.permute.xlu0 %1082
    %v1100 = vmul.f32 %v1020, %v1053
    %v1101 = vmul.f32 %v1021, %v1055
    %v1102 = vmul.f32 %v1022, %v1057
    %v1103 = vmul.f32 %v1023, %v1059
    %v1104 = vmul.f32 %v1024, %v1061
    %v1105 = vmul.f32 %v1025, %v1063
    %v1106 = vmul.f32 %v1026, %v1065
    %v1107 = vmul.f32 %v1027, %v1067
    %v1108 = vmul.f32 %v1028, %v1069
    %v1109 = vmul.f32 %v1029, %v1071
    %v1110 = vmul.f32 %v1030, %v1073
    %v1111 = vmul.f32 %v1031, %v1075
    %v1112 = vmul.f32 %v1032, %v1077
    %v1113 = vmul.f32 %v1033, %v1079
    %v1114 = vmul.f32 %v1034, %v1081
    %v1115 = vmul.f32 %v1035, %v1083
    %v1118 = vlaneseq
    %v1119 = vshrl.u32 %v1118, 7
    %v1120 = vsub.s32 0, %v1119
    %v1121 = vrot.slane %v938, %v1120
    %v1122 = vlaneseq
    %v1123 = vshrl.u32 %v1122, 7
    %v1124 = vsub.s32 0, %v1123
    %v1125 = vrot.slane %v939, %v1124
    %1126 = vrot.lane.b32.xlu0 %v1121, 124
    %v1127 = vpop.permute.xlu0 %1126
    %1128 = vrot.lane.b32.xlu0 %v1125, 124
    %v1129 = vpop.permute.xlu0 %1128
    %v1132 = vadd.f32 %v912, %v1127
    %v1133 = vadd.f32 %v913, %v1127
    %v1134 = vadd.f32 %v914, %v1127
    %v1135 = vadd.f32 %v915, %v1127
    %v1136 = vadd.f32 %v916, %v1129
    %v1137 = vadd.f32 %v917, %v1129
    %v1138 = vadd.f32 %v918, %v1129
    %v1139 = vadd.f32 %v919, %v1129
    %v1140 = vadd.f32 %v920, %v1127
    %v1141 = vadd.f32 %v921, %v1127
    %v1142 = vadd.f32 %v922, %v1127
    %v1143 = vadd.f32 %v923, %v1127
    %v1144 = vadd.f32 %v924, %v1129
    %v1145 = vadd.f32 %v925, %v1129
    %v1146 = vadd.f32 %v926, %v1129
    %v1147 = vadd.f32 %v927, %v1129
    %v1148 = vsub.f32 %v1132, %v1100
    %v1149 = vsub.f32 %v1133, %v1101
    %v1150 = vsub.f32 %v1134, %v1102
    %v1151 = vsub.f32 %v1135, %v1103
    %v1152 = vsub.f32 %v1136, %v1104
    %v1153 = vsub.f32 %v1137, %v1105
    %v1154 = vsub.f32 %v1138, %v1106
    %v1155 = vsub.f32 %v1139, %v1107
    %v1156 = vsub.f32 %v1140, %v1108
    %v1157 = vsub.f32 %v1141, %v1109
    %v1158 = vsub.f32 %v1142, %v1110
    %v1159 = vsub.f32 %v1143, %v1111
    %v1160 = vsub.f32 %v1144, %v1112
    %v1161 = vsub.f32 %v1145, %v1113
    %v1162 = vsub.f32 %v1146, %v1114
    %v1163 = vsub.f32 %v1147, %v1115
    %v1164 = vmin.f32 %v786, %v951
    %v1165 = vmin.f32 %v787, %v951
    %v1166 = vmin.f32 %v788, %v951
    %v1167 = vmin.f32 %v789, %v951
    %v1168 = vmin.f32 %v790, %v953
    %v1169 = vmin.f32 %v791, %v953
    %v1170 = vmin.f32 %v792, %v953
    %v1171 = vmin.f32 %v793, %v953
    %v1172 = vmin.f32 %v794, %v951
    %v1173 = vmin.f32 %v795, %v951
    %v1174 = vmin.f32 %v796, %v951
    %v1175 = vmin.f32 %v797, %v951
    %v1176 = vmin.f32 %v798, %v953
    %v1177 = vmin.f32 %v799, %v953
    %v1178 = vmin.f32 %v800, %v953
    %v1179 = vmin.f32 %v801, %v953
    %v1180 = vmax.f32 %v802, %v983
    %v1181 = vmax.f32 %v803, %v983
    %v1182 = vmax.f32 %v804, %v983
    %v1183 = vmax.f32 %v805, %v983
    %v1184 = vmax.f32 %v806, %v985
    %v1185 = vmax.f32 %v807, %v985
    %v1186 = vmax.f32 %v808, %v985
    %v1187 = vmax.f32 %v809, %v985
    %v1188 = vmax.f32 %v810, %v983
    %v1189 = vmax.f32 %v811, %v983
    %v1190 = vmax.f32 %v812, %v983
    %v1191 = vmax.f32 %v813, %v983
    %v1192 = vmax.f32 %v814, %v985
    %v1193 = vmax.f32 %v815, %v985
    %v1194 = vmax.f32 %v816, %v985
    %v1195 = vmax.f32 %v817, %v985
    %v1196 = vsub.f32 %v1180, %v1164
    %v1197 = vsub.f32 %v1181, %v1165
    %v1198 = vsub.f32 %v1182, %v1166
    %v1199 = vsub.f32 %v1183, %v1167
    %v1200 = vsub.f32 %v1184, %v1168
    %v1201 = vsub.f32 %v1185, %v1169
    %v1202 = vsub.f32 %v1186, %v1170
    %v1203 = vsub.f32 %v1187, %v1171
    %v1204 = vsub.f32 %v1188, %v1172
    %v1205 = vsub.f32 %v1189, %v1173
    %v1206 = vsub.f32 %v1190, %v1174
    %v1207 = vsub.f32 %v1191, %v1175
    %v1208 = vsub.f32 %v1192, %v1176
    %v1209 = vsub.f32 %v1193, %v1177
    %v1210 = vsub.f32 %v1194, %v1178
    %v1211 = vsub.f32 %v1195, %v1179
    %1228 = vrot.lane.b32.xlu0 %v1196, 127
    %v1229 = vpop.permute.xlu0 %1228
    %1230 = vrot.lane.b32.xlu0 %v1197, 127
    %v1231 = vpop.permute.xlu0 %1230
    %1232 = vrot.lane.b32.xlu0 %v1198, 127
    %v1233 = vpop.permute.xlu0 %1232
    %1234 = vrot.lane.b32.xlu0 %v1199, 127
    %v1235 = vpop.permute.xlu0 %1234
    %1236 = vrot.lane.b32.xlu0 %v1200, 127
    %v1237 = vpop.permute.xlu0 %1236
    %1238 = vrot.lane.b32.xlu0 %v1201, 127
    %v1239 = vpop.permute.xlu0 %1238
    %1240 = vrot.lane.b32.xlu0 %v1202, 127
    %v1241 = vpop.permute.xlu0 %1240
    %1242 = vrot.lane.b32.xlu0 %v1203, 127
    %v1243 = vpop.permute.xlu0 %1242
    %1244 = vrot.lane.b32.xlu0 %v1204, 127
    %v1245 = vpop.permute.xlu0 %1244
    %1246 = vrot.lane.b32.xlu0 %v1205, 127
    %v1247 = vpop.permute.xlu0 %1246
    %1248 = vrot.lane.b32.xlu0 %v1206, 127
    %v1249 = vpop.permute.xlu0 %1248
    %1250 = vrot.lane.b32.xlu0 %v1207, 127
    %v1251 = vpop.permute.xlu0 %1250
    %1252 = vrot.lane.b32.xlu0 %v1208, 127
    %v1253 = vpop.permute.xlu0 %1252
    %1254 = vrot.lane.b32.xlu0 %v1209, 127
    %v1255 = vpop.permute.xlu0 %1254
    %1256 = vrot.lane.b32.xlu0 %v1210, 127
    %v1257 = vpop.permute.xlu0 %1256
    %1258 = vrot.lane.b32.xlu0 %v1211, 127
    %v1259 = vpop.permute.xlu0 %1258
    %v1276 = vmul.f32 %v1196, %v1229
    %v1277 = vmul.f32 %v1197, %v1231
    %v1278 = vmul.f32 %v1198, %v1233
    %v1279 = vmul.f32 %v1199, %v1235
    %v1280 = vmul.f32 %v1200, %v1237
    %v1281 = vmul.f32 %v1201, %v1239
    %v1282 = vmul.f32 %v1202, %v1241
    %v1283 = vmul.f32 %v1203, %v1243
    %v1284 = vmul.f32 %v1204, %v1245
    %v1285 = vmul.f32 %v1205, %v1247
    %v1286 = vmul.f32 %v1206, %v1249
    %v1287 = vmul.f32 %v1207, %v1251
    %v1288 = vmul.f32 %v1208, %v1253
    %v1289 = vmul.f32 %v1209, %v1255
    %v1290 = vmul.f32 %v1210, %v1257
    %v1291 = vmul.f32 %v1211, %v1259
    %v1292 = vadd.f32 %v1148, 1e-07
    %v1293 = vadd.f32 %v1149, 1e-07
    %v1294 = vadd.f32 %v1150, 1e-07
    %v1295 = vadd.f32 %v1151, 1e-07
    %v1296 = vadd.f32 %v1152, 1e-07
    %v1297 = vadd.f32 %v1153, 1e-07
    %v1298 = vadd.f32 %v1154, 1e-07
    %v1299 = vadd.f32 %v1155, 1e-07
    %v1300 = vadd.f32 %v1156, 1e-07
    %v1301 = vadd.f32 %v1157, 1e-07
    %v1302 = vadd.f32 %v1158, 1e-07
    %v1303 = vadd.f32 %v1159, 1e-07
    %v1304 = vadd.f32 %v1160, 1e-07
    %v1305 = vadd.f32 %v1161, 1e-07
    %v1306 = vadd.f32 %v1162, 1e-07
    %v1307 = vadd.f32 %v1163, 1e-07
    %v1308 = vrcp.pop %v1292
    %v1309 = vrcp.pop %v1293
    %v1310 = vrcp.pop %v1294
    %v1311 = vrcp.pop %v1295
    %v1312 = vrcp.pop %v1296
    %v1313 = vrcp.pop %v1297
    %v1314 = vrcp.pop %v1298
    %v1315 = vrcp.pop %v1299
    %v1316 = vrcp.pop %v1300
    %v1317 = vrcp.pop %v1301
    %v1318 = vrcp.pop %v1302
    %v1319 = vrcp.pop %v1303
    %v1320 = vrcp.pop %v1304
    %v1321 = vrcp.pop %v1305
    %v1322 = vrcp.pop %v1306
    %v1323 = vrcp.pop %v1307
    %v1324 = vadd.f32 %v1276, 1e-07
    %v1325 = vadd.f32 %v1277, 1e-07
    %v1326 = vadd.f32 %v1278, 1e-07
    %v1327 = vadd.f32 %v1279, 1e-07
    %v1328 = vadd.f32 %v1280, 1e-07
    %v1329 = vadd.f32 %v1281, 1e-07
    %v1330 = vadd.f32 %v1282, 1e-07
    %v1331 = vadd.f32 %v1283, 1e-07
    %v1332 = vadd.f32 %v1284, 1e-07
    %v1333 = vadd.f32 %v1285, 1e-07
    %v1334 = vadd.f32 %v1286, 1e-07
    %v1335 = vadd.f32 %v1287, 1e-07
    %v1336 = vadd.f32 %v1288, 1e-07
    %v1337 = vadd.f32 %v1289, 1e-07
    %v1338 = vadd.f32 %v1290, 1e-07
    %v1339 = vadd.f32 %v1291, 1e-07
    %v1340 = vrcp.pop %v1324
    %v1341 = vrcp.pop %v1325
    %v1342 = vrcp.pop %v1326
    %v1343 = vrcp.pop %v1327
    %v1344 = vrcp.pop %v1328
    %v1345 = vrcp.pop %v1329
    %v1346 = vrcp.pop %v1330
    %v1347 = vrcp.pop %v1331
    %v1348 = vrcp.pop %v1332
    %v1349 = vrcp.pop %v1333
    %v1350 = vrcp.pop %v1334
    %v1351 = vrcp.pop %v1335
    %v1352 = vrcp.pop %v1336
    %v1353 = vrcp.pop %v1337
    %v1354 = vrcp.pop %v1338
    %v1355 = vrcp.pop %v1339
    %v1356 = vmul.f32 %v1100, %v1308
    %v1357 = vmul.f32 %v1101, %v1309
    %v1358 = vmul.f32 %v1102, %v1310
    %v1359 = vmul.f32 %v1103, %v1311
    %v1360 = vmul.f32 %v1104, %v1312
    %v1361 = vmul.f32 %v1105, %v1313
    %v1362 = vmul.f32 %v1106, %v1314
    %v1363 = vmul.f32 %v1107, %v1315
    %v1364 = vmul.f32 %v1108, %v1316
    %v1365 = vmul.f32 %v1109, %v1317
    %v1366 = vmul.f32 %v1110, %v1318
    %v1367 = vmul.f32 %v1111, %v1319
    %v1368 = vmul.f32 %v1112, %v1320
    %v1369 = vmul.f32 %v1113, %v1321
    %v1370 = vmul.f32 %v1114, %v1322
    %v1371 = vmul.f32 %v1115, %v1323
    %v1372 = vsub.f32 %v1276, %v1148
    %v1373 = vsub.f32 %v1277, %v1149
    %v1374 = vsub.f32 %v1278, %v1150
    %v1375 = vsub.f32 %v1279, %v1151
    %v1376 = vsub.f32 %v1280, %v1152
    %v1377 = vsub.f32 %v1281, %v1153
    %v1378 = vsub.f32 %v1282, %v1154
    %v1379 = vsub.f32 %v1283, %v1155
    %v1380 = vsub.f32 %v1284, %v1156
    %v1381 = vsub.f32 %v1285, %v1157
    %v1382 = vsub.f32 %v1286, %v1158
    %v1383 = vsub.f32 %v1287, %v1159
    %v1384 = vsub.f32 %v1288, %v1160
    %v1385 = vsub.f32 %v1289, %v1161
    %v1386 = vsub.f32 %v1290, %v1162
    %v1387 = vsub.f32 %v1291, %v1163
    %v1388 = vmul.f32 %v1372, %v1340
    %v1389 = vmul.f32 %v1373, %v1341
    %v1390 = vmul.f32 %v1374, %v1342
    %v1391 = vmul.f32 %v1375, %v1343
    %v1392 = vmul.f32 %v1376, %v1344
    %v1393 = vmul.f32 %v1377, %v1345
    %v1394 = vmul.f32 %v1378, %v1346
    %v1395 = vmul.f32 %v1379, %v1347
    %v1396 = vmul.f32 %v1380, %v1348
    %v1397 = vmul.f32 %v1381, %v1349
    %v1398 = vmul.f32 %v1382, %v1350
    %v1399 = vmul.f32 %v1383, %v1351
    %v1400 = vmul.f32 %v1384, %v1352
    %v1401 = vmul.f32 %v1385, %v1353
    %v1402 = vmul.f32 %v1386, %v1354
    %v1403 = vmul.f32 %v1387, %v1355
    %v1404 = vsub.f32 %v1356, %v1388
    %v1405 = vsub.f32 %v1357, %v1389
    %v1406 = vsub.f32 %v1358, %v1390
    %v1407 = vsub.f32 %v1359, %v1391
    %v1408 = vsub.f32 %v1360, %v1392
    %v1409 = vsub.f32 %v1361, %v1393
    %v1410 = vsub.f32 %v1362, %v1394
    %v1411 = vsub.f32 %v1363, %v1395
    %v1412 = vsub.f32 %v1364, %v1396
    %v1413 = vsub.f32 %v1365, %v1397
    %v1414 = vsub.f32 %v1366, %v1398
    %v1415 = vsub.f32 %v1367, %v1399
    %v1416 = vsub.f32 %v1368, %v1400
    %v1417 = vsub.f32 %v1369, %v1401
    %v1418 = vsub.f32 %v1370, %v1402
    %v1419 = vsub.f32 %v1371, %v1403
    %v1420 = vmul.f32 %v690, 5.0
    %v1421 = vmul.f32 %v691, 5.0
    %v1422 = vmul.f32 %v692, 5.0
    %v1423 = vmul.f32 %v693, 5.0
    %v1424 = vmul.f32 %v694, 5.0
    %v1425 = vmul.f32 %v695, 5.0
    %v1426 = vmul.f32 %v696, 5.0
    %v1427 = vmul.f32 %v697, 5.0
    %v1428 = vmul.f32 %v698, 5.0
    %v1429 = vmul.f32 %v699, 5.0
    %v1430 = vmul.f32 %v700, 5.0
    %v1431 = vmul.f32 %v701, 5.0
    %v1432 = vmul.f32 %v702, 5.0
    %v1433 = vmul.f32 %v703, 5.0
    %v1434 = vmul.f32 %v704, 5.0
    %v1435 = vmul.f32 %v705, 5.0
    %v1436 = vadd.f32 %v434, %v1420
    %v1437 = vadd.f32 %v435, %v1421
    %v1438 = vadd.f32 %v436, %v1422
    %v1439 = vadd.f32 %v437, %v1423
    %v1440 = vadd.f32 %v438, %v1424
    %v1441 = vadd.f32 %v439, %v1425
    %v1442 = vadd.f32 %v440, %v1426
    %v1443 = vadd.f32 %v441, %v1427
    %v1444 = vadd.f32 %v442, %v1428
    %v1445 = vadd.f32 %v443, %v1429
    %v1446 = vadd.f32 %v444, %v1430
    %v1447 = vadd.f32 %v445, %v1431
    %v1448 = vadd.f32 %v446, %v1432
    %v1449 = vadd.f32 %v447, %v1433
    %v1450 = vadd.f32 %v448, %v1434
    %v1451 = vadd.f32 %v449, %v1435
    %v1452 = vmul.f32 %v1404, 2.0
    %v1453 = vmul.f32 %v1405, 2.0
    %v1454 = vmul.f32 %v1406, 2.0
    %v1455 = vmul.f32 %v1407, 2.0
    %v1456 = vmul.f32 %v1408, 2.0
    %v1457 = vmul.f32 %v1409, 2.0
    %v1458 = vmul.f32 %v1410, 2.0
    %v1459 = vmul.f32 %v1411, 2.0
    %v1460 = vmul.f32 %v1412, 2.0
    %v1461 = vmul.f32 %v1413, 2.0
    %v1462 = vmul.f32 %v1414, 2.0
    %v1463 = vmul.f32 %v1415, 2.0
    %v1464 = vmul.f32 %v1416, 2.0
    %v1465 = vmul.f32 %v1417, 2.0
    %v1466 = vmul.f32 %v1418, 2.0
    %v1467 = vmul.f32 %v1419, 2.0
    %v1468 = vsub.f32 %v1436, %v1452
    %v1469 = vsub.f32 %v1437, %v1453
    %v1470 = vsub.f32 %v1438, %v1454
    %v1471 = vsub.f32 %v1439, %v1455
    %v1472 = vsub.f32 %v1440, %v1456
    %v1473 = vsub.f32 %v1441, %v1457
    %v1474 = vsub.f32 %v1442, %v1458
    %v1475 = vsub.f32 %v1443, %v1459
    %v1476 = vsub.f32 %v1444, %v1460
    %v1477 = vsub.f32 %v1445, %v1461
    %v1478 = vsub.f32 %v1446, %v1462
    %v1479 = vsub.f32 %v1447, %v1463
    %v1480 = vsub.f32 %v1448, %v1464
    %v1481 = vsub.f32 %v1449, %v1465
    %v1482 = vsub.f32 %v1450, %v1466
    %v1483 = vsub.f32 %v1451, %v1467
    %v1484 = vsel %vm101, 1, 0
    %v1485 = vsel %vm102, 1, 0
    %v1486 = vsel %vm103, 1, 0
    %v1487 = vsel %vm104, 1, 0
    %v1488 = vsel %vm105, 1, 0
    %v1489 = vsel %vm106, 1, 0
    %v1490 = vsel %vm107, 1, 0
    %v1491 = vsel %vm108, 1, 0
    %vm1492 = vcmp.eq.s32.totalorder %v1484, 1
    %vm1493 = vcmp.eq.s32.totalorder %v1485, 1
    %vm1494 = vcmp.eq.s32.totalorder %v1486, 1
    %vm1495 = vcmp.eq.s32.totalorder %v1487, 1
    %vm1496 = vcmp.eq.s32.totalorder %v1488, 1
    %vm1497 = vcmp.eq.s32.totalorder %v1489, 1
    %vm1498 = vcmp.eq.s32.totalorder %v1490, 1
    %vm1499 = vcmp.eq.s32.totalorder %v1491, 1
    %v1500 = vsel %vm1492, %v1468, 1e+30
    %v1501 = vsel %vm1493, %v1469, 1e+30
    %v1502 = vsel %vm1494, %v1470, 1e+30
    %v1503 = vsel %vm1495, %v1471, 1e+30
    %v1504 = vsel %vm1496, %v1472, 1e+30
    %v1505 = vsel %vm1497, %v1473, 1e+30
    %v1506 = vsel %vm1498, %v1474, 1e+30
    %v1507 = vsel %vm1499, %v1475, 1e+30
    %v1508 = vsel %vm1492, %v1476, 1e+30
    %v1509 = vsel %vm1493, %v1477, 1e+30
    %v1510 = vsel %vm1494, %v1478, 1e+30
    %v1511 = vsel %vm1495, %v1479, 1e+30
    %v1512 = vsel %vm1496, %v1480, 1e+30
    %v1513 = vsel %vm1497, %v1481, 1e+30
    %v1514 = vsel %vm1498, %v1482, 1e+30
    %v1515 = vsel %vm1499, %v1483, 1e+30
    %vm1516 = vcmask 7168
    %v1517 = vsel %vm1516, %v1500, inf
    %v1518 = vsel %vm1516, %v1501, inf
    %v1519 = vmin.f32 %v1517, %v1518
    %v1520 = vsel %vm1516, %v1502, inf
    %v1521 = vmin.f32 %v1519, %v1520
    %v1522 = vsel %vm1516, %v1503, inf
    %v1523 = vmin.f32 %v1521, %v1522
    %v1524 = vrot.slane %v1523, 4
    %v1525 = vmin.f32 %v1523, %v1524
    %v1526 = vrot.slane %v1525, 2
    %v1527 = vmin.f32 %v1525, %v1526
    %v1528 = vrot.slane %v1527, 1
    %v1529 = vmin.f32 %v1527, %v1528
    %v1530 = vsel %vm1516, %v1504, inf
    %v1531 = vsel %vm1516, %v1505, inf
    %v1532 = vmin.f32 %v1530, %v1531
    %v1533 = vsel %vm1516, %v1506, inf
    %v1534 = vmin.f32 %v1532, %v1533
    %v1535 = vsel %vm1516, %v1507, inf
    %v1536 = vmin.f32 %v1534, %v1535
    %v1537 = vrot.slane %v1536, 4
    %v1538 = vmin.f32 %v1536, %v1537
    %v1539 = vrot.slane %v1538, 2
    %v1540 = vmin.f32 %v1538, %v1539
    %v1541 = vrot.slane %v1540, 1
    %v1542 = vmin.f32 %v1540, %v1541
    %v1543 = vsel %vm1516, %v1508, inf
    %v1544 = vsel %vm1516, %v1509, inf
    %v1545 = vmin.f32 %v1543, %v1544
    %v1546 = vsel %vm1516, %v1510, inf
    %v1547 = vmin.f32 %v1545, %v1546
    %v1548 = vsel %vm1516, %v1511, inf
    %v1549 = vmin.f32 %v1547, %v1548
    %v1550 = vrot.slane %v1549, 4
    %v1551 = vmin.f32 %v1549, %v1550
    %v1552 = vrot.slane %v1551, 2
    %v1553 = vmin.f32 %v1551, %v1552
    %v1554 = vrot.slane %v1553, 1
    %v1555 = vmin.f32 %v1553, %v1554
    %v1556 = vsel %vm1516, %v1512, inf
    %v1557 = vsel %vm1516, %v1513, inf
    %v1558 = vmin.f32 %v1556, %v1557
    %v1559 = vsel %vm1516, %v1514, inf
    %v1560 = vmin.f32 %v1558, %v1559
    %v1561 = vsel %vm1516, %v1515, inf
    %v1562 = vmin.f32 %v1560, %v1561
    %v1563 = vrot.slane %v1562, 4
    %v1564 = vmin.f32 %v1562, %v1563
    %v1565 = vrot.slane %v1564, 2
    %v1566 = vmin.f32 %v1564, %v1565
    %v1567 = vrot.slane %v1566, 1
    %v1568 = vmin.f32 %v1566, %v1567
    %vm1569 = vcmp.eq.f32.partialorder %v1500, %v1529
    %vm1570 = vcmp.eq.f32.partialorder %v1501, %v1529
    %vm1571 = vcmp.eq.f32.partialorder %v1502, %v1529
    %vm1572 = vcmp.eq.f32.partialorder %v1503, %v1529
    %vm1573 = vcmp.eq.f32.partialorder %v1504, %v1542
    %vm1574 = vcmp.eq.f32.partialorder %v1505, %v1542
    %vm1575 = vcmp.eq.f32.partialorder %v1506, %v1542
    %vm1576 = vcmp.eq.f32.partialorder %v1507, %v1542
    %vm1577 = vcmp.eq.f32.partialorder %v1508, %v1555
    %vm1578 = vcmp.eq.f32.partialorder %v1509, %v1555
    %vm1579 = vcmp.eq.f32.partialorder %v1510, %v1555
    %vm1580 = vcmp.eq.f32.partialorder %v1511, %v1555
    %vm1581 = vcmp.eq.f32.partialorder %v1512, %v1568
    %vm1582 = vcmp.eq.f32.partialorder %v1513, %v1568
    %vm1583 = vcmp.eq.f32.partialorder %v1514, %v1568
    %vm1584 = vcmp.eq.f32.partialorder %v1515, %v1568
    %v1585 = vsel %vm1569, %v59, 32
    %v1586 = vsel %vm1570, %v60, 32
    %v1587 = vsel %vm1571, %v61, 32
    %v1588 = vsel %vm1572, %v62, 32
    %v1589 = vsel %vm1573, %v59, 32
    %v1590 = vsel %vm1574, %v60, 32
    %v1591 = vsel %vm1575, %v61, 32
    %v1592 = vsel %vm1576, %v62, 32
    %v1593 = vsel %vm1577, %v59, 32
    %v1594 = vsel %vm1578, %v60, 32
    %v1595 = vsel %vm1579, %v61, 32
    %v1596 = vsel %vm1580, %v62, 32
    %v1597 = vsel %vm1581, %v59, 32
    %v1598 = vsel %vm1582, %v60, 32
    %v1599 = vsel %vm1583, %v61, 32
    %v1600 = vsel %vm1584, %v62, 32
    %v1601 = vsel %vm1516, %v1585, 2147483647
    %v1602 = vsel %vm1516, %v1586, 2147483647
    %vm1603 = vcmp.lt.s32.totalorder %v1601, %v1602
    %v1604 = vsel %vm1603, %v1601, %v1602
    %v1605 = vsel %vm1516, %v1587, 2147483647
    %vm1606 = vcmp.lt.s32.totalorder %v1604, %v1605
    %v1607 = vsel %vm1606, %v1604, %v1605
    %v1608 = vsel %vm1516, %v1588, 2147483647
    %vm1609 = vcmp.lt.s32.totalorder %v1607, %v1608
    %v1610 = vsel %vm1609, %v1607, %v1608
    %v1611 = vrot.slane %v1610, 4
    %vm1612 = vcmp.lt.s32.totalorder %v1610, %v1611
    %v1613 = vsel %vm1612, %v1610, %v1611
    %v1614 = vrot.slane %v1613, 2
    %vm1615 = vcmp.lt.s32.totalorder %v1613, %v1614
    %v1616 = vsel %vm1615, %v1613, %v1614
    %v1617 = vrot.slane %v1616, 1
    %vm1618 = vcmp.lt.s32.totalorder %v1616, %v1617
    %v1619 = vsel %vm1618, %v1616, %v1617
    %v1620 = vsel %vm1516, %v1589, 2147483647
    %v1621 = vsel %vm1516, %v1590, 2147483647
    %vm1622 = vcmp.lt.s32.totalorder %v1620, %v1621
    %v1623 = vsel %vm1622, %v1620, %v1621
    %v1624 = vsel %vm1516, %v1591, 2147483647
    %vm1625 = vcmp.lt.s32.totalorder %v1623, %v1624
    %v1626 = vsel %vm1625, %v1623, %v1624
    %v1627 = vsel %vm1516, %v1592, 2147483647
    %vm1628 = vcmp.lt.s32.totalorder %v1626, %v1627
    %v1629 = vsel %vm1628, %v1626, %v1627
    %v1630 = vrot.slane %v1629, 4
    %vm1631 = vcmp.lt.s32.totalorder %v1629, %v1630
    %v1632 = vsel %vm1631, %v1629, %v1630
    %v1633 = vrot.slane %v1632, 2
    %vm1634 = vcmp.lt.s32.totalorder %v1632, %v1633
    %v1635 = vsel %vm1634, %v1632, %v1633
    %v1636 = vrot.slane %v1635, 1
    %vm1637 = vcmp.lt.s32.totalorder %v1635, %v1636
    %v1638 = vsel %vm1637, %v1635, %v1636
    %v1639 = vsel %vm1516, %v1593, 2147483647
    %v1640 = vsel %vm1516, %v1594, 2147483647
    %vm1641 = vcmp.lt.s32.totalorder %v1639, %v1640
    %v1642 = vsel %vm1641, %v1639, %v1640
    %v1643 = vsel %vm1516, %v1595, 2147483647
    %vm1644 = vcmp.lt.s32.totalorder %v1642, %v1643
    %v1645 = vsel %vm1644, %v1642, %v1643
    %v1646 = vsel %vm1516, %v1596, 2147483647
    %vm1647 = vcmp.lt.s32.totalorder %v1645, %v1646
    %v1648 = vsel %vm1647, %v1645, %v1646
    %v1649 = vrot.slane %v1648, 4
    %vm1650 = vcmp.lt.s32.totalorder %v1648, %v1649
    %v1651 = vsel %vm1650, %v1648, %v1649
    %v1652 = vrot.slane %v1651, 2
    %vm1653 = vcmp.lt.s32.totalorder %v1651, %v1652
    %v1654 = vsel %vm1653, %v1651, %v1652
    %v1655 = vrot.slane %v1654, 1
    %vm1656 = vcmp.lt.s32.totalorder %v1654, %v1655
    %v1657 = vsel %vm1656, %v1654, %v1655
    %v1658 = vsel %vm1516, %v1597, 2147483647
    %v1659 = vsel %vm1516, %v1598, 2147483647
    %vm1660 = vcmp.lt.s32.totalorder %v1658, %v1659
    %v1661 = vsel %vm1660, %v1658, %v1659
    %v1662 = vsel %vm1516, %v1599, 2147483647
    %vm1663 = vcmp.lt.s32.totalorder %v1661, %v1662
    %v1664 = vsel %vm1663, %v1661, %v1662
    %v1665 = vsel %vm1516, %v1600, 2147483647
    %vm1666 = vcmp.lt.s32.totalorder %v1664, %v1665
    %v1667 = vsel %vm1666, %v1664, %v1665
    %v1668 = vrot.slane %v1667, 4
    %vm1669 = vcmp.lt.s32.totalorder %v1667, %v1668
    %v1670 = vsel %vm1669, %v1667, %v1668
    %v1671 = vrot.slane %v1670, 2
    %vm1672 = vcmp.lt.s32.totalorder %v1670, %v1671
    %v1673 = vsel %vm1672, %v1670, %v1671
    %v1674 = vrot.slane %v1673, 1
    %vm1675 = vcmp.lt.s32.totalorder %v1673, %v1674
    %v1676 = vsel %vm1675, %v1673, %v1674
    %vm1677 = vcmp.eq.s32.totalorder %v59, %v1619
    %vm1678 = vcmp.eq.s32.totalorder %v60, %v1619
    %vm1679 = vcmp.eq.s32.totalorder %v61, %v1619
    %vm1680 = vcmp.eq.s32.totalorder %v62, %v1619
    %vm1681 = vcmp.eq.s32.totalorder %v59, %v1638
    %vm1682 = vcmp.eq.s32.totalorder %v60, %v1638
    %vm1683 = vcmp.eq.s32.totalorder %v61, %v1638
    %vm1684 = vcmp.eq.s32.totalorder %v62, %v1638
    %vm1685 = vcmp.eq.s32.totalorder %v59, %v1657
    %vm1686 = vcmp.eq.s32.totalorder %v60, %v1657
    %vm1687 = vcmp.eq.s32.totalorder %v61, %v1657
    %vm1688 = vcmp.eq.s32.totalorder %v62, %v1657
    %vm1689 = vcmp.eq.s32.totalorder %v59, %v1676
    %vm1690 = vcmp.eq.s32.totalorder %v60, %v1676
    %vm1691 = vcmp.eq.s32.totalorder %v61, %v1676
    %vm1692 = vcmp.eq.s32.totalorder %v62, %v1676
    %1709 = vrot.lane.b32.xlu0 %v18, 107
    %v1710 = vpop.permute.xlu0 %1709
    %1711 = vrot.lane.b32.xlu0 %v19, 107
    %v1712 = vpop.permute.xlu0 %1711
    %1713 = vrot.lane.b32.xlu0 %v20, 107
    %v1714 = vpop.permute.xlu0 %1713
    %1715 = vrot.lane.b32.xlu0 %v21, 107
    %v1716 = vpop.permute.xlu0 %1715
    %1717 = vrot.lane.b32.xlu0 %v22, 107
    %v1718 = vpop.permute.xlu0 %1717
    %1719 = vrot.lane.b32.xlu0 %v23, 107
    %v1720 = vpop.permute.xlu0 %1719
    %1721 = vrot.lane.b32.xlu0 %v24, 107
    %v1722 = vpop.permute.xlu0 %1721
    %1723 = vrot.lane.b32.xlu0 %v25, 107
    %v1724 = vpop.permute.xlu0 %1723
    %1725 = vrot.lane.b32.xlu0 %v26, 107
    %v1726 = vpop.permute.xlu0 %1725
    %1727 = vrot.lane.b32.xlu0 %v27, 107
    %v1728 = vpop.permute.xlu0 %1727
    %1729 = vrot.lane.b32.xlu0 %v28, 107
    %v1730 = vpop.permute.xlu0 %1729
    %1731 = vrot.lane.b32.xlu0 %v29, 107
    %v1732 = vpop.permute.xlu0 %1731
    %1733 = vrot.lane.b32.xlu0 %v30, 107
    %v1734 = vpop.permute.xlu0 %1733
    %1735 = vrot.lane.b32.xlu0 %v31, 107
    %v1736 = vpop.permute.xlu0 %1735
    %1737 = vrot.lane.b32.xlu0 %v32, 107
    %v1738 = vpop.permute.xlu0 %1737
    %1739 = vrot.lane.b32.xlu0 %v33, 107
    %v1740 = vpop.permute.xlu0 %1739
    %v1757 = vsel %vm1677, %v340, %v1710
    %v1758 = vsel %vm1678, %v343, %v1712
    %v1759 = vsel %vm1679, %v346, %v1714
    %v1760 = vsel %vm1680, %v349, %v1716
    %v1761 = vsel %vm1681, %v352, %v1718
    %v1762 = vsel %vm1682, %v355, %v1720
    %v1763 = vsel %vm1683, %v358, %v1722
    %v1764 = vsel %vm1684, %v361, %v1724
    %v1765 = vsel %vm1685, %v364, %v1726
    %v1766 = vsel %vm1686, %v367, %v1728
    %v1767 = vsel %vm1687, %v370, %v1730
    %v1768 = vsel %vm1688, %v373, %v1732
    %v1769 = vsel %vm1689, %v376, %v1734
    %v1770 = vsel %vm1690, %v379, %v1736
    %v1771 = vsel %vm1691, %v382, %v1738
    %v1772 = vsel %vm1692, %v385, %v1740
    %v1773 = vsub.f32 %v286, %v1757
    %v1774 = vsub.f32 %v287, %v1758
    %v1775 = vsub.f32 %v288, %v1759
    %v1776 = vsub.f32 %v289, %v1760
    %v1777 = vsub.f32 %v290, %v1761
    %v1778 = vsub.f32 %v291, %v1762
    %v1779 = vsub.f32 %v292, %v1763
    %v1780 = vsub.f32 %v293, %v1764
    %v1781 = vsub.f32 %v294, %v1765
    %v1782 = vsub.f32 %v295, %v1766
    %v1783 = vsub.f32 %v296, %v1767
    %v1784 = vsub.f32 %v297, %v1768
    %v1785 = vsub.f32 %v298, %v1769
    %v1786 = vsub.f32 %v299, %v1770
    %v1787 = vsub.f32 %v300, %v1771
    %v1788 = vsub.f32 %v301, %v1772
    %vm1789 = vcmp.eq.s32.totalorder %v56, 21
    %vm1790 = vcmp.eq.s32.totalorder %v57, 21
    %v1791 = vsel %vm1789, 0.1, 1.0
    %v1792 = vsel %vm1790, 0.1, 1.0
    %v1795 = vlaneseq
    %v1796 = vshrl.u32 %v1795, 7
    %v1797 = vsub.s32 0, %v1796
    %v1798 = vrot.slane %v1791, %v1797
    %v1799 = vlaneseq
    %v1800 = vshrl.u32 %v1799, 7
    %v1801 = vsub.s32 0, %v1800
    %v1802 = vrot.slane %v1792, %v1801
    %1803 = vrot.lane.b32.xlu0 %v1798, 127
    %v1804 = vpop.permute.xlu0 %1803
    %1805 = vrot.lane.b32.xlu0 %v1802, 127
    %v1806 = vpop.permute.xlu0 %1805
    %v1809 = vsel %vm1677, %v1804, 0.1
    %v1810 = vsel %vm1678, %v1804, 0.1
    %v1811 = vsel %vm1679, %v1804, 0.1
    %v1812 = vsel %vm1680, %v1804, 0.1
    %v1813 = vsel %vm1681, %v1806, 0.1
    %v1814 = vsel %vm1682, %v1806, 0.1
    %v1815 = vsel %vm1683, %v1806, 0.1
    %v1816 = vsel %vm1684, %v1806, 0.1
    %v1817 = vsel %vm1685, %v1804, 0.1
    %v1818 = vsel %vm1686, %v1804, 0.1
    %v1819 = vsel %vm1687, %v1804, 0.1
    %v1820 = vsel %vm1688, %v1804, 0.1
    %v1821 = vsel %vm1689, %v1806, 0.1
    %v1822 = vsel %vm1690, %v1806, 0.1
    %v1823 = vsel %vm1691, %v1806, 0.1
    %v1824 = vsel %vm1692, %v1806, 0.1
    %v1825 = vsel %vm1492, %v1809, 0.0
    %v1826 = vsel %vm1493, %v1810, 0.0
    %v1827 = vsel %vm1494, %v1811, 0.0
    %v1828 = vsel %vm1495, %v1812, 0.0
    %v1829 = vsel %vm1496, %v1813, 0.0
    %v1830 = vsel %vm1497, %v1814, 0.0
    %v1831 = vsel %vm1498, %v1815, 0.0
    %v1832 = vsel %vm1499, %v1816, 0.0
    %v1833 = vsel %vm1492, %v1817, 0.0
    %v1834 = vsel %vm1493, %v1818, 0.0
    %v1835 = vsel %vm1494, %v1819, 0.0
    %v1836 = vsel %vm1495, %v1820, 0.0
    %v1837 = vsel %vm1496, %v1821, 0.0
    %v1838 = vsel %vm1497, %v1822, 0.0
    %v1839 = vsel %vm1498, %v1823, 0.0
    %v1840 = vsel %vm1499, %v1824, 0.0
    %v1841 = vmul.f32 %v1825, %v1773
    %v1842 = vmul.f32 %v1826, %v1774
    %v1843 = vmul.f32 %v1827, %v1775
    %v1844 = vmul.f32 %v1828, %v1776
    %v1845 = vmul.f32 %v1829, %v1777
    %v1846 = vmul.f32 %v1830, %v1778
    %v1847 = vmul.f32 %v1831, %v1779
    %v1848 = vmul.f32 %v1832, %v1780
    %v1849 = vmul.f32 %v1833, %v1781
    %v1850 = vmul.f32 %v1834, %v1782
    %v1851 = vmul.f32 %v1835, %v1783
    %v1852 = vmul.f32 %v1836, %v1784
    %v1853 = vmul.f32 %v1837, %v1785
    %v1854 = vmul.f32 %v1838, %v1786
    %v1855 = vmul.f32 %v1839, %v1787
    %v1856 = vmul.f32 %v1840, %v1788
    %v1857 = vsel %vm1516, %v1841, 0.0
    %v1858 = vsel %vm1516, %v1842, 0.0
    %v1859 = vadd.f32 %v1857, %v1858
    %v1860 = vsel %vm1516, %v1843, 0.0
    %v1861 = vadd.f32 %v1859, %v1860
    %v1862 = vsel %vm1516, %v1844, 0.0
    %v1863 = vadd.f32 %v1861, %v1862
    %v1864 = vrot.slane %v1863, 4
    %v1865 = vadd.f32 %v1863, %v1864
    %v1866 = vrot.slane %v1865, 2
    %v1867 = vadd.f32 %v1865, %v1866
    %v1868 = vrot.slane %v1867, 1
    %v1869 = vadd.f32 %v1867, %v1868
    %v1870 = vsel %vm1516, %v1845, 0.0
    %v1871 = vsel %vm1516, %v1846, 0.0
    %v1872 = vadd.f32 %v1870, %v1871
    %v1873 = vsel %vm1516, %v1847, 0.0
    %v1874 = vadd.f32 %v1872, %v1873
    %v1875 = vsel %vm1516, %v1848, 0.0
    %v1876 = vadd.f32 %v1874, %v1875
    %v1877 = vrot.slane %v1876, 4
    %v1878 = vadd.f32 %v1876, %v1877
    %v1879 = vrot.slane %v1878, 2
    %v1880 = vadd.f32 %v1878, %v1879
    %v1881 = vrot.slane %v1880, 1
    %v1882 = vadd.f32 %v1880, %v1881
    %v1883 = vsel %vm1516, %v1849, 0.0
    %v1884 = vsel %vm1516, %v1850, 0.0
    %v1885 = vadd.f32 %v1883, %v1884
    %v1886 = vsel %vm1516, %v1851, 0.0
    %v1887 = vadd.f32 %v1885, %v1886
    %v1888 = vsel %vm1516, %v1852, 0.0
    %v1889 = vadd.f32 %v1887, %v1888
    %v1890 = vrot.slane %v1889, 4
    %v1891 = vadd.f32 %v1889, %v1890
    %v1892 = vrot.slane %v1891, 2
    %v1893 = vadd.f32 %v1891, %v1892
    %v1894 = vrot.slane %v1893, 1
    %v1895 = vadd.f32 %v1893, %v1894
    %v1896 = vsel %vm1516, %v1853, 0.0
    %v1897 = vsel %vm1516, %v1854, 0.0
    %v1898 = vadd.f32 %v1896, %v1897
    %v1899 = vsel %vm1516, %v1855, 0.0
    %v1900 = vadd.f32 %v1898, %v1899
    %v1901 = vsel %vm1516, %v1856, 0.0
    %v1902 = vadd.f32 %v1900, %v1901
    %v1903 = vrot.slane %v1902, 4
    %v1904 = vadd.f32 %v1902, %v1903
    %v1905 = vrot.slane %v1904, 2
    %v1906 = vadd.f32 %v1904, %v1905
    %v1907 = vrot.slane %v1906, 1
    %v1908 = vadd.f32 %v1906, %v1907
    %v1909 = vsel %vm1516, %v1869, 0.0
    %v1910 = vsel %vm1516, %v1882, 0.0
    %v1911 = vadd.f32 %v1909, %v1910
    %v1912 = vsel %vm1516, %v1895, 0.0
    %v1913 = vsel %vm1516, %v1908, 0.0
    %v1914 = vadd.f32 %v1912, %v1913
    %v1915 = vsel %vm1516, %v1825, 0.0
    %v1916 = vsel %vm1516, %v1826, 0.0
    %v1917 = vadd.f32 %v1915, %v1916
    %v1918 = vsel %vm1516, %v1827, 0.0
    %v1919 = vadd.f32 %v1917, %v1918
    %v1920 = vsel %vm1516, %v1828, 0.0
    %v1921 = vadd.f32 %v1919, %v1920
    %v1922 = vrot.slane %v1921, 4
    %v1923 = vadd.f32 %v1921, %v1922
    %v1924 = vrot.slane %v1923, 2
    %v1925 = vadd.f32 %v1923, %v1924
    %v1926 = vrot.slane %v1925, 1
    %v1927 = vadd.f32 %v1925, %v1926
    %v1928 = vsel %vm1516, %v1829, 0.0
    %v1929 = vsel %vm1516, %v1830, 0.0
    %v1930 = vadd.f32 %v1928, %v1929
    %v1931 = vsel %vm1516, %v1831, 0.0
    %v1932 = vadd.f32 %v1930, %v1931
    %v1933 = vsel %vm1516, %v1832, 0.0
    %v1934 = vadd.f32 %v1932, %v1933
    %v1935 = vrot.slane %v1934, 4
    %v1936 = vadd.f32 %v1934, %v1935
    %v1937 = vrot.slane %v1936, 2
    %v1938 = vadd.f32 %v1936, %v1937
    %v1939 = vrot.slane %v1938, 1
    %v1940 = vadd.f32 %v1938, %v1939
    %v1941 = vsel %vm1516, %v1833, 0.0
    %v1942 = vsel %vm1516, %v1834, 0.0
    %v1943 = vadd.f32 %v1941, %v1942
    %v1944 = vsel %vm1516, %v1835, 0.0
    %v1945 = vadd.f32 %v1943, %v1944
    %v1946 = vsel %vm1516, %v1836, 0.0
    %v1947 = vadd.f32 %v1945, %v1946
    %v1948 = vrot.slane %v1947, 4
    %v1949 = vadd.f32 %v1947, %v1948
    %v1950 = vrot.slane %v1949, 2
    %v1951 = vadd.f32 %v1949, %v1950
    %v1952 = vrot.slane %v1951, 1
    %v1953 = vadd.f32 %v1951, %v1952
    %v1954 = vsel %vm1516, %v1837, 0.0
    %v1955 = vsel %vm1516, %v1838, 0.0
    %v1956 = vadd.f32 %v1954, %v1955
    %v1957 = vsel %vm1516, %v1839, 0.0
    %v1958 = vadd.f32 %v1956, %v1957
    %v1959 = vsel %vm1516, %v1840, 0.0
    %v1960 = vadd.f32 %v1958, %v1959
    %v1961 = vrot.slane %v1960, 4
    %v1962 = vadd.f32 %v1960, %v1961
    %v1963 = vrot.slane %v1962, 2
    %v1964 = vadd.f32 %v1962, %v1963
    %v1965 = vrot.slane %v1964, 1
    %v1966 = vadd.f32 %v1964, %v1965
    %v1967 = vsel %vm1516, %v1927, 0.0
    %v1968 = vsel %vm1516, %v1940, 0.0
    %v1969 = vadd.f32 %v1967, %v1968
    %v1970 = vsel %vm1516, %v1953, 0.0
    %v1971 = vsel %vm1516, %v1966, 0.0
    %v1972 = vadd.f32 %v1970, %v1971
    %v1973 = vrcp.pop %v1969
    %v1974 = vmul.f32 %v1911, %v1973
    %v1975 = vrcp.pop %v1972
    %v1976 = vmul.f32 %v1914, %v1975
    %vm1977 = vcmask 8192
    %v1978 = vsel %vm1977, %v50, -inf
    %1979 = vmax.xlane.f32.xlu0 %v1978
    %v1980 = vpop.xlane.xlu0 %1979
    %v1981 = vsel %vm1977, %v51, -inf
    %1982 = vmax.xlane.f32.xlu0 %v1981
    %v1983 = vpop.xlane.xlu0 %1982
    %v1984 = vsel %vm1977, %v52, -inf
    %1985 = vmax.xlane.f32.xlu0 %v1984
    %v1986 = vpop.xlane.xlu0 %1985
    %v1987 = vsel %vm1977, %v53, -inf
    %1988 = vmax.xlane.f32.xlu0 %v1987
    %v1989 = vpop.xlane.xlu0 %1988
    %v1990 = vsub.f32 %v50, %v1980
    %v1991 = vsub.f32 %v51, %v1983
    %v1992 = vsub.f32 %v52, %v1986
    %v1993 = vsub.f32 %v53, %v1989
    %v1994 = vmul.f32 %v1990, 1.442695
    %v1995 = vpow.pop %v1994
    %v1996 = vmul.f32 %v1991, 1.442695
    %v1997 = vpow.pop %v1996
    %v1998 = vmul.f32 %v1992, 1.442695
    %v1999 = vpow.pop %v1998
    %v2000 = vmul.f32 %v1993, 1.442695
    %v2001 = vpow.pop %v2000
    %v2002 = vsel %vm1977, %v1995, 0.0
    %2003 = vadd.xlane.f32.xlu0 %v2002
    %v2004 = vpop.xlane.xlu0 %2003
    %v2005 = vsel %vm1977, %v1997, 0.0
    %2006 = vadd.xlane.f32.xlu0 %v2005
    %v2007 = vpop.xlane.xlu0 %2006
    %v2008 = vsel %vm1977, %v1999, 0.0
    %2009 = vadd.xlane.f32.xlu0 %v2008
    %v2010 = vpop.xlane.xlu0 %2009
    %v2011 = vsel %vm1977, %v2001, 0.0
    %2012 = vadd.xlane.f32.xlu0 %v2011
    %v2013 = vpop.xlane.xlu0 %2012
    %v2014 = vlog2.pop %v2004
    %v2015 = vmul.f32 %v2014, 0.6931472
    %v2016 = vlog2.pop %v2007
    %v2017 = vmul.f32 %v2016, 0.6931472
    %v2018 = vlog2.pop %v2010
    %v2019 = vmul.f32 %v2018, 0.6931472
    %v2020 = vlog2.pop %v2013
    %v2021 = vmul.f32 %v2020, 0.6931472
    %v2022 = vadd.f32 %v1980, %v2015
    %v2023 = vadd.f32 %v1983, %v2017
    %v2024 = vadd.f32 %v1986, %v2019
    %v2025 = vadd.f32 %v1989, %v2021
    %2026 = vset.pattern.permute.xlu0 2
    %2027 = vperm.xlu0 %2026, %v56
    %v2028 = vpop.permute.xlu0 %2027
    %v2029 = vlaneseq
    %v2030 = vshrl.u32 %v2029, 7
    %v2031 = vsub.s32 0, %v2030
    %v2032 = vrot.slane %v2028, %v2031
    %2033 = vset.pattern.permute.xlu0 2
    %2034 = vperm.xlu0 %2033, %v57
    %v2035 = vpop.permute.xlu0 %2034
    %v2036 = vlaneseq
    %v2037 = vshrl.u32 %v2036, 7
    %v2038 = vsub.s32 0, %v2037
    %v2039 = vrot.slane %v2035, %v2038
    %vm2040 = vcmp.eq.s32.totalorder %v64, %v2032
    %vm2041 = vcmp.eq.s32.totalorder %v64, %v2039
    %v2042 = vsel %vm2040, 1, 0
    %v2043 = vsel %vm2041, 1, 0
    %vm2044 = vcmp.eq.s32.totalorder %v2042, 1
    %vm2045 = vcmp.eq.s32.totalorder %v2043, 1
    %v2046 = vsel %vm2044, %v50, 0.0
    %v2047 = vsel %vm2045, %v51, 0.0
    %v2048 = vsel %vm2044, %v52, 0.0
    %v2049 = vsel %vm2045, %v53, 0.0
    %v2050 = vsel %vm1977, %v2046, 0.0
    %2051 = vadd.xlane.f32.xlu0 %v2050
    %v2052 = vpop.xlane.xlu0 %2051
    %v2053 = vsel %vm1977, %v2047, 0.0
    %2054 = vadd.xlane.f32.xlu0 %v2053
    %v2055 = vpop.xlane.xlu0 %2054
    %v2056 = vsel %vm1977, %v2048, 0.0
    %2057 = vadd.xlane.f32.xlu0 %v2056
    %v2058 = vpop.xlane.xlu0 %2057
    %v2059 = vsel %vm1977, %v2049, 0.0
    %2060 = vadd.xlane.f32.xlu0 %v2059
    %v2061 = vpop.xlane.xlu0 %2060
    %v2062 = vsub.f32 %v2022, %v2052
    %v2063 = vsub.f32 %v2023, %v2055
    %v2064 = vsub.f32 %v2024, %v2058
    %v2065 = vsub.f32 %v2025, %v2061
    %vm2066 = vcmask 1040384
    %v2067 = vsel %vm2066, %v2062, 0.0
    %v2068 = vsel %vm2066, %v2063, 0.0
    %v2069 = vadd.f32 %v2067, %v2068
    %v2070 = vsel %vm2066, %v2064, 0.0
    %v2071 = vsel %vm2066, %v2065, 0.0
    %v2072 = vadd.f32 %v2070, %v2071
    %v2073 = vmul.f32 %v2069, 0.5
    %v2074 = vmul.f32 %v2072, 0.5
    %vm2075 = vcmp.gt.f32.partialorder %v18, %v340
    %vm2076 = vcmp.gt.f32.partialorder %v19, %v343
    %vm2077 = vcmp.gt.f32.partialorder %v20, %v346
    %vm2078 = vcmp.gt.f32.partialorder %v21, %v349
    %vm2079 = vcmp.gt.f32.partialorder %v22, %v352
    %vm2080 = vcmp.gt.f32.partialorder %v23, %v355
    %vm2081 = vcmp.gt.f32.partialorder %v24, %v358
    %vm2082 = vcmp.gt.f32.partialorder %v25, %v361
    %vm2083 = vcmp.eq.f32.partialorder %v18, %v340
    %vm2084 = vcmp.eq.f32.partialorder %v19, %v343
    %vm2085 = vcmp.eq.f32.partialorder %v20, %v346
    %vm2086 = vcmp.eq.f32.partialorder %v21, %v349
    %vm2087 = vcmp.eq.f32.partialorder %v22, %v352
    %vm2088 = vcmp.eq.f32.partialorder %v23, %v355
    %vm2089 = vcmp.eq.f32.partialorder %v24, %v358
    %vm2090 = vcmp.eq.f32.partialorder %v25, %v361
    %vm2091 = vcmp.lt.s32.totalorder %v64, %v308
    %vm2092 = vcmp.lt.s32.totalorder %v64, %v315
    %v2093 = vsel %vm2091, 1, 0
    %v2094 = vsel %vm2092, 1, 0
    %vm2095 = vcmp.eq.s32.totalorder %v2093, 1
    %vm2096 = vcmp.eq.s32.totalorder %v2094, 1
    %vm2097 = vmand %vm2083, %vm2095
    %vm2098 = vmand %vm2084, %vm2095
    %vm2099 = vmand %vm2085, %vm2095
    %vm2100 = vmand %vm2086, %vm2095
    %vm2101 = vmand %vm2087, %vm2096
    %vm2102 = vmand %vm2088, %vm2096
    %vm2103 = vmand %vm2089, %vm2096
    %vm2104 = vmand %vm2090, %vm2096
    %vm2105 = vmor %vm2075, %vm2097
    %vm2106 = vmor %vm2076, %vm2098
    %vm2107 = vmor %vm2077, %vm2099
    %vm2108 = vmor %vm2078, %vm2100
    %vm2109 = vmor %vm2079, %vm2101
    %vm2110 = vmor %vm2080, %vm2102
    %vm2111 = vmor %vm2081, %vm2103
    %vm2112 = vmor %vm2082, %vm2104
    %v2113 = vsel %vm1677, 1, 0
    %v2114 = vsel %vm1678, 1, 0
    %v2115 = vsel %vm1679, 1, 0
    %v2116 = vsel %vm1680, 1, 0
    %v2117 = vsel %vm1681, 1, 0
    %v2118 = vsel %vm1682, 1, 0
    %v2119 = vsel %vm1683, 1, 0
    %v2120 = vsel %vm1684, 1, 0
    %2121 = vset.pattern.permute.xlu0 0
    %2122 = vperm.xlu0 %2121, %v2113
    %v2123 = vpop.permute.xlu0 %2122
    %2124 = vset.pattern.permute.xlu0 0
    %2125 = vperm.xlu0 %2124, %v2114
    %v2126 = vpop.permute.xlu0 %2125
    %2127 = vset.pattern.permute.xlu0 0
    %2128 = vperm.xlu0 %2127, %v2115
    %v2129 = vpop.permute.xlu0 %2128
    %2130 = vset.pattern.permute.xlu0 0
    %2131 = vperm.xlu0 %2130, %v2116
    %v2132 = vpop.permute.xlu0 %2131
    %2133 = vset.pattern.permute.xlu0 0
    %2134 = vperm.xlu0 %2133, %v2117
    %v2135 = vpop.permute.xlu0 %2134
    %2136 = vset.pattern.permute.xlu0 0
    %2137 = vperm.xlu0 %2136, %v2118
    %v2138 = vpop.permute.xlu0 %2137
    %2139 = vset.pattern.permute.xlu0 0
    %2140 = vperm.xlu0 %2139, %v2119
    %v2141 = vpop.permute.xlu0 %2140
    %2142 = vset.pattern.permute.xlu0 0
    %2143 = vperm.xlu0 %2142, %v2120
    %v2144 = vpop.permute.xlu0 %2143
    %vm2145 = vcmp.eq.s32.totalorder %v2123, 1
    %vm2146 = vcmp.eq.s32.totalorder %v2126, 1
    %vm2147 = vcmp.eq.s32.totalorder %v2129, 1
    %vm2148 = vcmp.eq.s32.totalorder %v2132, 1
    %vm2149 = vcmp.eq.s32.totalorder %v2135, 1
    %vm2150 = vcmp.eq.s32.totalorder %v2138, 1
    %vm2151 = vcmp.eq.s32.totalorder %v2141, 1
    %vm2152 = vcmp.eq.s32.totalorder %v2144, 1
    %vm2153 = vmand %vm2145, %vm2105
    %vm2154 = vmand %vm2146, %vm2106
    %vm2155 = vmand %vm2147, %vm2107
    %vm2156 = vmand %vm2148, %vm2108
    %vm2157 = vmand %vm2149, %vm2109
    %vm2158 = vmand %vm2150, %vm2110
    %vm2159 = vmand %vm2151, %vm2111
    %vm2160 = vmand %vm2152, %vm2112
    %v2161 = vsel %vm2153, 1, 0
    %v2162 = vsel %vm2154, 1, 0
    %v2163 = vsel %vm2155, 1, 0
    %v2164 = vsel %vm2156, 1, 0
    %v2165 = vsel %vm2157, 1, 0
    %v2166 = vsel %vm2158, 1, 0
    %v2167 = vsel %vm2159, 1, 0
    %v2168 = vsel %vm2160, 1, 0
    %v2169 = vcvt.s32.f32 %v2161
    %v2170 = vcvt.s32.f32 %v2162
    %v2171 = vcvt.s32.f32 %v2163
    %v2172 = vcvt.s32.f32 %v2164
    %v2173 = vcvt.s32.f32 %v2165
    %v2174 = vcvt.s32.f32 %v2166
    %v2175 = vcvt.s32.f32 %v2167
    %v2176 = vcvt.s32.f32 %v2168
    %v2177 = vsel %vm109, %v2169, -inf
    %2178 = vmax.xlane.f32.xlu0 %v2177
    %v2179 = vpop.xlane.xlu0 %2178
    %v2180 = vsel %vm109, %v2170, -inf
    %2181 = vmax.xlane.f32.xlu0 %v2180
    %v2182 = vpop.xlane.xlu0 %2181
    %v2183 = vsel %vm109, %v2171, -inf
    %2184 = vmax.xlane.f32.xlu0 %v2183
    %v2185 = vpop.xlane.xlu0 %2184
    %v2186 = vsel %vm109, %v2172, -inf
    %2187 = vmax.xlane.f32.xlu0 %v2186
    %v2188 = vpop.xlane.xlu0 %2187
    %v2189 = vsel %vm109, %v2173, -inf
    %2190 = vmax.xlane.f32.xlu0 %v2189
    %v2191 = vpop.xlane.xlu0 %2190
    %v2192 = vsel %vm109, %v2174, -inf
    %2193 = vmax.xlane.f32.xlu0 %v2192
    %v2194 = vpop.xlane.xlu0 %2193
    %v2195 = vsel %vm109, %v2175, -inf
    %2196 = vmax.xlane.f32.xlu0 %v2195
    %v2197 = vpop.xlane.xlu0 %2196
    %v2198 = vsel %vm109, %v2176, -inf
    %2199 = vmax.xlane.f32.xlu0 %v2198
    %v2200 = vpop.xlane.xlu0 %2199
    %v2201 = vmax.f32 %v2179, %v2185
    %v2202 = vmax.f32 %v2182, %v2188
    %v2203 = vmax.f32 %v2201, %v2202
    %v2204 = vrot.slane %v2203, 4
    %v2205 = vmax.f32 %v2203, %v2204
    %v2206 = vrot.slane %v2205, 2
    %v2207 = vmax.f32 %v2205, %v2206
    %v2208 = vrot.slane %v2207, 1
    %v2209 = vmax.f32 %v2207, %v2208
    %v2210 = vmax.f32 %v2191, %v2197
    %v2211 = vmax.f32 %v2194, %v2200
    %v2212 = vmax.f32 %v2210, %v2211
    %v2213 = vrot.slane %v2212, 4
    %v2214 = vmax.f32 %v2212, %v2213
    %v2215 = vrot.slane %v2214, 2
    %v2216 = vmax.f32 %v2214, %v2215
    %v2217 = vrot.slane %v2216, 1
    %v2218 = vmax.f32 %v2216, %v2217
    %v2219 = vadd.f32 %v2209, %v2218
    %v2220 = vmul.f32 %v2219, 50.0
    %v2221 = vadd.f32 %v2220, 0.0
    %vm2222 = vcmp.lt.s32.totalorder %v64, 21
    %v2223 = vsel %vm2222, 1, 0
    %vm2224 = vcmp.eq.s32.totalorder %v2223, 1
    %v2225 = vsel %vm2224, %v18, -1e+30
    %v2226 = vsel %vm2224, %v19, -1e+30
    %v2227 = vsel %vm2224, %v20, -1e+30
    %v2228 = vsel %vm2224, %v21, -1e+30
    %v2229 = vsel %vm2224, %v22, -1e+30
    %v2230 = vsel %vm2224, %v23, -1e+30
    %v2231 = vsel %vm2224, %v24, -1e+30
    %v2232 = vsel %vm2224, %v25, -1e+30
    %v2233 = vsel %vm2224, %v26, -1e+30
    %v2234 = vsel %vm2224, %v27, -1e+30
    %v2235 = vsel %vm2224, %v28, -1e+30
    %v2236 = vsel %vm2224, %v29, -1e+30
    %v2237 = vsel %vm2224, %v30, -1e+30
    %v2238 = vsel %vm2224, %v31, -1e+30
    %v2239 = vsel %vm2224, %v32, -1e+30
    %v2240 = vsel %vm2224, %v33, -1e+30
    %v2241 = vsel %vm109, %v2225, -inf
    %2242 = vmax.xlane.f32.xlu0 %v2241
    %v2243 = vpop.xlane.xlu0 %2242
    %v2244 = vsel %vm109, %v2226, -inf
    %2245 = vmax.xlane.f32.xlu0 %v2244
    %v2246 = vpop.xlane.xlu0 %2245
    %v2247 = vsel %vm109, %v2227, -inf
    %2248 = vmax.xlane.f32.xlu0 %v2247
    %v2249 = vpop.xlane.xlu0 %2248
    %v2250 = vsel %vm109, %v2228, -inf
    %2251 = vmax.xlane.f32.xlu0 %v2250
    %v2252 = vpop.xlane.xlu0 %2251
    %v2253 = vsel %vm109, %v2229, -inf
    %2254 = vmax.xlane.f32.xlu0 %v2253
    %v2255 = vpop.xlane.xlu0 %2254
    %v2256 = vsel %vm109, %v2230, -inf
    %2257 = vmax.xlane.f32.xlu0 %v2256
    %v2258 = vpop.xlane.xlu0 %2257
    %v2259 = vsel %vm109, %v2231, -inf
    %2260 = vmax.xlane.f32.xlu0 %v2259
    %v2261 = vpop.xlane.xlu0 %2260
    %v2262 = vsel %vm109, %v2232, -inf
    %2263 = vmax.xlane.f32.xlu0 %v2262
    %v2264 = vpop.xlane.xlu0 %2263
    %v2265 = vsel %vm109, %v2233, -inf
    %2266 = vmax.xlane.f32.xlu0 %v2265
    %v2267 = vpop.xlane.xlu0 %2266
    %v2268 = vsel %vm109, %v2234, -inf
    %2269 = vmax.xlane.f32.xlu0 %v2268
    %v2270 = vpop.xlane.xlu0 %2269
    %v2271 = vsel %vm109, %v2235, -inf
    %2272 = vmax.xlane.f32.xlu0 %v2271
    %v2273 = vpop.xlane.xlu0 %2272
    %v2274 = vsel %vm109, %v2236, -inf
    %2275 = vmax.xlane.f32.xlu0 %v2274
    %v2276 = vpop.xlane.xlu0 %2275
    %v2277 = vsel %vm109, %v2237, -inf
    %2278 = vmax.xlane.f32.xlu0 %v2277
    %v2279 = vpop.xlane.xlu0 %2278
    %v2280 = vsel %vm109, %v2238, -inf
    %2281 = vmax.xlane.f32.xlu0 %v2280
    %v2282 = vpop.xlane.xlu0 %2281
    %v2283 = vsel %vm109, %v2239, -inf
    %2284 = vmax.xlane.f32.xlu0 %v2283
    %v2285 = vpop.xlane.xlu0 %2284
    %v2286 = vsel %vm109, %v2240, -inf
    %2287 = vmax.xlane.f32.xlu0 %v2286
    %v2288 = vpop.xlane.xlu0 %2287
    %vm2289 = vcmp.ge.f32.partialorder %v2243, %v18
    %vm2290 = vcmp.ge.f32.partialorder %v2246, %v19
    %vm2291 = vcmp.ge.f32.partialorder %v2249, %v20
    %vm2292 = vcmp.ge.f32.partialorder %v2252, %v21
    %vm2293 = vcmp.ge.f32.partialorder %v2255, %v22
    %vm2294 = vcmp.ge.f32.partialorder %v2258, %v23
    %vm2295 = vcmp.ge.f32.partialorder %v2261, %v24
    %vm2296 = vcmp.ge.f32.partialorder %v2264, %v25
    %vm2297 = vcmp.ge.f32.partialorder %v2267, %v26
    %vm2298 = vcmp.ge.f32.partialorder %v2270, %v27
    %vm2299 = vcmp.ge.f32.partialorder %v2273, %v28
    %vm2300 = vcmp.ge.f32.partialorder %v2276, %v29
    %vm2301 = vcmp.ge.f32.partialorder %v2279, %v30
    %vm2302 = vcmp.ge.f32.partialorder %v2282, %v31
    %vm2303 = vcmp.ge.f32.partialorder %v2285, %v32
    %vm2304 = vcmp.ge.f32.partialorder %v2288, %v33
    %v2305 = vsel %vm2289, 1, 0
    %v2306 = vsel %vm2290, 1, 0
    %v2307 = vsel %vm2291, 1, 0
    %v2308 = vsel %vm2292, 1, 0
    %v2309 = vsel %vm2293, 1, 0
    %v2310 = vsel %vm2294, 1, 0
    %v2311 = vsel %vm2295, 1, 0
    %v2312 = vsel %vm2296, 1, 0
    %v2313 = vsel %vm2297, 1, 0
    %v2314 = vsel %vm2298, 1, 0
    %v2315 = vsel %vm2299, 1, 0
    %v2316 = vsel %vm2300, 1, 0
    %v2317 = vsel %vm2301, 1, 0
    %v2318 = vsel %vm2302, 1, 0
    %v2319 = vsel %vm2303, 1, 0
    %v2320 = vsel %vm2304, 1, 0
    %2321 = vrot.lane.b32.xlu0 %v2305, 107
    %v2322 = vpop.permute.xlu0 %2321
    %2323 = vrot.lane.b32.xlu0 %v2306, 107
    %v2324 = vpop.permute.xlu0 %2323
    %2325 = vrot.lane.b32.xlu0 %v2307, 107
    %v2326 = vpop.permute.xlu0 %2325
    %2327 = vrot.lane.b32.xlu0 %v2308, 107
    %v2328 = vpop.permute.xlu0 %2327
    %2329 = vrot.lane.b32.xlu0 %v2309, 107
    %v2330 = vpop.permute.xlu0 %2329
    %2331 = vrot.lane.b32.xlu0 %v2310, 107
    %v2332 = vpop.permute.xlu0 %2331
    %2333 = vrot.lane.b32.xlu0 %v2311, 107
    %v2334 = vpop.permute.xlu0 %2333
    %2335 = vrot.lane.b32.xlu0 %v2312, 107
    %v2336 = vpop.permute.xlu0 %2335
    %2337 = vrot.lane.b32.xlu0 %v2313, 107
    %v2338 = vpop.permute.xlu0 %2337
    %2339 = vrot.lane.b32.xlu0 %v2314, 107
    %v2340 = vpop.permute.xlu0 %2339
    %2341 = vrot.lane.b32.xlu0 %v2315, 107
    %v2342 = vpop.permute.xlu0 %2341
    %2343 = vrot.lane.b32.xlu0 %v2316, 107
    %v2344 = vpop.permute.xlu0 %2343
    %2345 = vrot.lane.b32.xlu0 %v2317, 107
    %v2346 = vpop.permute.xlu0 %2345
    %2347 = vrot.lane.b32.xlu0 %v2318, 107
    %v2348 = vpop.permute.xlu0 %2347
    %2349 = vrot.lane.b32.xlu0 %v2319, 107
    %v2350 = vpop.permute.xlu0 %2349
    %2351 = vrot.lane.b32.xlu0 %v2320, 107
    %v2352 = vpop.permute.xlu0 %2351
    %vm2353 = vcmp.ne.s32.totalorder %v2322, 0
    %vm2354 = vcmp.ne.s32.totalorder %v2324, 0
    %vm2355 = vcmp.ne.s32.totalorder %v2326, 0
    %vm2356 = vcmp.ne.s32.totalorder %v2328, 0
    %vm2357 = vcmp.ne.s32.totalorder %v2330, 0
    %vm2358 = vcmp.ne.s32.totalorder %v2332, 0
    %vm2359 = vcmp.ne.s32.totalorder %v2334, 0
    %vm2360 = vcmp.ne.s32.totalorder %v2336, 0
    %vm2361 = vcmp.ne.s32.totalorder %v2338, 0
    %vm2362 = vcmp.ne.s32.totalorder %v2340, 0
    %vm2363 = vcmp.ne.s32.totalorder %v2342, 0
    %vm2364 = vcmp.ne.s32.totalorder %v2344, 0
    %vm2365 = vcmp.ne.s32.totalorder %v2346, 0
    %vm2366 = vcmp.ne.s32.totalorder %v2348, 0
    %vm2367 = vcmp.ne.s32.totalorder %v2350, 0
    %vm2368 = vcmp.ne.s32.totalorder %v2352, 0
    %vm2369 = vmand %vm1492, %vm2353
    %vm2370 = vmand %vm1493, %vm2354
    %vm2371 = vmand %vm1494, %vm2355
    %vm2372 = vmand %vm1495, %vm2356
    %vm2373 = vmand %vm1496, %vm2357
    %vm2374 = vmand %vm1497, %vm2358
    %vm2375 = vmand %vm1498, %vm2359
    %vm2376 = vmand %vm1499, %vm2360
    %vm2377 = vmand %vm1492, %vm2361
    %vm2378 = vmand %vm1493, %vm2362
    %vm2379 = vmand %vm1494, %vm2363
    %vm2380 = vmand %vm1495, %vm2364
    %vm2381 = vmand %vm1496, %vm2365
    %vm2382 = vmand %vm1497, %vm2366
    %vm2383 = vmand %vm1498, %vm2367
    %vm2384 = vmand %vm1499, %vm2368
    %v2385 = vsel %vm2369, 1.0, 0.0
    %v2386 = vsel %vm2370, 1.0, 0.0
    %v2387 = vsel %vm2371, 1.0, 0.0
    %v2388 = vsel %vm2372, 1.0, 0.0
    %v2389 = vsel %vm2373, 1.0, 0.0
    %v2390 = vsel %vm2374, 1.0, 0.0
    %v2391 = vsel %vm2375, 1.0, 0.0
    %v2392 = vsel %vm2376, 1.0, 0.0
    %v2393 = vsel %vm2377, 1.0, 0.0
    %v2394 = vsel %vm2378, 1.0, 0.0
    %v2395 = vsel %vm2379, 1.0, 0.0
    %v2396 = vsel %vm2380, 1.0, 0.0
    %v2397 = vsel %vm2381, 1.0, 0.0
    %v2398 = vsel %vm2382, 1.0, 0.0
    %v2399 = vsel %vm2383, 1.0, 0.0
    %v2400 = vsel %vm2384, 1.0, 0.0
    %v2401 = vsel %vm1516, %v2385, 0.0
    %v2402 = vsel %vm1516, %v2386, 0.0
    %v2403 = vadd.f32 %v2401, %v2402
    %v2404 = vsel %vm1516, %v2387, 0.0
    %v2405 = vadd.f32 %v2403, %v2404
    %v2406 = vsel %vm1516, %v2388, 0.0
    %v2407 = vadd.f32 %v2405, %v2406
    %v2408 = vrot.slane %v2407, 4
    %v2409 = vadd.f32 %v2407, %v2408
    %v2410 = vrot.slane %v2409, 2
    %v2411 = vadd.f32 %v2409, %v2410
    %v2412 = vrot.slane %v2411, 1
    %v2413 = vadd.f32 %v2411, %v2412
    %v2414 = vsel %vm1516, %v2389, 0.0
    %v2415 = vsel %vm1516, %v2390, 0.0
    %v2416 = vadd.f32 %v2414, %v2415
    %v2417 = vsel %vm1516, %v2391, 0.0
    %v2418 = vadd.f32 %v2416, %v2417
    %v2419 = vsel %vm1516, %v2392, 0.0
    %v2420 = vadd.f32 %v2418, %v2419
    %v2421 = vrot.slane %v2420, 4
    %v2422 = vadd.f32 %v2420, %v2421
    %v2423 = vrot.slane %v2422, 2
    %v2424 = vadd.f32 %v2422, %v2423
    %v2425 = vrot.slane %v2424, 1
    %v2426 = vadd.f32 %v2424, %v2425
    %v2427 = vsel %vm1516, %v2393, 0.0
    %v2428 = vsel %vm1516, %v2394, 0.0
    %v2429 = vadd.f32 %v2427, %v2428
    %v2430 = vsel %vm1516, %v2395, 0.0
    %v2431 = vadd.f32 %v2429, %v2430
    %v2432 = vsel %vm1516, %v2396, 0.0
    %v2433 = vadd.f32 %v2431, %v2432
    %v2434 = vrot.slane %v2433, 4
    %v2435 = vadd.f32 %v2433, %v2434
    %v2436 = vrot.slane %v2435, 2
    %v2437 = vadd.f32 %v2435, %v2436
    %v2438 = vrot.slane %v2437, 1
    %v2439 = vadd.f32 %v2437, %v2438
    %v2440 = vsel %vm1516, %v2397, 0.0
    %v2441 = vsel %vm1516, %v2398, 0.0
    %v2442 = vadd.f32 %v2440, %v2441
    %v2443 = vsel %vm1516, %v2399, 0.0
    %v2444 = vadd.f32 %v2442, %v2443
    %v2445 = vsel %vm1516, %v2400, 0.0
    %v2446 = vadd.f32 %v2444, %v2445
    %v2447 = vrot.slane %v2446, 4
    %v2448 = vadd.f32 %v2446, %v2447
    %v2449 = vrot.slane %v2448, 2
    %v2450 = vadd.f32 %v2448, %v2449
    %v2451 = vrot.slane %v2450, 1
    %v2452 = vadd.f32 %v2450, %v2451
    %2453 = vrot.lane.b32.xlu0 %v455, 125
    %v2454 = vpop.permute.xlu0 %2453
    %2455 = vrot.lane.b32.xlu0 %v459, 125
    %v2456 = vpop.permute.xlu0 %2455
    %v2459 = vsub.f32 %v2413, %v2454
    %v2460 = vsub.f32 %v2426, %v2456
    %v2461 = vsub.f32 %v2439, %v2454
    %v2462 = vsub.f32 %v2452, %v2456
    %v2463 = vand.u32 2147483647, %v2459
    %v2464 = vand.u32 2147483647, %v2460
    %v2465 = vand.u32 2147483647, %v2461
    %v2466 = vand.u32 2147483647, %v2462
    %vm2467 = vcmask 0
    %v2468 = vsel %vm2467, %v2463, 0.0
    %v2469 = vsel %vm2467, %v2464, 0.0
    %v2470 = vadd.f32 %v2468, %v2469
    %v2471 = vsel %vm2467, %v2465, 0.0
    %v2472 = vsel %vm2467, %v2466, 0.0
    %v2473 = vadd.f32 %v2471, %v2472
    %v2474 = vmul.f32 %v2470, 0.5
    %v2475 = vmul.f32 %v2473, 0.5
    %v2476 = vsel %vm1677, %v34, 0.0
    %v2477 = vsel %vm1678, %v35, 0.0
    %v2478 = vsel %vm1679, %v36, 0.0
    %v2479 = vsel %vm1680, %v37, 0.0
    %v2480 = vsel %vm1681, %v38, 0.0
    %v2481 = vsel %vm1682, %v39, 0.0
    %v2482 = vsel %vm1683, %v40, 0.0
    %v2483 = vsel %vm1684, %v41, 0.0
    %v2484 = vsel %vm1685, %v42, 0.0
    %v2485 = vsel %vm1686, %v43, 0.0
    %v2486 = vsel %vm1687, %v44, 0.0
    %v2487 = vsel %vm1688, %v45, 0.0
    %v2488 = vsel %vm1689, %v46, 0.0
    %v2489 = vsel %vm1690, %v47, 0.0
    %v2490 = vsel %vm1691, %v48, 0.0
    %v2491 = vsel %vm1692, %v49, 0.0
    %v2492 = vsel %vm1516, %v2476, 0.0
    %v2493 = vsel %vm1516, %v2477, 0.0
    %v2494 = vadd.f32 %v2492, %v2493
    %v2495 = vsel %vm1516, %v2478, 0.0
    %v2496 = vadd.f32 %v2494, %v2495
    %v2497 = vsel %vm1516, %v2479, 0.0
    %v2498 = vadd.f32 %v2496, %v2497
    %v2499 = vrot.slane %v2498, 4
    %v2500 = vadd.f32 %v2498, %v2499
    %v2501 = vrot.slane %v2500, 2
    %v2502 = vadd.f32 %v2500, %v2501
    %v2503 = vrot.slane %v2502, 1
    %v2504 = vadd.f32 %v2502, %v2503
    %v2505 = vsel %vm1516, %v2480, 0.0
    %v2506 = vsel %vm1516, %v2481, 0.0
    %v2507 = vadd.f32 %v2505, %v2506
    %v2508 = vsel %vm1516, %v2482, 0.0
    %v2509 = vadd.f32 %v2507, %v2508
    %v2510 = vsel %vm1516, %v2483, 0.0
    %v2511 = vadd.f32 %v2509, %v2510
    %v2512 = vrot.slane %v2511, 4
    %v2513 = vadd.f32 %v2511, %v2512
    %v2514 = vrot.slane %v2513, 2
    %v2515 = vadd.f32 %v2513, %v2514
    %v2516 = vrot.slane %v2515, 1
    %v2517 = vadd.f32 %v2515, %v2516
    %v2518 = vsel %vm1516, %v2484, 0.0
    %v2519 = vsel %vm1516, %v2485, 0.0
    %v2520 = vadd.f32 %v2518, %v2519
    %v2521 = vsel %vm1516, %v2486, 0.0
    %v2522 = vadd.f32 %v2520, %v2521
    %v2523 = vsel %vm1516, %v2487, 0.0
    %v2524 = vadd.f32 %v2522, %v2523
    %v2525 = vrot.slane %v2524, 4
    %v2526 = vadd.f32 %v2524, %v2525
    %v2527 = vrot.slane %v2526, 2
    %v2528 = vadd.f32 %v2526, %v2527
    %v2529 = vrot.slane %v2528, 1
    %v2530 = vadd.f32 %v2528, %v2529
    %v2531 = vsel %vm1516, %v2488, 0.0
    %v2532 = vsel %vm1516, %v2489, 0.0
    %v2533 = vadd.f32 %v2531, %v2532
    %v2534 = vsel %vm1516, %v2490, 0.0
    %v2535 = vadd.f32 %v2533, %v2534
    %v2536 = vsel %vm1516, %v2491, 0.0
    %v2537 = vadd.f32 %v2535, %v2536
    %v2538 = vrot.slane %v2537, 4
    %v2539 = vadd.f32 %v2537, %v2538
    %v2540 = vrot.slane %v2539, 2
    %v2541 = vadd.f32 %v2539, %v2540
    %v2542 = vrot.slane %v2541, 1
    %v2543 = vadd.f32 %v2541, %v2542
    %2560 = vrot.lane.b32.xlu0 %v34, 127
    %v2561 = vpop.permute.xlu0 %2560
    %2562 = vrot.lane.b32.xlu0 %v35, 127
    %v2563 = vpop.permute.xlu0 %2562
    %2564 = vrot.lane.b32.xlu0 %v36, 127
    %v2565 = vpop.permute.xlu0 %2564
    %2566 = vrot.lane.b32.xlu0 %v37, 127
    %v2567 = vpop.permute.xlu0 %2566
    %2568 = vrot.lane.b32.xlu0 %v38, 127
    %v2569 = vpop.permute.xlu0 %2568
    %2570 = vrot.lane.b32.xlu0 %v39, 127
    %v2571 = vpop.permute.xlu0 %2570
    %2572 = vrot.lane.b32.xlu0 %v40, 127
    %v2573 = vpop.permute.xlu0 %2572
    %2574 = vrot.lane.b32.xlu0 %v41, 127
    %v2575 = vpop.permute.xlu0 %2574
    %2576 = vrot.lane.b32.xlu0 %v42, 127
    %v2577 = vpop.permute.xlu0 %2576
    %2578 = vrot.lane.b32.xlu0 %v43, 127
    %v2579 = vpop.permute.xlu0 %2578
    %2580 = vrot.lane.b32.xlu0 %v44, 127
    %v2581 = vpop.permute.xlu0 %2580
    %2582 = vrot.lane.b32.xlu0 %v45, 127
    %v2583 = vpop.permute.xlu0 %2582
    %2584 = vrot.lane.b32.xlu0 %v46, 127
    %v2585 = vpop.permute.xlu0 %2584
    %2586 = vrot.lane.b32.xlu0 %v47, 127
    %v2587 = vpop.permute.xlu0 %2586
    %2588 = vrot.lane.b32.xlu0 %v48, 127
    %v2589 = vpop.permute.xlu0 %2588
    %2590 = vrot.lane.b32.xlu0 %v49, 127
    %v2591 = vpop.permute.xlu0 %2590
    %v2608 = vsel %vm1677, %v2561, 0.0
    %v2609 = vsel %vm1678, %v2563, 0.0
    %v2610 = vsel %vm1679, %v2565, 0.0
    %v2611 = vsel %vm1680, %v2567, 0.0
    %v2612 = vsel %vm1681, %v2569, 0.0
    %v2613 = vsel %vm1682, %v2571, 0.0
    %v2614 = vsel %vm1683, %v2573, 0.0
    %v2615 = vsel %vm1684, %v2575, 0.0
    %v2616 = vsel %vm1685, %v2577, 0.0
    %v2617 = vsel %vm1686, %v2579, 0.0
    %v2618 = vsel %vm1687, %v2581, 0.0
    %v2619 = vsel %vm1688, %v2583, 0.0
    %v2620 = vsel %vm1689, %v2585, 0.0
    %v2621 = vsel %vm1690, %v2587, 0.0
    %v2622 = vsel %vm1691, %v2589, 0.0
    %v2623 = vsel %vm1692, %v2591, 0.0
    %v2624 = vsel %vm1516, %v2608, 0.0
    %v2625 = vsel %vm1516, %v2609, 0.0
    %v2626 = vadd.f32 %v2624, %v2625
    %v2627 = vsel %vm1516, %v2610, 0.0
    %v2628 = vadd.f32 %v2626, %v2627
    %v2629 = vsel %vm1516, %v2611, 0.0
    %v2630 = vadd.f32 %v2628, %v2629
    %v2631 = vrot.slane %v2630, 4
    %v2632 = vadd.f32 %v2630, %v2631
    %v2633 = vrot.slane %v2632, 2
    %v2634 = vadd.f32 %v2632, %v2633
    %v2635 = vrot.slane %v2634, 1
    %v2636 = vadd.f32 %v2634, %v2635
    %v2637 = vsel %vm1516, %v2612, 0.0
    %v2638 = vsel %vm1516, %v2613, 0.0
    %v2639 = vadd.f32 %v2637, %v2638
    %v2640 = vsel %vm1516, %v2614, 0.0
    %v2641 = vadd.f32 %v2639, %v2640
    %v2642 = vsel %vm1516, %v2615, 0.0
    %v2643 = vadd.f32 %v2641, %v2642
    %v2644 = vrot.slane %v2643, 4
    %v2645 = vadd.f32 %v2643, %v2644
    %v2646 = vrot.slane %v2645, 2
    %v2647 = vadd.f32 %v2645, %v2646
    %v2648 = vrot.slane %v2647, 1
    %v2649 = vadd.f32 %v2647, %v2648
    %v2650 = vsel %vm1516, %v2616, 0.0
    %v2651 = vsel %vm1516, %v2617, 0.0
    %v2652 = vadd.f32 %v2650, %v2651
    %v2653 = vsel %vm1516, %v2618, 0.0
    %v2654 = vadd.f32 %v2652, %v2653
    %v2655 = vsel %vm1516, %v2619, 0.0
    %v2656 = vadd.f32 %v2654, %v2655
    %v2657 = vrot.slane %v2656, 4
    %v2658 = vadd.f32 %v2656, %v2657
    %v2659 = vrot.slane %v2658, 2
    %v2660 = vadd.f32 %v2658, %v2659
    %v2661 = vrot.slane %v2660, 1
    %v2662 = vadd.f32 %v2660, %v2661
    %v2663 = vsel %vm1516, %v2620, 0.0
    %v2664 = vsel %vm1516, %v2621, 0.0
    %v2665 = vadd.f32 %v2663, %v2664
    %v2666 = vsel %vm1516, %v2622, 0.0
    %v2667 = vadd.f32 %v2665, %v2666
    %v2668 = vsel %vm1516, %v2623, 0.0
    %v2669 = vadd.f32 %v2667, %v2668
    %v2670 = vrot.slane %v2669, 4
    %v2671 = vadd.f32 %v2669, %v2670
    %v2672 = vrot.slane %v2671, 2
    %v2673 = vadd.f32 %v2671, %v2672
    %v2674 = vrot.slane %v2673, 1
    %v2675 = vadd.f32 %v2673, %v2674
    %2676 = vrot.lane.b32.xlu0 %v34, 126
    %v2677 = vpop.permute.xlu0 %2676
    %2678 = vrot.lane.b32.xlu0 %v35, 126
    %v2679 = vpop.permute.xlu0 %2678
    %2680 = vrot.lane.b32.xlu0 %v36, 126
    %v2681 = vpop.permute.xlu0 %2680
    %2682 = vrot.lane.b32.xlu0 %v37, 126
    %v2683 = vpop.permute.xlu0 %2682
    %2684 = vrot.lane.b32.xlu0 %v38, 126
    %v2685 = vpop.permute.xlu0 %2684
    %2686 = vrot.lane.b32.xlu0 %v39, 126
    %v2687 = vpop.permute.xlu0 %2686
    %2688 = vrot.lane.b32.xlu0 %v40, 126
    %v2689 = vpop.permute.xlu0 %2688
    %2690 = vrot.lane.b32.xlu0 %v41, 126
    %v2691 = vpop.permute.xlu0 %2690
    %2692 = vrot.lane.b32.xlu0 %v42, 126
    %v2693 = vpop.permute.xlu0 %2692
    %2694 = vrot.lane.b32.xlu0 %v43, 126
    %v2695 = vpop.permute.xlu0 %2694
    %2696 = vrot.lane.b32.xlu0 %v44, 126
    %v2697 = vpop.permute.xlu0 %2696
    %2698 = vrot.lane.b32.xlu0 %v45, 126
    %v2699 = vpop.permute.xlu0 %2698
    %2700 = vrot.lane.b32.xlu0 %v46, 126
    %v2701 = vpop.permute.xlu0 %2700
    %2702 = vrot.lane.b32.xlu0 %v47, 126
    %v2703 = vpop.permute.xlu0 %2702
    %2704 = vrot.lane.b32.xlu0 %v48, 126
    %v2705 = vpop.permute.xlu0 %2704
    %2706 = vrot.lane.b32.xlu0 %v49, 126
    %v2707 = vpop.permute.xlu0 %2706
    %v2724 = vsel %vm1677, %v2677, 0.0
    %v2725 = vsel %vm1678, %v2679, 0.0
    %v2726 = vsel %vm1679, %v2681, 0.0
    %v2727 = vsel %vm1680, %v2683, 0.0
    %v2728 = vsel %vm1681, %v2685, 0.0
    %v2729 = vsel %vm1682, %v2687, 0.0
    %v2730 = vsel %vm1683, %v2689, 0.0
    %v2731 = vsel %vm1684, %v2691, 0.0
    %v2732 = vsel %vm1685, %v2693, 0.0
    %v2733 = vsel %vm1686, %v2695, 0.0
    %v2734 = vsel %vm1687, %v2697, 0.0
    %v2735 = vsel %vm1688, %v2699, 0.0
    %v2736 = vsel %vm1689, %v2701, 0.0
    %v2737 = vsel %vm1690, %v2703, 0.0
    %v2738 = vsel %vm1691, %v2705, 0.0
    %v2739 = vsel %vm1692, %v2707, 0.0
    %v2740 = vsel %vm1516, %v2724, 0.0
    %v2741 = vsel %vm1516, %v2725, 0.0
    %v2742 = vadd.f32 %v2740, %v2741
    %v2743 = vsel %vm1516, %v2726, 0.0
    %v2744 = vadd.f32 %v2742, %v2743
    %v2745 = vsel %vm1516, %v2727, 0.0
    %v2746 = vadd.f32 %v2744, %v2745
    %v2747 = vrot.slane %v2746, 4
    %v2748 = vadd.f32 %v2746, %v2747
    %v2749 = vrot.slane %v2748, 2
    %v2750 = vadd.f32 %v2748, %v2749
    %v2751 = vrot.slane %v2750, 1
    %v2752 = vadd.f32 %v2750, %v2751
    %v2753 = vsel %vm1516, %v2728, 0.0
    %v2754 = vsel %vm1516, %v2729, 0.0
    %v2755 = vadd.f32 %v2753, %v2754
    %v2756 = vsel %vm1516, %v2730, 0.0
    %v2757 = vadd.f32 %v2755, %v2756
    %v2758 = vsel %vm1516, %v2731, 0.0
    %v2759 = vadd.f32 %v2757, %v2758
    %v2760 = vrot.slane %v2759, 4
    %v2761 = vadd.f32 %v2759, %v2760
    %v2762 = vrot.slane %v2761, 2
    %v2763 = vadd.f32 %v2761, %v2762
    %v2764 = vrot.slane %v2763, 1
    %v2765 = vadd.f32 %v2763, %v2764
    %v2766 = vsel %vm1516, %v2732, 0.0
    %v2767 = vsel %vm1516, %v2733, 0.0
    %v2768 = vadd.f32 %v2766, %v2767
    %v2769 = vsel %vm1516, %v2734, 0.0
    %v2770 = vadd.f32 %v2768, %v2769
    %v2771 = vsel %vm1516, %v2735, 0.0
    %v2772 = vadd.f32 %v2770, %v2771
    %v2773 = vrot.slane %v2772, 4
    %v2774 = vadd.f32 %v2772, %v2773
    %v2775 = vrot.slane %v2774, 2
    %v2776 = vadd.f32 %v2774, %v2775
    %v2777 = vrot.slane %v2776, 1
    %v2778 = vadd.f32 %v2776, %v2777
    %v2779 = vsel %vm1516, %v2736, 0.0
    %v2780 = vsel %vm1516, %v2737, 0.0
    %v2781 = vadd.f32 %v2779, %v2780
    %v2782 = vsel %vm1516, %v2738, 0.0
    %v2783 = vadd.f32 %v2781, %v2782
    %v2784 = vsel %vm1516, %v2739, 0.0
    %v2785 = vadd.f32 %v2783, %v2784
    %v2786 = vrot.slane %v2785, 4
    %v2787 = vadd.f32 %v2785, %v2786
    %v2788 = vrot.slane %v2787, 2
    %v2789 = vadd.f32 %v2787, %v2788
    %v2790 = vrot.slane %v2789, 1
    %v2791 = vadd.f32 %v2789, %v2790
    %2792 = vrot.lane.b32.xlu0 %v34, 125
    %v2793 = vpop.permute.xlu0 %2792
    %2794 = vrot.lane.b32.xlu0 %v35, 125
    %v2795 = vpop.permute.xlu0 %2794
    %2796 = vrot.lane.b32.xlu0 %v36, 125
    %v2797 = vpop.permute.xlu0 %2796
    %2798 = vrot.lane.b32.xlu0 %v37, 125
    %v2799 = vpop.permute.xlu0 %2798
    %2800 = vrot.lane.b32.xlu0 %v38, 125
    %v2801 = vpop.permute.xlu0 %2800
    %2802 = vrot.lane.b32.xlu0 %v39, 125
    %v2803 = vpop.permute.xlu0 %2802
    %2804 = vrot.lane.b32.xlu0 %v40, 125
    %v2805 = vpop.permute.xlu0 %2804
    %2806 = vrot.lane.b32.xlu0 %v41, 125
    %v2807 = vpop.permute.xlu0 %2806
    %2808 = vrot.lane.b32.xlu0 %v42, 125
    %v2809 = vpop.permute.xlu0 %2808
    %2810 = vrot.lane.b32.xlu0 %v43, 125
    %v2811 = vpop.permute.xlu0 %2810
    %2812 = vrot.lane.b32.xlu0 %v44, 125
    %v2813 = vpop.permute.xlu0 %2812
    %2814 = vrot.lane.b32.xlu0 %v45, 125
    %v2815 = vpop.permute.xlu0 %2814
    %2816 = vrot.lane.b32.xlu0 %v46, 125
    %v2817 = vpop.permute.xlu0 %2816
    %2818 = vrot.lane.b32.xlu0 %v47, 125
    %v2819 = vpop.permute.xlu0 %2818
    %2820 = vrot.lane.b32.xlu0 %v48, 125
    %v2821 = vpop.permute.xlu0 %2820
    %2822 = vrot.lane.b32.xlu0 %v49, 125
    %v2823 = vpop.permute.xlu0 %2822
    %v2840 = vsel %vm1677, %v2793, 0.0
    %v2841 = vsel %vm1678, %v2795, 0.0
    %v2842 = vsel %vm1679, %v2797, 0.0
    %v2843 = vsel %vm1680, %v2799, 0.0
    %v2844 = vsel %vm1681, %v2801, 0.0
    %v2845 = vsel %vm1682, %v2803, 0.0
    %v2846 = vsel %vm1683, %v2805, 0.0
    %v2847 = vsel %vm1684, %v2807, 0.0
    %v2848 = vsel %vm1685, %v2809, 0.0
    %v2849 = vsel %vm1686, %v2811, 0.0
    %v2850 = vsel %vm1687, %v2813, 0.0
    %v2851 = vsel %vm1688, %v2815, 0.0
    %v2852 = vsel %vm1689, %v2817, 0.0
    %v2853 = vsel %vm1690, %v2819, 0.0
    %v2854 = vsel %vm1691, %v2821, 0.0
    %v2855 = vsel %vm1692, %v2823, 0.0
    %v2856 = vsel %vm1516, %v2840, 0.0
    %v2857 = vsel %vm1516, %v2841, 0.0
    %v2858 = vadd.f32 %v2856, %v2857
    %v2859 = vsel %vm1516, %v2842, 0.0
    %v2860 = vadd.f32 %v2858, %v2859
    %v2861 = vsel %vm1516, %v2843, 0.0
    %v2862 = vadd.f32 %v2860, %v2861
    %v2863 = vrot.slane %v2862, 4
    %v2864 = vadd.f32 %v2862, %v2863
    %v2865 = vrot.slane %v2864, 2
    %v2866 = vadd.f32 %v2864, %v2865
    %v2867 = vrot.slane %v2866, 1
    %v2868 = vadd.f32 %v2866, %v2867
    %v2869 = vsel %vm1516, %v2844, 0.0
    %v2870 = vsel %vm1516, %v2845, 0.0
    %v2871 = vadd.f32 %v2869, %v2870
    %v2872 = vsel %vm1516, %v2846, 0.0
    %v2873 = vadd.f32 %v2871, %v2872
    %v2874 = vsel %vm1516, %v2847, 0.0
    %v2875 = vadd.f32 %v2873, %v2874
    %v2876 = vrot.slane %v2875, 4
    %v2877 = vadd.f32 %v2875, %v2876
    %v2878 = vrot.slane %v2877, 2
    %v2879 = vadd.f32 %v2877, %v2878
    %v2880 = vrot.slane %v2879, 1
    %v2881 = vadd.f32 %v2879, %v2880
    %v2882 = vsel %vm1516, %v2848, 0.0
    %v2883 = vsel %vm1516, %v2849, 0.0
    %v2884 = vadd.f32 %v2882, %v2883
    %v2885 = vsel %vm1516, %v2850, 0.0
    %v2886 = vadd.f32 %v2884, %v2885
    %v2887 = vsel %vm1516, %v2851, 0.0
    %v2888 = vadd.f32 %v2886, %v2887
    %v2889 = vrot.slane %v2888, 4
    %v2890 = vadd.f32 %v2888, %v2889
    %v2891 = vrot.slane %v2890, 2
    %v2892 = vadd.f32 %v2890, %v2891
    %v2893 = vrot.slane %v2892, 1
    %v2894 = vadd.f32 %v2892, %v2893
    %v2895 = vsel %vm1516, %v2852, 0.0
    %v2896 = vsel %vm1516, %v2853, 0.0
    %v2897 = vadd.f32 %v2895, %v2896
    %v2898 = vsel %vm1516, %v2854, 0.0
    %v2899 = vadd.f32 %v2897, %v2898
    %v2900 = vsel %vm1516, %v2855, 0.0
    %v2901 = vadd.f32 %v2899, %v2900
    %v2902 = vrot.slane %v2901, 4
    %v2903 = vadd.f32 %v2901, %v2902
    %v2904 = vrot.slane %v2903, 2
    %v2905 = vadd.f32 %v2903, %v2904
    %v2906 = vrot.slane %v2905, 1
    %v2907 = vadd.f32 %v2905, %v2906
    %v2908 = vsub.f32 %v2504, %v461
    %v2909 = vsub.f32 %v2517, %v463
    %v2910 = vsub.f32 %v2530, %v461
    %v2911 = vsub.f32 %v2543, %v463
    %v2912 = vand.u32 2147483647, %v2908
    %v2913 = vand.u32 2147483647, %v2909
    %v2914 = vand.u32 2147483647, %v2910
    %v2915 = vand.u32 2147483647, %v2911
    %2916 = vrot.lane.b32.xlu0 %v455, 123
    %v2917 = vpop.permute.xlu0 %2916
    %2918 = vrot.lane.b32.xlu0 %v459, 123
    %v2919 = vpop.permute.xlu0 %2918
    %v2922 = vsub.f32 %v2636, %v2917
    %v2923 = vsub.f32 %v2649, %v2919
    %v2924 = vsub.f32 %v2662, %v2917
    %v2925 = vsub.f32 %v2675, %v2919
    %v2926 = vand.u32 2147483647, %v2922
    %v2927 = vand.u32 2147483647, %v2923
    %v2928 = vand.u32 2147483647, %v2924
    %v2929 = vand.u32 2147483647, %v2925
    %v2930 = vadd.f32 %v2912, %v2926
    %v2931 = vadd.f32 %v2913, %v2927
    %v2932 = vadd.f32 %v2914, %v2928
    %v2933 = vadd.f32 %v2915, %v2929
    %2934 = vrot.lane.b32.xlu0 %v455, 122
    %v2935 = vpop.permute.xlu0 %2934
    %2936 = vrot.lane.b32.xlu0 %v459, 122
    %v2937 = vpop.permute.xlu0 %2936
    %v2940 = vsub.f32 %v2752, %v2935
    %v2941 = vsub.f32 %v2765, %v2937
    %v2942 = vsub.f32 %v2778, %v2935
    %v2943 = vsub.f32 %v2791, %v2937
    %v2944 = vand.u32 2147483647, %v2940
    %v2945 = vand.u32 2147483647, %v2941
    %v2946 = vand.u32 2147483647, %v2942
    %v2947 = vand.u32 2147483647, %v2943
    %v2948 = vadd.f32 %v2930, %v2944
    %v2949 = vadd.f32 %v2931, %v2945
    %v2950 = vadd.f32 %v2932, %v2946
    %v2951 = vadd.f32 %v2933, %v2947
    %2952 = vrot.lane.b32.xlu0 %v455, 121
    %v2953 = vpop.permute.xlu0 %2952
    %2954 = vrot.lane.b32.xlu0 %v459, 121
    %v2955 = vpop.permute.xlu0 %2954
    %v2958 = vsub.f32 %v2868, %v2953
    %v2959 = vsub.f32 %v2881, %v2955
    %v2960 = vsub.f32 %v2894, %v2953
    %v2961 = vsub.f32 %v2907, %v2955
    %v2962 = vand.u32 2147483647, %v2958
    %v2963 = vand.u32 2147483647, %v2959
    %v2964 = vand.u32 2147483647, %v2960
    %v2965 = vand.u32 2147483647, %v2961
    %v2966 = vadd.f32 %v2948, %v2962
    %v2967 = vadd.f32 %v2949, %v2963
    %v2968 = vadd.f32 %v2950, %v2964
    %v2969 = vadd.f32 %v2951, %v2965
    %v2970 = vmul.f32 %v2752, 0.5
    %v2971 = vmul.f32 %v2765, 0.5
    %v2972 = vmul.f32 %v2778, 0.5
    %v2973 = vmul.f32 %v2791, 0.5
    %v2974 = vsub.f32 %v2504, %v2970
    %v2975 = vsub.f32 %v2517, %v2971
    %v2976 = vsub.f32 %v2530, %v2972
    %v2977 = vsub.f32 %v2543, %v2973
    %v2978 = vmul.f32 %v2868, 0.5
    %v2979 = vmul.f32 %v2881, 0.5
    %v2980 = vmul.f32 %v2894, 0.5
    %v2981 = vmul.f32 %v2907, 0.5
    %v2982 = vsub.f32 %v2636, %v2978
    %v2983 = vsub.f32 %v2649, %v2979
    %v2984 = vsub.f32 %v2662, %v2980
    %v2985 = vsub.f32 %v2675, %v2981
    %v2986 = vadd.f32 %v2504, %v2970
    %v2987 = vadd.f32 %v2517, %v2971
    %v2988 = vadd.f32 %v2530, %v2972
    %v2989 = vadd.f32 %v2543, %v2973
    %v2990 = vadd.f32 %v2636, %v2978
    %v2991 = vadd.f32 %v2649, %v2979
    %v2992 = vadd.f32 %v2662, %v2980
    %v2993 = vadd.f32 %v2675, %v2981
    %v2994 = vsub.f32 %v2986, %v2974
    %v2995 = vsub.f32 %v2987, %v2975
    %v2996 = vsub.f32 %v2988, %v2976
    %v2997 = vsub.f32 %v2989, %v2977
    %v2998 = vsub.f32 %v2990, %v2982
    %v2999 = vsub.f32 %v2991, %v2983
    %v3000 = vsub.f32 %v2992, %v2984
    %v3001 = vsub.f32 %v2993, %v2985
    %v3002 = vmul.f32 %v2994, %v2998
    %v3003 = vmul.f32 %v2995, %v2999
    %v3004 = vmul.f32 %v2996, %v3000
    %v3005 = vmul.f32 %v2997, %v3001
    %v3006 = vmax.f32 %v2974, %v951
    %v3007 = vmax.f32 %v2975, %v953
    %v3008 = vmax.f32 %v2976, %v951
    %v3009 = vmax.f32 %v2977, %v953
    %3010 = vrot.lane.b32.xlu0 %v945, 123
    %v3011 = vpop.permute.xlu0 %3010
    %3012 = vrot.lane.b32.xlu0 %v949, 123
    %v3013 = vpop.permute.xlu0 %3012
    %v3016 = vmax.f32 %v2982, %v3011
    %v3017 = vmax.f32 %v2983, %v3013
    %v3018 = vmax.f32 %v2984, %v3011
    %v3019 = vmax.f32 %v2985, %v3013
    %v3020 = vmin.f32 %v2986, %v983
    %v3021 = vmin.f32 %v2987, %v985
    %v3022 = vmin.f32 %v2988, %v983
    %v3023 = vmin.f32 %v2989, %v985
    %3024 = vrot.lane.b32.xlu0 %v977, 123
    %v3025 = vpop.permute.xlu0 %3024
    %3026 = vrot.lane.b32.xlu0 %v981, 123
    %v3027 = vpop.permute.xlu0 %3026
    %v3030 = vmin.f32 %v2990, %v3025
    %v3031 = vmin.f32 %v2991, %v3027
    %v3032 = vmin.f32 %v2992, %v3025
    %v3033 = vmin.f32 %v2993, %v3027
    %v3034 = vsub.f32 %v3020, %v3006
    %v3035 = vsub.f32 %v3021, %v3007
    %v3036 = vsub.f32 %v3022, %v3008
    %v3037 = vsub.f32 %v3023, %v3009
    %v3038 = vmax.f32 %v3034, 0.0
    %v3039 = vmax.f32 %v3035, 0.0
    %v3040 = vmax.f32 %v3036, 0.0
    %v3041 = vmax.f32 %v3037, 0.0
    %v3042 = vsub.f32 %v3030, %v3016
    %v3043 = vsub.f32 %v3031, %v3017
    %v3044 = vsub.f32 %v3032, %v3018
    %v3045 = vsub.f32 %v3033, %v3019
    %v3046 = vmax.f32 %v3042, 0.0
    %v3047 = vmax.f32 %v3043, 0.0
    %v3048 = vmax.f32 %v3044, 0.0
    %v3049 = vmax.f32 %v3045, 0.0
    %v3050 = vmul.f32 %v3038, %v3046
    %v3051 = vmul.f32 %v3039, %v3047
    %v3052 = vmul.f32 %v3040, %v3048
    %v3053 = vmul.f32 %v3041, %v3049
    %v3054 = vadd.f32 %v3002, %v1127
    %v3055 = vadd.f32 %v3003, %v1129
    %v3056 = vadd.f32 %v3004, %v1127
    %v3057 = vadd.f32 %v3005, %v1129
    %v3058 = vsub.f32 %v3054, %v3050
    %v3059 = vsub.f32 %v3055, %v3051
    %v3060 = vsub.f32 %v3056, %v3052
    %v3061 = vsub.f32 %v3057, %v3053
    %v3062 = vmin.f32 %v2974, %v951
    %v3063 = vmin.f32 %v2975, %v953
    %v3064 = vmin.f32 %v2976, %v951
    %v3065 = vmin.f32 %v2977, %v953
    %v3066 = vmin.f32 %v2982, %v3011
    %v3067 = vmin.f32 %v2983, %v3013
    %v3068 = vmin.f32 %v2984, %v3011
    %v3069 = vmin.f32 %v2985, %v3013
    %v3070 = vmax.f32 %v2986, %v983
    %v3071 = vmax.f32 %v2987, %v985
    %v3072 = vmax.f32 %v2988, %v983
    %v3073 = vmax.f32 %v2989, %v985
    %v3074 = vmax.f32 %v2990, %v3025
    %v3075 = vmax.f32 %v2991, %v3027
    %v3076 = vmax.f32 %v2992, %v3025
    %v3077 = vmax.f32 %v2993, %v3027
    %v3078 = vsub.f32 %v3070, %v3062
    %v3079 = vsub.f32 %v3071, %v3063
    %v3080 = vsub.f32 %v3072, %v3064
    %v3081 = vsub.f32 %v3073, %v3065
    %v3082 = vsub.f32 %v3074, %v3066
    %v3083 = vsub.f32 %v3075, %v3067
    %v3084 = vsub.f32 %v3076, %v3068
    %v3085 = vsub.f32 %v3077, %v3069
    %v3086 = vmul.f32 %v3078, %v3082
    %v3087 = vmul.f32 %v3079, %v3083
    %v3088 = vmul.f32 %v3080, %v3084
    %v3089 = vmul.f32 %v3081, %v3085
    %v3090 = vadd.f32 %v3058, 1e-07
    %v3091 = vadd.f32 %v3059, 1e-07
    %v3092 = vadd.f32 %v3060, 1e-07
    %v3093 = vadd.f32 %v3061, 1e-07
    %v3094 = vrcp.pop %v3090
    %v3095 = vmul.f32 1.0, %v3094
    %v3096 = vrcp.pop %v3091
    %v3097 = vmul.f32 1.0, %v3096
    %v3098 = vrcp.pop %v3092
    %v3099 = vmul.f32 1.0, %v3098
    %v3100 = vrcp.pop %v3093
    %v3101 = vmul.f32 1.0, %v3100
    %v3102 = vadd.f32 %v3086, 1e-07
    %v3103 = vadd.f32 %v3087, 1e-07
    %v3104 = vadd.f32 %v3088, 1e-07
    %v3105 = vadd.f32 %v3089, 1e-07
    %v3106 = vrcp.pop %v3102
    %v3107 = vmul.f32 1.0, %v3106
    %v3108 = vrcp.pop %v3103
    %v3109 = vmul.f32 1.0, %v3108
    %v3110 = vrcp.pop %v3104
    %v3111 = vmul.f32 1.0, %v3110
    %v3112 = vrcp.pop %v3105
    %v3113 = vmul.f32 1.0, %v3112
    %v3114 = vmul.f32 %v3050, %v3095
    %v3115 = vmul.f32 %v3051, %v3097
    %v3116 = vmul.f32 %v3052, %v3099
    %v3117 = vmul.f32 %v3053, %v3101
    %v3118 = vsub.f32 %v3086, %v3058
    %v3119 = vsub.f32 %v3087, %v3059
    %v3120 = vsub.f32 %v3088, %v3060
    %v3121 = vsub.f32 %v3089, %v3061
    %v3122 = vmul.f32 %v3118, %v3107
    %v3123 = vmul.f32 %v3119, %v3109
    %v3124 = vmul.f32 %v3120, %v3111
    %v3125 = vmul.f32 %v3121, %v3113
    %v3126 = vsub.f32 %v3114, %v3122
    %v3127 = vsub.f32 %v3115, %v3123
    %v3128 = vsub.f32 %v3116, %v3124
    %v3129 = vsub.f32 %v3117, %v3125
    %3130 = vrot.lane.b32.xlu0 %v455, 120
    %v3131 = vpop.permute.xlu0 %3130
    %3132 = vrot.lane.b32.xlu0 %v459, 120
    %v3133 = vpop.permute.xlu0 %3132
    %v3136 = vrcp.pop %v3131
    %v3137 = vmul.f32 %v2966, %v3136
    %v3138 = vrcp.pop %v3133
    %v3139 = vmul.f32 %v2967, %v3138
    %v3140 = vmul.f32 %v2968, %v3136
    %v3141 = vmul.f32 %v2969, %v3138
    %v3142 = vsel %vm2467, %v3137, 0.0
    %v3143 = vsel %vm2467, %v3139, 0.0
    %v3144 = vadd.f32 %v3142, %v3143
    %v3145 = vsel %vm2467, %v3140, 0.0
    %v3146 = vsel %vm2467, %v3141, 0.0
    %v3147 = vadd.f32 %v3145, %v3146
    %v3148 = vsub.f32 1.0, %v3126
    %v3149 = vsub.f32 1.0, %v3127
    %v3150 = vsub.f32 1.0, %v3128
    %v3151 = vsub.f32 1.0, %v3129
    %v3152 = vmul.f32 %v3148, %v3136
    %v3153 = vmul.f32 %v3149, %v3138
    %v3154 = vmul.f32 %v3150, %v3136
    %v3155 = vmul.f32 %v3151, %v3138
    %v3156 = vsel %vm2467, %v3152, 0.0
    %v3157 = vsel %vm2467, %v3153, 0.0
    %v3158 = vadd.f32 %v3156, %v3157
    %v3159 = vsel %vm2467, %v3154, 0.0
    %v3160 = vsel %vm2467, %v3155, 0.0
    %v3161 = vadd.f32 %v3159, %v3160
    %3164 = vrot.lane.b32.xlu0 %v2474, 3
    %v3165 = vpop.permute.xlu0 %3164
    %3166 = vrot.lane.b32.xlu0 %v2475, 3
    %v3167 = vpop.permute.xlu0 %3166
    %3172 = vrot.lane.b32.xlu0 %v3144, 4
    %v3173 = vpop.permute.xlu0 %3172
    %3174 = vrot.lane.b32.xlu0 %v3147, 4
    %v3175 = vpop.permute.xlu0 %3174
    %3180 = vrot.lane.b32.xlu0 %v3158, 5
    %v3181 = vpop.permute.xlu0 %3180
    %3182 = vrot.lane.b32.xlu0 %v3161, 5
    %v3183 = vpop.permute.xlu0 %3182
    %v3186 = vsel %vm1516, %v1974, %v2073
    %v3187 = vsel %vm1516, %v1976, %v2074
    %vm3188 = vcmask 15360
    %v3189 = vsel %vm3188, %v3186, %v2221
    %v3190 = vsel %vm3188, %v3187, %v2221
    %vm3191 = vcmask 23552
    %v3192 = vsel %vm3191, %v3189, %v3165
    %v3193 = vsel %vm3191, %v3190, %v3167
    %vm3194 = vcmask 31744
    %v3195 = vsel %vm3194, %v3192, %v3173
    %v3196 = vsel %vm3194, %v3193, %v3175
    %vm3197 = vcmask 39936
    %v3198 = vsel %vm3197, %v3195, %v3181
    %v3199 = vsel %vm3197, %v3196, %v3183
    %v3202 = vrot.slane %v3199, 7
    %vm3203 = vcmask 1041409
    %v3204 = vsel %vm3203, %v3202, %v3198
    %vm3206 = vcmask 1041408
    %v3207 = vsel %vm3206, %v3204, 0.0
    %vm3208 = vcmask 48128
    %v3209 = vsel %vm3208, %v3207, 0.0
    %3210 = vst [vmem:[#allocation2] sm:$0xff] %v3209
    // Predicated region
    $region18: #{tpu_custom_call.1} parent=1 // pred_check
      _
    $region19: #{tpu_custom_call.1} parent=1 // pred_check_branch
      %3212 = sbr.rel (0) target = $region21
    $region20: #{tpu_custom_call.1} parent=1 // pred_region
      %s3214 = ssub.s32 128, 128
      %3215 = vsyncadd [#allocation3], %s3214
      %s3217 = sshll.u32 [#allocation2], 4
      %s3218 = int_to_ptr.vmem [resolvable:$true] %s3217
      %3220 = dma.vmem_to_hbm [thread:$0]  %s3218, 128, %s4, [#allocation3]
    $region21: #{tpu_custom_call.1} parent=1 // pred_fallthru
      _
    // Predicated region
    $region22: #{tpu_custom_call.1} parent=1 // pred_check
      _
    $region23: #{tpu_custom_call.1} parent=1 // pred_check_branch
      %3222 = sbr.rel (0) target = $region25
    $region24: #{tpu_custom_call.1} parent=1 // pred_region
      %3223 = dma.done [#allocation3], 128
    $region25: #{tpu_custom_call.1} parent=1 // pred_fallthru
      _
    %3224 = vsyncpa [#allocation3], 1

</llo_original>
